<compile_context>
chip_gen: v7x
topology: tpu7x:2x2x1
jax: 0.10.0
libtpu: 0.0.40
codegen_flags: <defaults>
</compile_context>

<pallas_src>
import functools

import jax
import jax.numpy as jnp
from jax.experimental import pallas as pl
from jax.experimental.pallas import tpu as pltpu


# ----------------------------------------------------------------------------
# helpers
# ----------------------------------------------------------------------------
def _round_up(x, m):
    return ((x + m - 1) // m) * m


def _pick_divisor_tile(total, cap, align):
    """Largest multiple of `align` <= cap that divides `total` (total % align == 0)."""
    t = min(cap, total)
    t -= t % align
    t = max(t, align)
    while total % t:
        t -= align
    return t


# ----------------------------------------------------------------------------
# Pallas kernels
# ----------------------------------------------------------------------------
def _dense1_kernel(x_ref, w1_ref, b1_ref, h_ref, acc_ref):
    """K-tiled h = relu(relu(x) @ W1 + b1).

    grid = (N_blocks, K_blocks); bf16 MXU operands, f32 accumulation.
    The leading input relu is the module's `p = self.relu(ens_lang)`;
    dropout is identity in eval mode.
    """
    k = pl.program_id(1)

    @pl.when(k == 0)
    def _init():
        acc_ref[...] = jnp.zeros_like(acc_ref)

    x = jnp.maximum(x_ref[...], 0)                      # input ReLU (bf16, VPU)
    acc_ref[...] += jnp.dot(x, w1_ref[...], preferred_element_type=jnp.float32)

    @pl.when(k == pl.num_programs(1) - 1)
    def _fin():
        h_ref[...] = jnp.maximum(acc_ref[...] + b1_ref[...], 0.0)   # Linear + ReLU


def _ensdense_kernel(x_ref, w_ref, b_ref, o_ref):
    """Single-shot y = x @ W + b (full reduction dim: K = fusion_size is tiny)."""
    o_ref[...] = (jnp.dot(x_ref[...], w_ref[...],
                          preferred_element_type=jnp.float32)
                  + b_ref[...]).astype(o_ref.dtype)


# ----------------------------------------------------------------------------
# Pallas wrappers
# ----------------------------------------------------------------------------
def pallas_dense1(x_bf16, w1, b1, *, tk_target=8192):
    """h = relu(relu(x) @ W1 + b1).

    x_bf16: [M, K] bf16 (pre-cast in the caller), w1: [K, H] bf16, b1: [H] f32.
    Returns [M, H] f32.  K and H must be multiples of 128 (true by construction:
    K = 2*384*fusion_size, H = 384).
    """
    M, K = x_bf16.shape
    K1, H = w1.shape
    assert K == K1 and K % 128 == 0 and H % 128 == 0
    assert w1.dtype == jnp.bfloat16 and x_bf16.dtype == jnp.bfloat16

    tk = _pick_divisor_tile(K, tk_target, 128)          # big K tile, divides K
    nk = K // tk
    tn = 128                                            # H=384 -> 3 parallel N blocks
    Mp = _round_up(M, 8)
    x_p = jnp.pad(x_bf16, ((0, Mp - M), (0, 0)))

    h = pl.pallas_call(
        _dense1_kernel,
        out_shape=jax.ShapeDtypeStruct((Mp, H), jnp.float32),
        grid=(H // tn, nk),
        in_specs=[pl.BlockSpec((Mp, tk), lambda n, k: (0, k)),
                  pl.BlockSpec((tk, tn), lambda n, k: (k, n)),
                  pl.BlockSpec((1, tn), lambda n, k: (0, n))],
        out_specs=pl.BlockSpec((Mp, tn), lambda n, k: (0, n)),
        scratch_shapes=[pltpu.VMEM((Mp, tn), jnp.float32)],
        compiler_params=pltpu.CompilerParams(
            dimension_semantics=("parallel", "arbitrary")),
    )(x_p, w1, b1.astype(jnp.float32).reshape(1, H))
    return h[:M]


def pallas_ensdense(x, w, b, *, tm_cap=512):
    """y = x @ W + b with the whole (tiny) reduction dim in one block.

    x: [M, fs] (cast to bf16 here), w: [fs, E] bf16, b: [E] f32 -> [M, E] f32.
    """
    M, K = x.shape
    Kw, N = w.shape
    assert K == Kw and N % 128 == 0

    Mp = _round_up(M, 8)
    tm = _pick_divisor_tile(Mp, tm_cap, 8)              # divides Mp: no wasted rows
    x_p = jnp.pad(x.astype(jnp.bfloat16), ((0, Mp - M), (0, 0)))

    out = pl.pallas_call(
        _ensdense_kernel,
        out_shape=jax.ShapeDtypeStruct((Mp, N), jnp.float32),
        grid=(Mp // tm,),
        in_specs=[pl.BlockSpec((tm, K), lambda i: (i, 0)),
                  pl.BlockSpec((K, N), lambda i: (0, 0)),
                  pl.BlockSpec((1, N), lambda i: (0, 0))],
        out_specs=pl.BlockSpec((tm, N), lambda i: (i, 0)),
        compiler_params=pltpu.CompilerParams(
            dimension_semantics=("parallel",)),
    )(x_p, w, b.astype(jnp.float32).reshape(1, N))
    return out[:M]


# ----------------------------------------------------------------------------
# Parameter init (deterministic, synthetic — no checkpoint loading).
# Weights are created once in their final (bf16, tile-aligned) form so the
# jitted forward never pads or re-casts them.
# ----------------------------------------------------------------------------
def _glorot(key, shape, dtype=jnp.float32):
    fan_in, fan_out = shape
    lim = (6.0 / (fan_in + fan_out)) ** 0.5
    return jax.random.uniform(key, shape, jnp.float32, -lim, lim).astype(dtype)


def init_params(key, *, vocab, embedding_dim, fusion_size, num_predictions):
    ks = jax.random.split(key, 6)
    dense1_in = 2 * embedding_dim * fusion_size
    return {
        # TODO(synk): pretrained ChemBERTa RoBERTa encoder replaced by a
        # deterministic token-embedding table (no .pt checkpoint available).
        "emb_table": 0.05 * jax.random.normal(ks[0], (vocab, embedding_dim),
                                              jnp.float32),
        # nn.Linear(fusion_size, embedding_dim)
        "ensdense_w": _glorot(ks[1], (fusion_size, embedding_dim), jnp.bfloat16),
        "ensdense_b": jnp.zeros((embedding_dim,), jnp.float32),
        # dense = Sequential(Linear(2*E*fusion, E), ReLU, Linear(E, num_pred))
        "dense1_w": _glorot(ks[2], (dense1_in, embedding_dim), jnp.bfloat16),
        "dense1_b": jnp.zeros((embedding_dim,), jnp.float32),
        "dense2_w": _glorot(ks[3], (embedding_dim, num_predictions), jnp.float32),
        "dense2_b": jnp.zeros((num_predictions,), jnp.float32),
    }


# ----------------------------------------------------------------------------
# Forward pass (LangEnsemble.forward, chemberta-* branch)
# ----------------------------------------------------------------------------
def lang_ensemble_forward(params, srs, tokens, attention_masks, *,
                          embedding_dim, fusion_size, num_predictions,
                          mode="continuous"):
    B, height, width = srs.shape                      # ensemble fusions [B, fs, fs]

    # --- language model: token-level embeddings, strip [CLS]/[SEP] tokens ---
    token_embeddings = params["emb_table"][tokens][:, 1:-1, :]     # [B, S-2, E]
    # TODO(synk): boolean selection `[attention_mask_1d == 1]` is data-dependent
    # shaped; attention masks here are all-ones on the inner tokens so it
    # reduces to a reshape (atoms-per-molecule == fusion_size by construction).
    atom_embeddings = token_embeddings.reshape(B, fusion_size, embedding_dim)

    # srs_embeddings = self.ensdense(ensemble_fusions)  (Linear on last dim)
    srs_flat = srs.reshape(B * height, width)
    srs_emb = pallas_ensdense(srs_flat, params["ensdense_w"], params["ensdense_b"])
    srs_embeddings = srs_emb.reshape(B, height, embedding_dim)

    # ens_lang = torch.cat((srs_embeddings, atom_embeddings), dim=2).view(B, -1)
    ens_lang = jnp.concatenate([srs_embeddings, atom_embeddings], axis=2)
    ens_lang = ens_lang.reshape(B, -1)                              # [B, 2*E*fs]
    # Cast once in the wrapper: halves x DMA / VMEM; f32 accumulation in-kernel.
    ens_lang_bf16 = ens_lang.astype(jnp.bfloat16)

    # relu -> dropout(identity, eval) -> Linear(2*E*fs, E) -> ReLU   (one kernel,
    # N-parallel over the 3 hidden blocks so both TCs stream dense1_w on v7x)
    h = pallas_dense1(ens_lang_bf16, params["dense1_w"], params["dense1_b"])

    # dense2: Linear(E, num_predictions).  Tiny (B x 384 x P) — plain XLA is the
    # right tool here (per perf review); a Pallas launch would be pure overhead.
    p = h @ params["dense2_w"] + params["dense2_b"]                 # [B, P]

    # final_layer: Identity for mode='continuous' (and discrete w/ 1 class);
    # Softmax(dim=1) for discrete multi-class.
    if mode == "discrete" and num_predictions > 2:
        p = jax.nn.softmax(p, axis=1)
    return p


# ----------------------------------------------------------------------------
if __name__ == "__main__":
    # Small shapes consistent with the module (real model: fusion_size=320,
    # embedding_dim=384; fusion_size reduced for a self-contained test).
    B = 2
    FUSION_SIZE = 32
    EMB_DIM = 384
    SEQ_LEN = FUSION_SIZE + 2          # inner tokens == atoms == fusion_size
    VOCAB = 64
    NUM_PRED = 1

    key = jax.random.PRNGKey(0)
    pkey, skey, tkey = jax.random.split(key, 3)

    params = init_params(pkey, vocab=VOCAB, embedding_dim=EMB_DIM,
                         fusion_size=FUSION_SIZE, num_predictions=NUM_PRED)

    srs = jax.random.normal(skey, (B, FUSION_SIZE, FUSION_SIZE), jnp.float32)
    tokens = jax.random.randint(tkey, (B, SEQ_LEN), 0, VOCAB, dtype=jnp.int32)
    attention_masks = jnp.ones((B, SEQ_LEN), jnp.int32)

    fwd = jax.jit(functools.partial(
        lang_ensemble_forward, embedding_dim=EMB_DIM, fusion_size=FUSION_SIZE,
        num_predictions=NUM_PRED, mode="continuous"))

    out = fwd(params, srs, tokens, attention_masks)
    out = jax.block_until_ready(out)
    assert out.shape == (B, NUM_PRED)
    assert bool(jnp.all(jnp.isfinite(out)))
    print("KERNEL_OK")
</pallas_src>

<mosaic_0001>
module attributes {stable_mosaic.version = 11 : i64} {
  func.func @_ensdense_kernel(%arg0: i32, %arg1: memref<64x32xbf16, #tpu.memory_space<vmem>>, %arg2: memref<32x384xbf16, #tpu.memory_space<vmem>>, %arg3: memref<1x384xf32, #tpu.memory_space<vmem>>, %arg4: memref<64x384xf32, #tpu.memory_space<vmem>>) attributes {dimension_semantics = [#tpu.dimension_semantics<parallel>], iteration_bounds = array<i64: 1>, scalar_prefetch = 0 : i64, scratch_operands = 0 : i64, tpu.core_type = #tpu.core_type<tc>, window_params = [{transform_indices = @transform_0, window_bounds = array<i64: 64, 32>}, {pipeline_mode = #tpu.pipeline_mode<synchronous>, transform_indices = @transform_1, window_bounds = array<i64: 32, 384>}, {pipeline_mode = #tpu.pipeline_mode<synchronous>, transform_indices = @transform_2, window_bounds = array<i64: 1, 384>}, {transform_indices = @transform_3, window_bounds = array<i64: 64, 384>}]} {
    %c0 = arith.constant 0 : index
    %c0_0 = arith.constant 0 : index
    %0 = vector.load %arg1[%c0, %c0_0] : memref<64x32xbf16, #tpu.memory_space<vmem>>, vector<64x32xbf16>
    %c0_1 = arith.constant 0 : index
    %c0_2 = arith.constant 0 : index
    %1 = vector.load %arg2[%c0_1, %c0_2] : memref<32x384xbf16, #tpu.memory_space<vmem>>, vector<32x384xbf16>
    %cst = arith.constant dense<0.000000e+00> : vector<64x384xf32>
    %2 = tpu.matmul %0, %1, %cst {dimension_numbers = #tpu.dot_dimension_numbers<[1], [0], [0], [1], [0, 0, 1, 1], [], []>} : vector<64x32xbf16>, vector<32x384xbf16>, vector<64x384xf32> -> vector<64x384xf32>
    %c0_3 = arith.constant 0 : index
    %c0_4 = arith.constant 0 : index
    %3 = vector.load %arg3[%c0_3, %c0_4] : memref<1x384xf32, #tpu.memory_space<vmem>>, vector<1x384xf32>
    %4 = vector.broadcast %3 : vector<1x384xf32> to vector<64x384xf32>
    %5 = arith.addf %2, %4 : vector<64x384xf32>
    %c0_5 = arith.constant 0 : index
    %c0_6 = arith.constant 0 : index
    %6 = vector.load %arg4[%c0_5, %c0_6] : memref<64x384xf32, #tpu.memory_space<vmem>>, vector<64x384xf32>
    tpu.vector_store %arg4[%c0_5, %c0_6], %5 {strides = array<i32>} : memref<64x384xf32, #tpu.memory_space<vmem>>, vector<64x384xf32>,
    return
  }
  func.func @transform_0(%arg0: i32) -> (i32, i32) {
    %c0_i32 = arith.constant 0 : i32
    %c0_i32_0 = arith.constant 0 : i32
    return %arg0, %c0_i32 : i32, i32
  }
  func.func @transform_1(%arg0: i32) -> (i32, i32) {
    %c0_i32 = arith.constant 0 : i32
    %c0_i32_0 = arith.constant 0 : i32
    %c0_i32_1 = arith.constant 0 : i32
    return %c0_i32, %c0_i32_0 : i32, i32
  }
  func.func @transform_2(%arg0: i32) -> (i32, i32) {
    %c0_i32 = arith.constant 0 : i32
    %c0_i32_0 = arith.constant 0 : i32
    %c0_i32_1 = arith.constant 0 : i32
    return %c0_i32, %c0_i32_0 : i32, i32
  }
  func.func @transform_3(%arg0: i32) -> (i32, i32) {
    %c0_i32 = arith.constant 0 : i32
    %c0_i32_0 = arith.constant 0 : i32
    return %arg0, %c0_i32 : i32, i32
  }
}

module attributes {stable_mosaic.version = 11 : i64} {
  func.func @_dense1_kernel(%arg0: i32, %arg1: i32, %arg2: memref<8x8192xbf16, #tpu.memory_space<vmem>>, %arg3: memref<8192x128xbf16, #tpu.memory_space<vmem>>, %arg4: memref<1x128xf32, #tpu.memory_space<vmem>>, %arg5: memref<8x128xf32, #tpu.memory_space<vmem>>, %arg6: memref<8x128xf32, #tpu.memory_space<vmem>>) attributes {dimension_semantics = [#tpu.dimension_semantics<parallel>, #tpu.dimension_semantics<arbitrary>], iteration_bounds = array<i64: 3, 3>, scalar_prefetch = 0 : i64, scratch_operands = 1 : i64, tpu.core_type = #tpu.core_type<tc>, window_params = [{transform_indices = @transform_0, window_bounds = array<i64: 8, 8192>}, {transform_indices = @transform_1, window_bounds = array<i64: 8192, 128>}, {transform_indices = @transform_2, window_bounds = array<i64: 1, 128>}, {transform_indices = @transform_3, window_bounds = array<i64: 8, 128>}]} {
    %c0_i32 = arith.constant 0 : i32
    %0 = arith.cmpi eq, %arg1, %c0_i32 : i32
    %1 = arith.extui %0 : i1 to i32
    %c0_i32_0 = arith.constant 0 : i32
    %2 = arith.cmpi ne, %1, %c0_i32_0 : i32
    scf.if %2 {
      %cst_10 = arith.constant 0.000000e+00 : f32
      %14 = vector.broadcast %cst_10 : f32 to vector<8x128xf32>
      %c0_11 = arith.constant 0 : index
      %c0_12 = arith.constant 0 : index
      %15 = vector.load %arg6[%c0_11, %c0_12] : memref<8x128xf32, #tpu.memory_space<vmem>>, vector<8x128xf32>
      tpu.vector_store %arg6[%c0_11, %c0_12], %14 {strides = array<i32>} : memref<8x128xf32, #tpu.memory_space<vmem>>, vector<8x128xf32>,
    } else {
    }
    %c0 = arith.constant 0 : index
    %c0_1 = arith.constant 0 : index
    %3 = vector.load %arg2[%c0, %c0_1] : memref<8x8192xbf16, #tpu.memory_space<vmem>>, vector<8x8192xbf16>
    %cst = arith.constant 0.000000e+00 : bf16
    %4 = vector.broadcast %cst : bf16 to vector<8x8192xbf16>
    %5 = arith.maximumf %3, %4 : vector<8x8192xbf16>
    %c0_2 = arith.constant 0 : index
    %c0_3 = arith.constant 0 : index
    %6 = vector.load %arg6[%c0_2, %c0_3] : memref<8x128xf32, #tpu.memory_space<vmem>>, vector<8x128xf32>
    %c0_4 = arith.constant 0 : index
    %c0_5 = arith.constant 0 : index
    %7 = vector.load %arg3[%c0_4, %c0_5] : memref<8192x128xbf16, #tpu.memory_space<vmem>>, vector<8192x128xbf16>
    %cst_6 = arith.constant dense<0.000000e+00> : vector<8x128xf32>
    %8 = tpu.matmul %5, %7, %cst_6 {dimension_numbers = #tpu.dot_dimension_numbers<[1], [0], [0], [1], [0, 0, 1, 1], [], []>} : vector<8x8192xbf16>, vector<8192x128xbf16>, vector<8x128xf32> -> vector<8x128xf32>
    %9 = arith.addf %6, %8 : vector<8x128xf32>
    %c0_7 = arith.constant 0 : index
    %c0_8 = arith.constant 0 : index
    %10 = vector.load %arg6[%c0_7, %c0_8] : memref<8x128xf32, #tpu.memory_space<vmem>>, vector<8x128xf32>
    tpu.vector_store %arg6[%c0_7, %c0_8], %9 {strides = array<i32>} : memref<8x128xf32, #tpu.memory_space<vmem>>, vector<8x128xf32>,
    %c2_i32 = arith.constant 2 : i32
    %11 = arith.cmpi eq, %arg1, %c2_i32 : i32
    %12 = arith.extui %11 : i1 to i32
    %c0_i32_9 = arith.constant 0 : i32
    %13 = arith.cmpi ne, %12, %c0_i32_9 : i32
    scf.if %13 {
      %c0_10 = arith.constant 0 : index
      %c0_11 = arith.constant 0 : index
      %14 = vector.load %arg6[%c0_10, %c0_11] : memref<8x128xf32, #tpu.memory_space<vmem>>, vector<8x128xf32>
      %c0_12 = arith.constant 0 : index
      %c0_13 = arith.constant 0 : index
      %15 = vector.load %arg4[%c0_12, %c0_13] : memref<1x128xf32, #tpu.memory_space<vmem>>, vector<1x128xf32>
      %16 = vector.broadcast %15 : vector<1x128xf32> to vector<8x128xf32>
      %17 = arith.addf %14, %16 : vector<8x128xf32>
      %cst_14 = arith.constant 0.000000e+00 : f32
      %18 = vector.broadcast %cst_14 : f32 to vector<8x128xf32>
      %19 = arith.maximumf %17, %18 : vector<8x128xf32>
      %c0_15 = arith.constant 0 : index
      %c0_16 = arith.constant 0 : index
      %20 = vector.load %arg5[%c0_15, %c0_16] : memref<8x128xf32, #tpu.memory_space<vmem>>, vector<8x128xf32>
      tpu.vector_store %arg5[%c0_15, %c0_16], %19 {strides = array<i32>} : memref<8x128xf32, #tpu.memory_space<vmem>>, vector<8x128xf32>,
    } else {
    }
    return
  }
  func.func @transform_0(%arg0: i32, %arg1: i32) -> (i32, i32) {
    %c0_i32 = arith.constant 0 : i32
    %c0_i32_0 = arith.constant 0 : i32
    return %c0_i32, %arg1 : i32, i32
  }
  func.func @transform_1(%arg0: i32, %arg1: i32) -> (i32, i32) {
    %c0_i32 = arith.constant 0 : i32
    return %arg1, %arg0 : i32, i32
  }
  func.func @transform_2(%arg0: i32, %arg1: i32) -> (i32, i32) {
    %c0_i32 = arith.constant 0 : i32
    %c0_i32_0 = arith.constant 0 : i32
    return %c0_i32, %arg0 : i32, i32
  }
  func.func @transform_3(%arg0: i32, %arg1: i32) -> (i32, i32) {
    %c0_i32 = arith.constant 0 : i32
    %c0_i32_0 = arith.constant 0 : i32
    return %c0_i32, %arg0 : i32, i32
  }
}

</mosaic_0001>

<llo_original>
// kernel: lang_ensemble_forward.2
$region0: #{lang_ensemble_forward.2}
  #allocation0 [shape = 'u32[]', space=smem, size = 0x4, offset = 0x4, fixed_abs, tag = 'smem constant byte address 0x4 - core index']
  #allocation1 [shape = 'u32[144,128]{1,0:T(1,128)}', space=vmem, size = 0x12000, scoped, tag = 'internal scratch']
  %s0 = inlined_call_operand.vmem [shape: bf16[64,32], index: 0, kind: input, shape index: {}]
  %s1 = inlined_call_operand.hbm [shape: bf16[32,384], index: 1, kind: input, shape index: {}]
  %s2 = inlined_call_operand.vmem [shape: f32[1,384], index: 2, kind: input, shape index: {}]
  %s3 = inlined_call_operand.vmem [shape: f32[64,384], index: 3, kind: output, shape index: {}]
  %s4 = sld [smem:[#allocation0]]
  $region26: #{lang_ensemble_forward.2} parent=0
    _
  %s6 = ssub.s32 1, %s4
  %s7 = scalar_select 0, %s6, %s4
  $region1: #{lang_ensemble_forward.2} parent=0
    #allocation2 [shape = 'u8[24576]{0}', space=vmem, size = 0x6000, scoped, tag = 'input window, operand 1, single buffered']
    #allocation3 [shape = 's32[1]{0}', space=sflag, size = 0x4, scoped, tag = 'scoped memory for lang_ensemble_forward.2']
    %8 = vsyncpa [#allocation3], 0
    // Predicated region
    $region2: #{lang_ensemble_forward.2} parent=1 // pred_check
      _
    $region3: #{lang_ensemble_forward.2} parent=1 // pred_check_branch
      %10 = sbr.rel (0) target = $region5
    $region4: #{lang_ensemble_forward.2} parent=1 // pred_region
      _
    $region5: #{lang_ensemble_forward.2} parent=1 // pred_fallthru
      _
    // Predicated region
    $region6: #{lang_ensemble_forward.2} parent=1 // pred_check
      _
    $region7: #{lang_ensemble_forward.2} parent=1 // pred_check_branch
      %12 = sbr.rel (0) target = $region9
    $region8: #{lang_ensemble_forward.2} parent=1 // pred_region
      %s14 = ssub.s32 768, 768
      %15 = vsyncadd [#allocation3], %s14
      %s16 = sshll.u32 [#allocation2], 4
      %s17 = int_to_ptr.vmem [resolvable:$true] %s16
      %22 = dma.hbm_to_vmem [thread:$0]  %s1, 768, %s17, [#allocation3], 192, 192, 12
    $region9: #{lang_ensemble_forward.2} parent=1 // pred_fallthru
      _
    // Predicated region
    $region10: #{lang_ensemble_forward.2} parent=1 // pred_check
      _
    $region11: #{lang_ensemble_forward.2} parent=1 // pred_check_branch
      %24 = sbr.rel (0) target = $region13
    $region12: #{lang_ensemble_forward.2} parent=1 // pred_region
      _
    $region13: #{lang_ensemble_forward.2} parent=1 // pred_fallthru
      _
    // Predicated region
    $region14: #{lang_ensemble_forward.2} parent=1 // pred_check
      _
    $region15: #{lang_ensemble_forward.2} parent=1 // pred_check_branch
      %26 = sbr.rel (0) target = $region17
    $region16: #{lang_ensemble_forward.2} parent=1 // pred_region
      %27 = dma.done [#allocation3], 768
    $region17: #{lang_ensemble_forward.2} parent=1 // pred_fallthru
      _
    %v29 = vld [vmem:[%s0] sm:$0xf]
    %v30 = vld [vmem:[%s0 + $0x4] sm:$0xf]
    %v31 = vld [vmem:[%s0 + $0x8] sm:$0xf]
    %v32 = vld [vmem:[%s0 + $0xc] sm:$0xf]
    %v33 = vld [vmem:[%s0 + $0x10] sm:$0xf]
    %v34 = vld [vmem:[%s0 + $0x14] sm:$0xf]
    %v35 = vld [vmem:[%s0 + $0x18] sm:$0xf]
    %v36 = vld [vmem:[%s0 + $0x1c] sm:$0xf]
    %v37 = vld [vmem:[#allocation2] sm:$0xff]
    %v38 = vld [vmem:[#allocation2 + $0x8] sm:$0xf]
    %v39 = vld [vmem:[#allocation2 + $0xc] sm:$0xff]
    %v40 = vld [vmem:[#allocation2 + $0x14] sm:$0xf]
    %v41 = vld [vmem:[#allocation2 + $0x18] sm:$0xff]
    %v42 = vld [vmem:[#allocation2 + $0x20] sm:$0xf]
    %v43 = vld [vmem:[#allocation2 + $0x24] sm:$0xff]
    %v44 = vld [vmem:[#allocation2 + $0x2c] sm:$0xf]
    %v45 = vld [vmem:[%s2] sm:$0x7]
    %v47 = vlaneseq
    %v48 = vshrl.u32 %v47, 7
    %v49 = vsub.s32 0, %v48
    %v50 = vrot.slane %v45, %v49
    %v51 = vlaneseq
    %v52 = vshrl.u32 %v51, 7
    %v53 = vsub.s32 1, %v52
    %v54 = vrot.slane %v45, %v53
    %v55 = vlaneseq
    %v56 = vshrl.u32 %v55, 7
    %v57 = vsub.s32 2, %v56
    %v58 = vrot.slane %v45, %v57
    %v70 = vunpack.c.l.b16 %v29
    %v71 = vunpack.c.l.b16 %v30
    %v72 = vunpack.c.l.b16 %v31
    %v73 = vunpack.c.l.b16 %v32
    %v74 = vunpack.c.l.b16 %v33
    %v75 = vunpack.c.l.b16 %v34
    %v76 = vunpack.c.l.b16 %v35
    %v77 = vunpack.c.l.b16 %v36
    %v78 = vpack.c.b16 %v71, %v70
    %v79 = vpack.c.b16 %v73, %v72
    %v80 = vpack.c.b16 %v75, %v74
    %v81 = vpack.c.b16 %v77, %v76
    %v90 = vunpack.c.l.b16 %v37
    %v91 = vunpack.c.h.b16 %v37
    %v92 = vunpack.c.l.b16 %v38
    %v93 = vunpack.c.l.b16 %v39
    %v94 = vunpack.c.h.b16 %v39
    %v95 = vunpack.c.l.b16 %v40
    %v96 = vunpack.c.l.b16 %v41
    %v97 = vunpack.c.h.b16 %v41
    %v98 = vunpack.c.l.b16 %v42
    %v99 = vunpack.c.l.b16 %v43
    %v100 = vunpack.c.h.b16 %v43
    %v101 = vunpack.c.l.b16 %v44
    %v102 = vpack.c.b16 %v93, %v90
    %v103 = vpack.c.b16 %v94, %v91
    %v104 = vpack.c.b16 %v95, %v92
    %v105 = vpack.c.b16 %v99, %v96
    %v106 = vpack.c.b16 %v100, %v97
    %v107 = vpack.c.b16 %v101, %v98
    %vm114 = vcmask 261120
    %v116 = vsel %vm114, %v78, 0
    %v119 = vsel %vm114, %v79, 0
    %v122 = vsel %vm114, %v80, 0
    %v125 = vsel %vm114, %v81, 0
    %127 = vmatprep.subr.bf16.mxu0 %v103
    %128 = vmatpush1.bf16.msra.mxu0 %v102
    %129 = vmatprep.subr.bf16.mxu0 %v106
    %130 = vmatpush1.bf16.msra.mxu0 %v105
    %131 = vmatprep.subr.bf16.mxu0 0
    %132 = vmatpush1.bf16.msra.mxu0 0
    %133 = vmatprep.subr.bf16.mxu0 0
    %134 = vmatpush1.bf16.msra.mxu0 0
    %135 = vmatprep.subr.bf16.mxu0 0
    %136 = vmatpush1.bf16.msra.mxu0 0
    %137 = vmatprep.subr.bf16.mxu0 0
    %138 = vmatpush1.bf16.msra.mxu0 0
    %139 = vmatprep.subr.bf16.mxu0 0
    %140 = vmatpush1.bf16.msra.mxu0 0
    %141 = vmatprep.subr.bf16.mxu0 0
    %142 = vmatpush1.bf16.msra.mxu0 0
    %143 = vmatprep.subr.bf16.mxu0 0
    %144 = vmatpush1.bf16.msra.mxu0 0
    %145 = vmatprep.subr.bf16.mxu0 0
    %146 = vmatpush1.bf16.msra.mxu0 0
    %147 = vmatprep.subr.bf16.mxu0 0
    %148 = vmatpush1.bf16.msra.mxu0 0
    %149 = vmatprep.subr.bf16.mxu0 0
    %150 = vmatpush1.bf16.msra.mxu0 0
    %151 = vmatprep.subr.bf16.mxu0 0
    %152 = vmatpush1.bf16.msra.mxu0 0
    %153 = vmatprep.subr.bf16.mxu0 0
    %154 = vmatpush1.bf16.msra.mxu0 0
    %155 = vmatprep.subr.bf16.mxu0 0
    %156 = vmatpush1.bf16.msra.mxu0 0
    %157 = vmatprep.subr.bf16.mxu0 0
    %158 = vmatpush1.bf16.msra.mxu0 0
    %159 = vmatprep.mubr.bf16.mxu0 0
    %160 = vmatmul.mubr.bf16.gmra.mrb[0].mxu0 %v116
    %v161 = vpop.f32.mrb[0].mxu0
    %v162 = vadd.f32 %v50, %v161
    %v163 = vpop.f32.mrb[0].mxu0
    %v164 = vadd.f32 %v54, %v163
    %v165 = vpop.f32.mrb[0].mxu0
    %v166 = vadd.f32 %v50, %v165
    %v167 = vpop.f32.mrb[0].mxu0
    %v168 = vadd.f32 %v54, %v167
    %169 = vmatprep.mubr.bf16.mxu0 0
    %170 = vmatmul.mubr.bf16.gmra.mrb[0].mxu0 %v119
    %v171 = vpop.f32.mrb[0].mxu0
    %v172 = vadd.f32 %v50, %v171
    %v173 = vpop.f32.mrb[0].mxu0
    %v174 = vadd.f32 %v54, %v173
    %v175 = vpop.f32.mrb[0].mxu0
    %v176 = vadd.f32 %v50, %v175
    %v177 = vpop.f32.mrb[0].mxu0
    %v178 = vadd.f32 %v54, %v177
    %179 = vmatprep.mubr.bf16.mxu0 0
    %180 = vmatmul.mubr.bf16.gmra.mrb[0].mxu0 %v122
    %v181 = vpop.f32.mrb[0].mxu0
    %v182 = vadd.f32 %v50, %v181
    %v183 = vpop.f32.mrb[0].mxu0
    %v184 = vadd.f32 %v54, %v183
    %v185 = vpop.f32.mrb[0].mxu0
    %v186 = vadd.f32 %v50, %v185
    %v187 = vpop.f32.mrb[0].mxu0
    %v188 = vadd.f32 %v54, %v187
    %189 = vmatprep.mubr.bf16.mxu0 0
    %190 = vmatmul.mubr.bf16.gmra.mrb[0].mxu0 %v125
    %v191 = vpop.f32.mrb[0].mxu0
    %v192 = vadd.f32 %v50, %v191
    %v193 = vpop.f32.mrb[0].mxu0
    %v194 = vadd.f32 %v54, %v193
    %v195 = vpop.f32.mrb[0].mxu0
    %v196 = vadd.f32 %v50, %v195
    %v197 = vpop.f32.mrb[0].mxu0
    %v198 = vadd.f32 %v54, %v197
    %199 = vdwg.mxu0
    %200 = vmatprep.subr.bf16.mxu0 0
    %201 = vmatpush1.bf16.msra.mxu0 %v104
    %202 = vmatprep.subr.bf16.mxu0 0
    %203 = vmatpush1.bf16.msra.mxu0 %v107
    %204 = vmatprep.subr.bf16.mxu0 0
    %205 = vmatpush1.bf16.msra.mxu0 0
    %206 = vmatprep.subr.bf16.mxu0 0
    %207 = vmatpush1.bf16.msra.mxu0 0
    %208 = vmatprep.subr.bf16.mxu0 0
    %209 = vmatpush1.bf16.msra.mxu0 0
    %210 = vmatprep.subr.bf16.mxu0 0
    %211 = vmatpush1.bf16.msra.mxu0 0
    %212 = vmatprep.subr.bf16.mxu0 0
    %213 = vmatpush1.bf16.msra.mxu0 0
    %214 = vmatprep.subr.bf16.mxu0 0
    %215 = vmatpush1.bf16.msra.mxu0 0
    %216 = vmatprep.subr.bf16.mxu0 0
    %217 = vmatpush1.bf16.msra.mxu0 0
    %218 = vmatprep.subr.bf16.mxu0 0
    %219 = vmatpush1.bf16.msra.mxu0 0
    %220 = vmatprep.subr.bf16.mxu0 0
    %221 = vmatpush1.bf16.msra.mxu0 0
    %222 = vmatprep.subr.bf16.mxu0 0
    %223 = vmatpush1.bf16.msra.mxu0 0
    %224 = vmatprep.subr.bf16.mxu0 0
    %225 = vmatpush1.bf16.msra.mxu0 0
    %226 = vmatprep.subr.bf16.mxu0 0
    %227 = vmatpush1.bf16.msra.mxu0 0
    %228 = vmatprep.subr.bf16.mxu0 0
    %229 = vmatpush1.bf16.msra.mxu0 0
    %230 = vmatprep.subr.bf16.mxu0 0
    %231 = vmatpush1.bf16.msra.mxu0 0
    %232 = vmatprep.mubr.bf16.mxu0 0
    %233 = vmatmul.mubr.bf16.gmra.mrb[0].mxu0 %v116
    %v234 = vpop.f32.mrb[0].mxu0
    %v235 = vadd.f32 %v58, %v234
    %v236 = vpop.f32.mrb[0].mxu0
    %v237 = vpop.f32.mrb[0].mxu0
    %v238 = vadd.f32 %v58, %v237
    %v239 = vpop.f32.mrb[0].mxu0
    %240 = vmatprep.mubr.bf16.mxu0 0
    %241 = vmatmul.mubr.bf16.gmra.mrb[0].mxu0 %v119
    %v242 = vpop.f32.mrb[0].mxu0
    %v243 = vadd.f32 %v58, %v242
    %v244 = vpop.f32.mrb[0].mxu0
    %v245 = vpop.f32.mrb[0].mxu0
    %v246 = vadd.f32 %v58, %v245
    %v247 = vpop.f32.mrb[0].mxu0
    %248 = vmatprep.mubr.bf16.mxu0 0
    %249 = vmatmul.mubr.bf16.gmra.mrb[0].mxu0 %v122
    %v250 = vpop.f32.mrb[0].mxu0
    %v251 = vadd.f32 %v58, %v250
    %v252 = vpop.f32.mrb[0].mxu0
    %v253 = vpop.f32.mrb[0].mxu0
    %v254 = vadd.f32 %v58, %v253
    %v255 = vpop.f32.mrb[0].mxu0
    %256 = vmatprep.mubr.bf16.mxu0 0
    %257 = vmatmul.mubr.bf16.gmra.mrb[0].mxu0 %v125
    %v258 = vpop.f32.mrb[0].mxu0
    %v259 = vadd.f32 %v58, %v258
    %v260 = vpop.f32.mrb[0].mxu0
    %v261 = vpop.f32.mrb[0].mxu0
    %v262 = vadd.f32 %v58, %v261
    %v263 = vpop.f32.mrb[0].mxu0
    %264 = vdwg.mxu0
    %265 = vst [vmem:[%s3] sm:$0xff] %v162
    %266 = vst [vmem:[%s3 + $0x8] sm:$0xff] %v164
    %267 = vst [vmem:[%s3 + $0x10] sm:$0xff] %v235
    %268 = vst [vmem:[%s3 + $0x18] sm:$0xff] %v166
    %269 = vst [vmem:[%s3 + $0x20] sm:$0xff] %v168
    %270 = vst [vmem:[%s3 + $0x28] sm:$0xff] %v238
    %271 = vst [vmem:[%s3 + $0x30] sm:$0xff] %v172
    %272 = vst [vmem:[%s3 + $0x38] sm:$0xff] %v174
    %273 = vst [vmem:[%s3 + $0x40] sm:$0xff] %v243
    %274 = vst [vmem:[%s3 + $0x48] sm:$0xff] %v176
    %275 = vst [vmem:[%s3 + $0x50] sm:$0xff] %v178
    %276 = vst [vmem:[%s3 + $0x58] sm:$0xff] %v246
    %277 = vst [vmem:[%s3 + $0x60] sm:$0xff] %v182
    %278 = vst [vmem:[%s3 + $0x68] sm:$0xff] %v184
    %279 = vst [vmem:[%s3 + $0x70] sm:$0xff] %v251
    %280 = vst [vmem:[%s3 + $0x78] sm:$0xff] %v186
    %281 = vst [vmem:[%s3 + $0x80] sm:$0xff] %v188
    %282 = vst [vmem:[%s3 + $0x88] sm:$0xff] %v254
    %283 = vst [vmem:[%s3 + $0x90] sm:$0xff] %v192
    %284 = vst [vmem:[%s3 + $0x98] sm:$0xff] %v194
    %285 = vst [vmem:[%s3 + $0xa0] sm:$0xff] %v259
    %286 = vst [vmem:[%s3 + $0xa8] sm:$0xff] %v196
    %287 = vst [vmem:[%s3 + $0xb0] sm:$0xff] %v198
    %288 = vst [vmem:[%s3 + $0xb8] sm:$0xff] %v262
    // Predicated region
    $region18: #{lang_ensemble_forward.2} parent=1 // pred_check
      _
    $region19: #{lang_ensemble_forward.2} parent=1 // pred_check_branch
      %290 = sbr.rel (0) target = $region21
    $region20: #{lang_ensemble_forward.2} parent=1 // pred_region
      _
    $region21: #{lang_ensemble_forward.2} parent=1 // pred_fallthru
      _
    // Predicated region
    $region22: #{lang_ensemble_forward.2} parent=1 // pred_check
      _
    $region23: #{lang_ensemble_forward.2} parent=1 // pred_check_branch
      %292 = sbr.rel (0) target = $region25
    $region24: #{lang_ensemble_forward.2} parent=1 // pred_region
      _
    $region25: #{lang_ensemble_forward.2} parent=1 // pred_fallthru
      _
    %293 = vsyncpa [#allocation3], 1

// kernel: lang_ensemble_forward.3
$region0: #{lang_ensemble_forward.3}
  #allocation0 [shape = 'u32[]', space=smem, size = 0x4, offset = 0x4, fixed_abs, tag = 'smem constant byte address 0x4 - core index']
  #allocation1 [shape = 'u32[144,128]{1,0:T(1,128)}', space=vmem, size = 0x12000, scoped, tag = 'internal scratch']
  #allocation2 [shape = 'f32[8,128]{1,0:T(8,128)}', space=vmem, size = 0x1000, scoped, tag = 'scratch operand']
  %s0 = inlined_call_operand.vmem [shape: bf16[8,24576], index: 0, kind: input, shape index: {}]
  %s1 = inlined_call_operand.hbm [shape: bf16[24576,384], index: 1, kind: input, shape index: {}]
  %s2 = inlined_call_operand.vmem [shape: f32[1,384], index: 2, kind: input, shape index: {}]
  %s3 = inlined_call_operand.vmem [shape: f32[8,384], index: 3, kind: output, shape index: {}]
  %s4 = sld [smem:[#allocation0]]
  $region57: #{lang_ensemble_forward.3} parent=0
    _
  %s6 = ssub.s32 1, %s4
  %s7 = scalar_select 0, %s6, %s4
  $region1: #{lang_ensemble_forward.3} parent=0
    #allocation3 [shape = 'u8[4194304]{0}', space=vmem, size = 0x400000, scoped, tag = 'input window, operand 1']
    #allocation4 [shape = 's32[2]{0}', space=sflag, size = 0x8, scoped, tag = 'scoped memory for lang_ensemble_forward.3']
    %8 = vsyncpa [#allocation4], 0
    %s9 = scalar_lea.sflag [#allocation4], 1
    %10 = vsyncpa %s9, 0
    loop: start=0, step=1, limit=11
    $region2: #{lang_ensemble_forward.3} parent=1 // loop_pre_header
      _
    $region3: #{lang_ensemble_forward.3} parent=1 // loop_header
      %s12 = sphi 0, %s16
      %p13 = scmp.ge.s32.totalorder %s12, 11
      %s19 = sphi 0, %s31
      %s20 = sphi 0, %s27
      %s21 = sphi 0, %s19
      %s22 = sphi 0, %s20
      %s23 = sphi 0, %s21
      %s24 = sphi 0, %s22
      %s34 = sphi 0, %s36
      %s37 = sphi 0, %s34
      %s38 = sphi 0, %s37
      %s54 = sphi 0, %s38
      %s62 = sphi 0, %s64
      %s65 = sphi 0, %s62
      %s66 = sphi 0, %s65
      %s82 = sphi 0, %s66
      %s88 = sphi 0, %s90
      %s91 = sphi 0, %s88
      %s92 = sphi 0, %s91
      %s108 = sphi 0, %s92
      %s114 = sphi 0, %s116
      %s117 = sphi 0, %s114
      %s118 = sphi 0, %s117
      %s134 = sphi 0, %s118
    $region4: #{lang_ensemble_forward.3} parent=1 // loop_header_branch
      %15 = sbr.rel (%p13) target = $region8
    $region5: #{lang_ensemble_forward.3} parent=1 // loop_body
      %s17 = ssub.s32 %s12, 1
      %s18 = ssub.s32 %s12, 2
      %s25 = sadd.s32 1, %s20
      %p26 = scmp.ge.s32.totalorder %s25, 3
      %s27 = scalar_select %p26, 0, %s25
      %s28 = sadd.s32 1, %s19
      %s29 = scalar_select %p26, %s28, %s19
      %p30 = scmp.ge.s32.totalorder %s29, 3
      %s31 = scalar_select %p30, 0, %s29
      %s32 = ssub.s32 %s20, %s27
      %p33 = scmp.eq.s32.totalorder %s32, 0
      %s35 = sadd.s32 %s34, 1
      %s36 = scalar_select %p33, %s34, %s35
      %p39 = pneg %p33
      %p40 = scmp.eq.s32.totalorder %s12, 8
      %p41 = por %p39, %p40
      %p42 = scmp.ne.s32.totalorder %s34, %s37
      %p43 = scmp.eq.s32.totalorder %s12, 0
      %p44 = por %p42, %p43
      %p45 = scmp.ne.s32.totalorder %s34, %s37
      %p46 = scmp.eq.s32.totalorder %s17, 8
      %p47 = por %p45, %p46
      %p48 = scmp.ne.s32.totalorder %s37, %s38
      %p49 = scmp.eq.s32.totalorder %s17, 0
      %p50 = por %p48, %p49
      %p51 = scmp.ne.s32.totalorder %s37, %s38
      %p52 = scmp.eq.s32.totalorder %s18, 8
      %p53 = por %p51, %p52
      %p55 = scmp.ne.s32.totalorder %s38, %s54
      %p56 = scmp.eq.s32.totalorder %s18, 0
      %p57 = por %p55, %p56
      %s58 = ssub.s32 %s20, %s27
      %s59 = ssub.s32 %s19, %s31
      %s60 = sor.u32 %s58, %s59
      %p61 = scmp.eq.s32.totalorder %s60, 0
      %s63 = sadd.s32 %s62, 1
      %s64 = scalar_select %p61, %s62, %s63
      %p67 = pneg %p61
      %p68 = scmp.eq.s32.totalorder %s12, 8
      %p69 = por %p67, %p68
      %p70 = scmp.ne.s32.totalorder %s62, %s65
      %p71 = scmp.eq.s32.totalorder %s12, 0
      %p72 = por %p70, %p71
      %p73 = scmp.ne.s32.totalorder %s62, %s65
      %p74 = scmp.eq.s32.totalorder %s17, 8
      %p75 = por %p73, %p74
      %p76 = scmp.ne.s32.totalorder %s65, %s66
      %p77 = scmp.eq.s32.totalorder %s17, 0
      %p78 = por %p76, %p77
      %p79 = scmp.ne.s32.totalorder %s65, %s66
      %p80 = scmp.eq.s32.totalorder %s18, 8
      %p81 = por %p79, %p80
      %p83 = scmp.ne.s32.totalorder %s66, %s82
      %p84 = scmp.eq.s32.totalorder %s18, 0
      %p85 = por %p83, %p84
      %s86 = ssub.s32 %s19, %s31
      %p87 = scmp.eq.s32.totalorder %s86, 0
      %s89 = sadd.s32 %s88, 1
      %s90 = scalar_select %p87, %s88, %s89
      %p93 = pneg %p87
      %p94 = scmp.eq.s32.totalorder %s12, 8
      %p95 = por %p93, %p94
      %p96 = scmp.ne.s32.totalorder %s88, %s91
      %p97 = scmp.eq.s32.totalorder %s12, 0
      %p98 = por %p96, %p97
      %p99 = scmp.ne.s32.totalorder %s88, %s91
      %p100 = scmp.eq.s32.totalorder %s17, 8
      %p101 = por %p99, %p100
      %p102 = scmp.ne.s32.totalorder %s91, %s92
      %p103 = scmp.eq.s32.totalorder %s17, 0
      %p104 = por %p102, %p103
      %p105 = scmp.ne.s32.totalorder %s91, %s92
      %p106 = scmp.eq.s32.totalorder %s18, 8
      %p107 = por %p105, %p106
      %p109 = scmp.ne.s32.totalorder %s92, %s108
      %p110 = scmp.eq.s32.totalorder %s18, 0
      %p111 = por %p109, %p110
      %s112 = ssub.s32 %s19, %s31
      %p113 = scmp.eq.s32.totalorder %s112, 0
      %s115 = sadd.s32 %s114, 1
      %s116 = scalar_select %p113, %s114, %s115
      %p119 = pneg %p113
      %p120 = scmp.eq.s32.totalorder %s12, 8
      %p121 = por %p119, %p120
      %p122 = scmp.ne.s32.totalorder %s114, %s117
      %p123 = scmp.eq.s32.totalorder %s12, 0
      %p124 = por %p122, %p123
      %p125 = scmp.ne.s32.totalorder %s114, %s117
      %p126 = scmp.eq.s32.totalorder %s17, 8
      %p127 = por %p125, %p126
      %p128 = scmp.ne.s32.totalorder %s117, %s118
      %p129 = scmp.eq.s32.totalorder %s17, 0
      %p130 = por %p128, %p129
      %p131 = scmp.ne.s32.totalorder %s117, %s118
      %p132 = scmp.eq.s32.totalorder %s18, 8
      %p133 = por %p131, %p132
      %p135 = scmp.ne.s32.totalorder %s118, %s134
      %p136 = scmp.eq.s32.totalorder %s18, 0
      %p137 = por %p135, %p136
      %p138 = scmp.le.s32.totalorder 1, %s12
      %p139 = scmp.lt.s32.totalorder %s12, 10
      %p140 = pnand %p138, %p139
      %p141 = pneg %p140
      // Predicated region
      $region9: #{lang_ensemble_forward.3} parent=5 // pred_check
        _
      $region10: #{lang_ensemble_forward.3} parent=5 // pred_check_branch
        %143 = sbr.rel (%p140) target = $region12
      $region11: #{lang_ensemble_forward.3} parent=5 // pred_region
        %s144 = ssub.s32 %s12, 1
      $region12: #{lang_ensemble_forward.3} parent=5 // pred_fallthru
        _
      %p145 = scmp.lt.s32.totalorder %s12, 9
      // Predicated region
      $region13: #{lang_ensemble_forward.3} parent=5 // pred_check
        %p146 = pneg %p145
      $region14: #{lang_ensemble_forward.3} parent=5 // pred_check_branch
        %148 = sbr.rel (%p146) target = $region16
      $region15: #{lang_ensemble_forward.3} parent=5 // pred_region
        // Predicated region
        $region17: #{lang_ensemble_forward.3} parent=15 // pred_check
          %p149 = pneg %p44
        $region18: #{lang_ensemble_forward.3} parent=15 // pred_check_branch
          %151 = sbr.rel (%p149) target = $region20
        $region19: #{lang_ensemble_forward.3} parent=15 // pred_region
          %s152 = smul.u32 64, %s20
          %p153 = scmp.lt.s32.totalorder %s152, 191
          %s154 = scalar_select %p153, %s152, 191
          %s155 = smul.addr %s154, 4
          %s156 = scalar_lea.vmem %s0, %s155
          %s157 = smul.u32 64, %s20
        $region20: #{lang_ensemble_forward.3} parent=15 // pred_fallthru
          _
        // Predicated region
        $region21: #{lang_ensemble_forward.3} parent=15 // pred_check
          %p158 = pneg %p72
        $region22: #{lang_ensemble_forward.3} parent=15 // pred_check_branch
          %160 = sbr.rel (%p158) target = $region24
        $region23: #{lang_ensemble_forward.3} parent=15 // pred_region
          %s161 = sand.u32 %s62, 1
          %s162 = scalar_lea.sflag [#allocation4], %s161
          %s163 = sand.u32 %s62, 1
          %s164 = smul.addr %s163, 4096
          %s165 = scalar_lea.vmem [#allocation3], %s164
          %s166 = smul.u32 1024, %s20
          %s168 = ssub.s32 65536, 65536
          %169 = vsyncadd %s162, %s168
          %s170 = smul.addr %s166, 3
          %s171 = sadd.s32 %s19, %s170
          %s172 = smul.addr %s171, 64
          %s173 = scalar_lea.hbm %s1, %s172
          %s174 = sshll.u32 %s165, 4
          %s175 = int_to_ptr.vmem [resolvable:$true] %s174
          %180 = dma.hbm_to_vmem [thread:$0]  %s173, 65536, %s175, %s162, 192, 64, 4
        $region24: #{lang_ensemble_forward.3} parent=15 // pred_fallthru
          _
        // Predicated region
        $region25: #{lang_ensemble_forward.3} parent=15 // pred_check
          %p181 = pneg %p98
        $region26: #{lang_ensemble_forward.3} parent=15 // pred_check_branch
          %183 = sbr.rel (%p181) target = $region28
        $region27: #{lang_ensemble_forward.3} parent=15 // pred_region
          %p184 = scmp.lt.s32.totalorder %s19, 2
          %s185 = scalar_select %p184, %s19, 2
          %s186 = scalar_lea.vmem %s2, %s185
        $region28: #{lang_ensemble_forward.3} parent=15 // pred_fallthru
          _
      $region16: #{lang_ensemble_forward.3} parent=5 // pred_fallthru
        _
      %p187 = scmp.le.s32.totalorder 1, %s12
      %p188 = scmp.lt.s32.totalorder %s12, 10
      %p189 = pnand %p187, %p188
      %p190 = pneg %p189
      // Predicated region
      $region29: #{lang_ensemble_forward.3} parent=5 // pred_check
        _
      $region30: #{lang_ensemble_forward.3} parent=5 // pred_check_branch
        %192 = sbr.rel (%p189) target = $region32
      $region31: #{lang_ensemble_forward.3} parent=5 // pred_region
        %s193 = ssub.s32 %s12, 1
        %s194 = sand.u32 %s65, 1
        %s195 = scalar_lea.sflag [#allocation4], %s194
        %s196 = sand.u32 %s65, 1
        %s197 = smul.addr %s196, 4096
        %s198 = scalar_lea.vmem [#allocation3], %s197
        // Predicated region
        $region33: #{lang_ensemble_forward.3} parent=31 // pred_check
          %p199 = pneg %p78
        $region34: #{lang_ensemble_forward.3} parent=31 // pred_check_branch
          %201 = sbr.rel (%p199) target = $region36
        $region35: #{lang_ensemble_forward.3} parent=31 // pred_region
          %202 = dma.done %s195, 65536
        $region36: #{lang_ensemble_forward.3} parent=31 // pred_fallthru
          _
        %s203 = smul.u32 64, %s22
        %p204 = scmp.lt.s32.totalorder %s203, 191
        %s205 = scalar_select %p204, %s203, 191
        %s206 = smul.addr %s205, 4
        %s207 = scalar_lea.vmem %s0, %s206
        %p208 = pneg %p50
        %p209 = pneg %p47
        %s210 = sand.u32 %s65, 1
        %s211 = scalar_lea.sflag [#allocation4], %s210
        %s212 = sand.u32 %s65, 1
        %s213 = smul.addr %s212, 4096
        %s214 = scalar_lea.vmem [#allocation3], %s213
        %p215 = pneg %p78
        %p216 = pneg %p75
        %p217 = scmp.lt.s32.totalorder %s21, 2
        %s218 = scalar_select %p217, %s21, 2
        %s219 = scalar_lea.vmem %s2, %s218
        %p220 = pneg %p104
        %p221 = pneg %p101
        %p222 = pneg %p130
        %p223 = pneg %p127
        %p224 = scmp.lt.s32.totalorder %s21, 2
        %s225 = scalar_select %p224, %s21, 2
        %s226 = smul.addr %s225, 8
        %s227 = scalar_lea.vmem %s3, %s226
        %s228 = smul.u32 64, %s22
        %p229 = scmp.lt.s32.totalorder %s228, 191
        %s230 = scalar_select %p229, %s228, 191
        %s231 = smul.addr %s230, 4
        %s232 = scalar_lea.vmem %s0, %s231
        %s233 = smul.u32 64, %s22
        %s234 = smul.u32 1024, %s22
        %p235 = scmp.lt.s32.totalorder %s21, 2
        %s236 = scalar_select %p235, %s21, 2
        %s237 = scalar_lea.vmem %s2, %s236
        %p238 = scmp.lt.s32.totalorder %s21, 2
        %s239 = scalar_select %p238, %s21, 2
        %s240 = smul.addr %s239, 8
        %s241 = scalar_lea.vmem %s3, %s240
        %p243 = scmp.eq.s32.totalorder %s22, 0
        // Predicated region
        $region37: #{lang_ensemble_forward.3} parent=31 // pred_check
          %p244 = pneg %p243
        $region38: #{lang_ensemble_forward.3} parent=31 // pred_check_branch
          %246 = sbr.rel (%p244) target = $region40
        $region39: #{lang_ensemble_forward.3} parent=31 // pred_region
          %247 = vst [vmem:[#allocation2] sm:$0xff] 0.0
        $region40: #{lang_ensemble_forward.3} parent=31 // pred_fallthru
          _
        %v248 = vld [vmem:[%s232] sm:$0xff]
        %v249 = vld [vmem:[%s232 + $0x8] sm:$0xff]
        %v250 = vld [vmem:[%s232 + $0x10] sm:$0xff]
        %v251 = vld [vmem:[%s232 + $0x18] sm:$0xff]
        %v252 = vld [vmem:[%s232 + $0x20] sm:$0xff]
        %v253 = vld [vmem:[%s232 + $0x28] sm:$0xff]
        %v254 = vld [vmem:[%s232 + $0x30] sm:$0xff]
        %v255 = vld [vmem:[%s232 + $0x38] sm:$0xff]
        %v256 = vld [vmem:[%s232 + $0x40] sm:$0xff]
        %v257 = vld [vmem:[%s232 + $0x48] sm:$0xff]
        %v258 = vld [vmem:[%s232 + $0x50] sm:$0xff]
        %v259 = vld [vmem:[%s232 + $0x58] sm:$0xff]
        %v260 = vld [vmem:[%s232 + $0x60] sm:$0xff]
        %v261 = vld [vmem:[%s232 + $0x68] sm:$0xff]
        %v262 = vld [vmem:[%s232 + $0x70] sm:$0xff]
        %v263 = vld [vmem:[%s232 + $0x78] sm:$0xff]
        %v264 = vld [vmem:[%s232 + $0x80] sm:$0xff]
        %v265 = vld [vmem:[%s232 + $0x88] sm:$0xff]
        %v266 = vld [vmem:[%s232 + $0x90] sm:$0xff]
        %v267 = vld [vmem:[%s232 + $0x98] sm:$0xff]
        %v268 = vld [vmem:[%s232 + $0xa0] sm:$0xff]
        %v269 = vld [vmem:[%s232 + $0xa8] sm:$0xff]
        %v270 = vld [vmem:[%s232 + $0xb0] sm:$0xff]
        %v271 = vld [vmem:[%s232 + $0xb8] sm:$0xff]
        %v272 = vld [vmem:[%s232 + $0xc0] sm:$0xff]
        %v273 = vld [vmem:[%s232 + $0xc8] sm:$0xff]
        %v274 = vld [vmem:[%s232 + $0xd0] sm:$0xff]
        %v275 = vld [vmem:[%s232 + $0xd8] sm:$0xff]
        %v276 = vld [vmem:[%s232 + $0xe0] sm:$0xff]
        %v277 = vld [vmem:[%s232 + $0xe8] sm:$0xff]
        %v278 = vld [vmem:[%s232 + $0xf0] sm:$0xff]
        %v279 = vld [vmem:[%s232 + $0xf8] sm:$0xff]
        %v280 = vmax.bf16 %v248, 0
        %v281 = vmax.bf16 %v249, 0
        %v282 = vmax.bf16 %v250, 0
        %v283 = vmax.bf16 %v251, 0
        %v284 = vmax.bf16 %v252, 0
        %v285 = vmax.bf16 %v253, 0
        %v286 = vmax.bf16 %v254, 0
        %v287 = vmax.bf16 %v255, 0
        %v288 = vmax.bf16 %v256, 0
        %v289 = vmax.bf16 %v257, 0
        %v290 = vmax.bf16 %v258, 0
        %v291 = vmax.bf16 %v259, 0
        %v292 = vmax.bf16 %v260, 0
        %v293 = vmax.bf16 %v261, 0
        %v294 = vmax.bf16 %v262, 0
        %v295 = vmax.bf16 %v263, 0
        %v296 = vmax.bf16 %v264, 0
        %v297 = vmax.bf16 %v265, 0
        %v298 = vmax.bf16 %v266, 0
        %v299 = vmax.bf16 %v267, 0
        %v300 = vmax.bf16 %v268, 0
        %v301 = vmax.bf16 %v269, 0
        %v302 = vmax.bf16 %v270, 0
        %v303 = vmax.bf16 %v271, 0
        %v304 = vmax.bf16 %v272, 0
        %v305 = vmax.bf16 %v273, 0
        %v306 = vmax.bf16 %v274, 0
        %v307 = vmax.bf16 %v275, 0
        %v308 = vmax.bf16 %v276, 0
        %v309 = vmax.bf16 %v277, 0
        %v310 = vmax.bf16 %v278, 0
        %v311 = vmax.bf16 %v279, 0
        %v312 = vld [vmem:[#allocation2] sm:$0xff]
        %v313 = vld [vmem:[%s198] sm:$0xf]
        %v314 = vld [vmem:[%s198 + $0x4] sm:$0xf]
        %v315 = vld [vmem:[%s198 + $0x8] sm:$0xf]
        %v316 = vld [vmem:[%s198 + $0xc] sm:$0xf]
        %v317 = vld [vmem:[%s198 + $0x10] sm:$0xf]
        %v318 = vld [vmem:[%s198 + $0x14] sm:$0xf]
        %v319 = vld [vmem:[%s198 + $0x18] sm:$0xf]
        %v320 = vld [vmem:[%s198 + $0x1c] sm:$0xf]
        %v321 = vld [vmem:[%s198 + $0x20] sm:$0xf]
        %v322 = vld [vmem:[%s198 + $0x24] sm:$0xf]
        %v323 = vld [vmem:[%s198 + $0x28] sm:$0xf]
        %v324 = vld [vmem:[%s198 + $0x2c] sm:$0xf]
        %v325 = vld [vmem:[%s198 + $0x30] sm:$0xf]
        %v326 = vld [vmem:[%s198 + $0x34] sm:$0xf]
        %v327 = vld [vmem:[%s198 + $0x38] sm:$0xf]
        %v328 = vld [vmem:[%s198 + $0x3c] sm:$0xf]
        %v329 = vld [vmem:[%s198 + $0x40] sm:$0xf]
        %v330 = vld [vmem:[%s198 + $0x44] sm:$0xf]
        %v331 = vld [vmem:[%s198 + $0x48] sm:$0xf]
        %v332 = vld [vmem:[%s198 + $0x4c] sm:$0xf]
        %v333 = vld [vmem:[%s198 + $0x50] sm:$0xf]
        %v334 = vld [vmem:[%s198 + $0x54] sm:$0xf]
        %v335 = vld [vmem:[%s198 + $0x58] sm:$0xf]
        %v336 = vld [vmem:[%s198 + $0x5c] sm:$0xf]
        %v337 = vld [vmem:[%s198 + $0x60] sm:$0xf]
        %v338 = vld [vmem:[%s198 + $0x64] sm:$0xf]
        %v339 = vld [vmem:[%s198 + $0x68] sm:$0xf]
        %v340 = vld [vmem:[%s198 + $0x6c] sm:$0xf]
        %v341 = vld [vmem:[%s198 + $0x70] sm:$0xf]
        %v342 = vld [vmem:[%s198 + $0x74] sm:$0xf]
        %v343 = vld [vmem:[%s198 + $0x78] sm:$0xf]
        %v344 = vld [vmem:[%s198 + $0x7c] sm:$0xf]
        %v345 = vld [vmem:[%s198 + $0x80] sm:$0xf]
        %v346 = vld [vmem:[%s198 + $0x84] sm:$0xf]
        %v347 = vld [vmem:[%s198 + $0x88] sm:$0xf]
        %v348 = vld [vmem:[%s198 + $0x8c] sm:$0xf]
        %v349 = vld [vmem:[%s198 + $0x90] sm:$0xf]
        %v350 = vld [vmem:[%s198 + $0x94] sm:$0xf]
        %v351 = vld [vmem:[%s198 + $0x98] sm:$0xf]
        %v352 = vld [vmem:[%s198 + $0x9c] sm:$0xf]
        %v353 = vld [vmem:[%s198 + $0xa0] sm:$0xf]
        %v354 = vld [vmem:[%s198 + $0xa4] sm:$0xf]
        %v355 = vld [vmem:[%s198 + $0xa8] sm:$0xf]
        %v356 = vld [vmem:[%s198 + $0xac] sm:$0xf]
        %v357 = vld [vmem:[%s198 + $0xb0] sm:$0xf]
        %v358 = vld [vmem:[%s198 + $0xb4] sm:$0xf]
        %v359 = vld [vmem:[%s198 + $0xb8] sm:$0xf]
        %v360 = vld [vmem:[%s198 + $0xbc] sm:$0xf]
        %v361 = vld [vmem:[%s198 + $0xc0] sm:$0xf]
        %v362 = vld [vmem:[%s198 + $0xc4] sm:$0xf]
        %v363 = vld [vmem:[%s198 + $0xc8] sm:$0xf]
        %v364 = vld [vmem:[%s198 + $0xcc] sm:$0xf]
        %v365 = vld [vmem:[%s198 + $0xd0] sm:$0xf]
        %v366 = vld [vmem:[%s198 + $0xd4] sm:$0xf]
        %v367 = vld [vmem:[%s198 + $0xd8] sm:$0xf]
        %v368 = vld [vmem:[%s198 + $0xdc] sm:$0xf]
        %v369 = vld [vmem:[%s198 + $0xe0] sm:$0xf]
        %v370 = vld [vmem:[%s198 + $0xe4] sm:$0xf]
        %v371 = vld [vmem:[%s198 + $0xe8] sm:$0xf]
        %v372 = vld [vmem:[%s198 + $0xec] sm:$0xf]
        %v373 = vld [vmem:[%s198 + $0xf0] sm:$0xf]
        %v374 = vld [vmem:[%s198 + $0xf4] sm:$0xf]
        %v375 = vld [vmem:[%s198 + $0xf8] sm:$0xf]
        %v376 = vld [vmem:[%s198 + $0xfc] sm:$0xf]
        %v377 = vld [vmem:[%s198 + $0x100] sm:$0xf]
        %v378 = vld [vmem:[%s198 + $0x104] sm:$0xf]
        %v379 = vld [vmem:[%s198 + $0x108] sm:$0xf]
        %v380 = vld [vmem:[%s198 + $0x10c] sm:$0xf]
        %v381 = vld [vmem:[%s198 + $0x110] sm:$0xf]
        %v382 = vld [vmem:[%s198 + $0x114] sm:$0xf]
        %v383 = vld [vmem:[%s198 + $0x118] sm:$0xf]
        %v384 = vld [vmem:[%s198 + $0x11c] sm:$0xf]
        %v385 = vld [vmem:[%s198 + $0x120] sm:$0xf]
        %v386 = vld [vmem:[%s198 + $0x124] sm:$0xf]
        %v387 = vld [vmem:[%s198 + $0x128] sm:$0xf]
        %v388 = vld [vmem:[%s198 + $0x12c] sm:$0xf]
        %v389 = vld [vmem:[%s198 + $0x130] sm:$0xf]
        %v390 = vld [vmem:[%s198 + $0x134] sm:$0xf]
        %v391 = vld [vmem:[%s198 + $0x138] sm:$0xf]
        %v392 = vld [vmem:[%s198 + $0x13c] sm:$0xf]
        %v393 = vld [vmem:[%s198 + $0x140] sm:$0xf]
        %v394 = vld [vmem:[%s198 + $0x144] sm:$0xf]
        %v395 = vld [vmem:[%s198 + $0x148] sm:$0xf]
        %v396 = vld [vmem:[%s198 + $0x14c] sm:$0xf]
        %v397 = vld [vmem:[%s198 + $0x150] sm:$0xf]
        %v398 = vld [vmem:[%s198 + $0x154] sm:$0xf]
        %v399 = vld [vmem:[%s198 + $0x158] sm:$0xf]
        %v400 = vld [vmem:[%s198 + $0x15c] sm:$0xf]
        %v401 = vld [vmem:[%s198 + $0x160] sm:$0xf]
        %v402 = vld [vmem:[%s198 + $0x164] sm:$0xf]
        %v403 = vld [vmem:[%s198 + $0x168] sm:$0xf]
        %v404 = vld [vmem:[%s198 + $0x16c] sm:$0xf]
        %v405 = vld [vmem:[%s198 + $0x170] sm:$0xf]
        %v406 = vld [vmem:[%s198 + $0x174] sm:$0xf]
        %v407 = vld [vmem:[%s198 + $0x178] sm:$0xf]
        %v408 = vld [vmem:[%s198 + $0x17c] sm:$0xf]
        %v409 = vld [vmem:[%s198 + $0x180] sm:$0xf]
        %v410 = vld [vmem:[%s198 + $0x184] sm:$0xf]
        %v411 = vld [vmem:[%s198 + $0x188] sm:$0xf]
        %v412 = vld [vmem:[%s198 + $0x18c] sm:$0xf]
        %v413 = vld [vmem:[%s198 + $0x190] sm:$0xf]
        %v414 = vld [vmem:[%s198 + $0x194] sm:$0xf]
        %v415 = vld [vmem:[%s198 + $0x198] sm:$0xf]
        %v416 = vld [vmem:[%s198 + $0x19c] sm:$0xf]
        %v417 = vld [vmem:[%s198 + $0x1a0] sm:$0xf]
        %v418 = vld [vmem:[%s198 + $0x1a4] sm:$0xf]
        %v419 = vld [vmem:[%s198 + $0x1a8] sm:$0xf]
        %v420 = vld [vmem:[%s198 + $0x1ac] sm:$0xf]
        %v421 = vld [vmem:[%s198 + $0x1b0] sm:$0xf]
        %v422 = vld [vmem:[%s198 + $0x1b4] sm:$0xf]
        %v423 = vld [vmem:[%s198 + $0x1b8] sm:$0xf]
        %v424 = vld [vmem:[%s198 + $0x1bc] sm:$0xf]
        %v425 = vld [vmem:[%s198 + $0x1c0] sm:$0xf]
        %v426 = vld [vmem:[%s198 + $0x1c4] sm:$0xf]
        %v427 = vld [vmem:[%s198 + $0x1c8] sm:$0xf]
        %v428 = vld [vmem:[%s198 + $0x1cc] sm:$0xf]
        %v429 = vld [vmem:[%s198 + $0x1d0] sm:$0xf]
        %v430 = vld [vmem:[%s198 + $0x1d4] sm:$0xf]
        %v431 = vld [vmem:[%s198 + $0x1d8] sm:$0xf]
        %v432 = vld [vmem:[%s198 + $0x1dc] sm:$0xf]
        %v433 = vld [vmem:[%s198 + $0x1e0] sm:$0xf]
        %v434 = vld [vmem:[%s198 + $0x1e4] sm:$0xf]
        %v435 = vld [vmem:[%s198 + $0x1e8] sm:$0xf]
        %v436 = vld [vmem:[%s198 + $0x1ec] sm:$0xf]
        %v437 = vld [vmem:[%s198 + $0x1f0] sm:$0xf]
        %v438 = vld [vmem:[%s198 + $0x1f4] sm:$0xf]
        %v439 = vld [vmem:[%s198 + $0x1f8] sm:$0xf]
        %v440 = vld [vmem:[%s198 + $0x1fc] sm:$0xf]
        %v441 = vld [vmem:[%s198 + $0x200] sm:$0xf]
        %v442 = vld [vmem:[%s198 + $0x204] sm:$0xf]
        %v443 = vld [vmem:[%s198 + $0x208] sm:$0xf]
        %v444 = vld [vmem:[%s198 + $0x20c] sm:$0xf]
        %v445 = vld [vmem:[%s198 + $0x210] sm:$0xf]
        %v446 = vld [vmem:[%s198 + $0x214] sm:$0xf]
        %v447 = vld [vmem:[%s198 + $0x218] sm:$0xf]
        %v448 = vld [vmem:[%s198 + $0x21c] sm:$0xf]
        %v449 = vld [vmem:[%s198 + $0x220] sm:$0xf]
        %v450 = vld [vmem:[%s198 + $0x224] sm:$0xf]
        %v451 = vld [vmem:[%s198 + $0x228] sm:$0xf]
        %v452 = vld [vmem:[%s198 + $0x22c] sm:$0xf]
        %v453 = vld [vmem:[%s198 + $0x230] sm:$0xf]
        %v454 = vld [vmem:[%s198 + $0x234] sm:$0xf]
        %v455 = vld [vmem:[%s198 + $0x238] sm:$0xf]
        %v456 = vld [vmem:[%s198 + $0x23c] sm:$0xf]
        %v457 = vld [vmem:[%s198 + $0x240] sm:$0xf]
        %v458 = vld [vmem:[%s198 + $0x244] sm:$0xf]
        %v459 = vld [vmem:[%s198 + $0x248] sm:$0xf]
        %v460 = vld [vmem:[%s198 + $0x24c] sm:$0xf]
        %v461 = vld [vmem:[%s198 + $0x250] sm:$0xf]
        %v462 = vld [vmem:[%s198 + $0x254] sm:$0xf]
        %v463 = vld [vmem:[%s198 + $0x258] sm:$0xf]
        %v464 = vld [vmem:[%s198 + $0x25c] sm:$0xf]
        %v465 = vld [vmem:[%s198 + $0x260] sm:$0xf]
        %v466 = vld [vmem:[%s198 + $0x264] sm:$0xf]
        %v467 = vld [vmem:[%s198 + $0x268] sm:$0xf]
        %v468 = vld [vmem:[%s198 + $0x26c] sm:$0xf]
        %v469 = vld [vmem:[%s198 + $0x270] sm:$0xf]
        %v470 = vld [vmem:[%s198 + $0x274] sm:$0xf]
        %v471 = vld [vmem:[%s198 + $0x278] sm:$0xf]
        %v472 = vld [vmem:[%s198 + $0x27c] sm:$0xf]
        %v473 = vld [vmem:[%s198 + $0x280] sm:$0xf]
        %v474 = vld [vmem:[%s198 + $0x284] sm:$0xf]
        %v475 = vld [vmem:[%s198 + $0x288] sm:$0xf]
        %v476 = vld [vmem:[%s198 + $0x28c] sm:$0xf]
        %v477 = vld [vmem:[%s198 + $0x290] sm:$0xf]
        %v478 = vld [vmem:[%s198 + $0x294] sm:$0xf]
        %v479 = vld [vmem:[%s198 + $0x298] sm:$0xf]
        %v480 = vld [vmem:[%s198 + $0x29c] sm:$0xf]
        %v481 = vld [vmem:[%s198 + $0x2a0] sm:$0xf]
        %v482 = vld [vmem:[%s198 + $0x2a4] sm:$0xf]
        %v483 = vld [vmem:[%s198 + $0x2a8] sm:$0xf]
        %v484 = vld [vmem:[%s198 + $0x2ac] sm:$0xf]
        %v485 = vld [vmem:[%s198 + $0x2b0] sm:$0xf]
        %v486 = vld [vmem:[%s198 + $0x2b4] sm:$0xf]
        %v487 = vld [vmem:[%s198 + $0x2b8] sm:$0xf]
        %v488 = vld [vmem:[%s198 + $0x2bc] sm:$0xf]
        %v489 = vld [vmem:[%s198 + $0x2c0] sm:$0xf]
        %v490 = vld [vmem:[%s198 + $0x2c4] sm:$0xf]
        %v491 = vld [vmem:[%s198 + $0x2c8] sm:$0xf]
        %v492 = vld [vmem:[%s198 + $0x2cc] sm:$0xf]
        %v493 = vld [vmem:[%s198 + $0x2d0] sm:$0xf]
        %v494 = vld [vmem:[%s198 + $0x2d4] sm:$0xf]
        %v495 = vld [vmem:[%s198 + $0x2d8] sm:$0xf]
        %v496 = vld [vmem:[%s198 + $0x2dc] sm:$0xf]
        %v497 = vld [vmem:[%s198 + $0x2e0] sm:$0xf]
        %v498 = vld [vmem:[%s198 + $0x2e4] sm:$0xf]
        %v499 = vld [vmem:[%s198 + $0x2e8] sm:$0xf]
        %v500 = vld [vmem:[%s198 + $0x2ec] sm:$0xf]
        %v501 = vld [vmem:[%s198 + $0x2f0] sm:$0xf]
        %v502 = vld [vmem:[%s198 + $0x2f4] sm:$0xf]
        %v503 = vld [vmem:[%s198 + $0x2f8] sm:$0xf]
        %v504 = vld [vmem:[%s198 + $0x2fc] sm:$0xf]
        %v505 = vld [vmem:[%s198 + $0x300] sm:$0xf]
        %v506 = vld [vmem:[%s198 + $0x304] sm:$0xf]
        %v507 = vld [vmem:[%s198 + $0x308] sm:$0xf]
        %v508 = vld [vmem:[%s198 + $0x30c] sm:$0xf]
        %v509 = vld [vmem:[%s198 + $0x310] sm:$0xf]
        %v510 = vld [vmem:[%s198 + $0x314] sm:$0xf]
        %v511 = vld [vmem:[%s198 + $0x318] sm:$0xf]
        %v512 = vld [vmem:[%s198 + $0x31c] sm:$0xf]
        %v513 = vld [vmem:[%s198 + $0x320] sm:$0xf]
        %v514 = vld [vmem:[%s198 + $0x324] sm:$0xf]
        %v515 = vld [vmem:[%s198 + $0x328] sm:$0xf]
        %v516 = vld [vmem:[%s198 + $0x32c] sm:$0xf]
        %v517 = vld [vmem:[%s198 + $0x330] sm:$0xf]
        %v518 = vld [vmem:[%s198 + $0x334] sm:$0xf]
        %v519 = vld [vmem:[%s198 + $0x338] sm:$0xf]
        %v520 = vld [vmem:[%s198 + $0x33c] sm:$0xf]
        %v521 = vld [vmem:[%s198 + $0x340] sm:$0xf]
        %v522 = vld [vmem:[%s198 + $0x344] sm:$0xf]
        %v523 = vld [vmem:[%s198 + $0x348] sm:$0xf]
        %v524 = vld [vmem:[%s198 + $0x34c] sm:$0xf]
        %v525 = vld [vmem:[%s198 + $0x350] sm:$0xf]
        %v526 = vld [vmem:[%s198 + $0x354] sm:$0xf]
        %v527 = vld [vmem:[%s198 + $0x358] sm:$0xf]
        %v528 = vld [vmem:[%s198 + $0x35c] sm:$0xf]
        %v529 = vld [vmem:[%s198 + $0x360] sm:$0xf]
        %v530 = vld [vmem:[%s198 + $0x364] sm:$0xf]
        %v531 = vld [vmem:[%s198 + $0x368] sm:$0xf]
        %v532 = vld [vmem:[%s198 + $0x36c] sm:$0xf]
        %v533 = vld [vmem:[%s198 + $0x370] sm:$0xf]
        %v534 = vld [vmem:[%s198 + $0x374] sm:$0xf]
        %v535 = vld [vmem:[%s198 + $0x378] sm:$0xf]
        %v536 = vld [vmem:[%s198 + $0x37c] sm:$0xf]
        %v537 = vld [vmem:[%s198 + $0x380] sm:$0xf]
        %v538 = vld [vmem:[%s198 + $0x384] sm:$0xf]
        %v539 = vld [vmem:[%s198 + $0x388] sm:$0xf]
        %v540 = vld [vmem:[%s198 + $0x38c] sm:$0xf]
        %v541 = vld [vmem:[%s198 + $0x390] sm:$0xf]
        %v542 = vld [vmem:[%s198 + $0x394] sm:$0xf]
        %v543 = vld [vmem:[%s198 + $0x398] sm:$0xf]
        %v544 = vld [vmem:[%s198 + $0x39c] sm:$0xf]
        %v545 = vld [vmem:[%s198 + $0x3a0] sm:$0xf]
        %v546 = vld [vmem:[%s198 + $0x3a4] sm:$0xf]
        %v547 = vld [vmem:[%s198 + $0x3a8] sm:$0xf]
        %v548 = vld [vmem:[%s198 + $0x3ac] sm:$0xf]
        %v549 = vld [vmem:[%s198 + $0x3b0] sm:$0xf]
        %v550 = vld [vmem:[%s198 + $0x3b4] sm:$0xf]
        %v551 = vld [vmem:[%s198 + $0x3b8] sm:$0xf]
        %v552 = vld [vmem:[%s198 + $0x3bc] sm:$0xf]
        %v553 = vld [vmem:[%s198 + $0x3c0] sm:$0xf]
        %v554 = vld [vmem:[%s198 + $0x3c4] sm:$0xf]
        %v555 = vld [vmem:[%s198 + $0x3c8] sm:$0xf]
        %v556 = vld [vmem:[%s198 + $0x3cc] sm:$0xf]
        %v557 = vld [vmem:[%s198 + $0x3d0] sm:$0xf]
        %v558 = vld [vmem:[%s198 + $0x3d4] sm:$0xf]
        %v559 = vld [vmem:[%s198 + $0x3d8] sm:$0xf]
        %v560 = vld [vmem:[%s198 + $0x3dc] sm:$0xf]
        %v561 = vld [vmem:[%s198 + $0x3e0] sm:$0xf]
        %v562 = vld [vmem:[%s198 + $0x3e4] sm:$0xf]
        %v563 = vld [vmem:[%s198 + $0x3e8] sm:$0xf]
        %v564 = vld [vmem:[%s198 + $0x3ec] sm:$0xf]
        %v565 = vld [vmem:[%s198 + $0x3f0] sm:$0xf]
        %v566 = vld [vmem:[%s198 + $0x3f4] sm:$0xf]
        %v567 = vld [vmem:[%s198 + $0x3f8] sm:$0xf]
        %v568 = vld [vmem:[%s198 + $0x3fc] sm:$0xf]
        %v569 = vld [vmem:[%s198 + $0x400] sm:$0xf]
        %v570 = vld [vmem:[%s198 + $0x404] sm:$0xf]
        %v571 = vld [vmem:[%s198 + $0x408] sm:$0xf]
        %v572 = vld [vmem:[%s198 + $0x40c] sm:$0xf]
        %v573 = vld [vmem:[%s198 + $0x410] sm:$0xf]
        %v574 = vld [vmem:[%s198 + $0x414] sm:$0xf]
        %v575 = vld [vmem:[%s198 + $0x418] sm:$0xf]
        %v576 = vld [vmem:[%s198 + $0x41c] sm:$0xf]
        %v577 = vld [vmem:[%s198 + $0x420] sm:$0xf]
        %v578 = vld [vmem:[%s198 + $0x424] sm:$0xf]
        %v579 = vld [vmem:[%s198 + $0x428] sm:$0xf]
        %v580 = vld [vmem:[%s198 + $0x42c] sm:$0xf]
        %v581 = vld [vmem:[%s198 + $0x430] sm:$0xf]
        %v582 = vld [vmem:[%s198 + $0x434] sm:$0xf]
        %v583 = vld [vmem:[%s198 + $0x438] sm:$0xf]
        %v584 = vld [vmem:[%s198 + $0x43c] sm:$0xf]
        %v585 = vld [vmem:[%s198 + $0x440] sm:$0xf]
        %v586 = vld [vmem:[%s198 + $0x444] sm:$0xf]
        %v587 = vld [vmem:[%s198 + $0x448] sm:$0xf]
        %v588 = vld [vmem:[%s198 + $0x44c] sm:$0xf]
        %v589 = vld [vmem:[%s198 + $0x450] sm:$0xf]
        %v590 = vld [vmem:[%s198 + $0x454] sm:$0xf]
        %v591 = vld [vmem:[%s198 + $0x458] sm:$0xf]
        %v592 = vld [vmem:[%s198 + $0x45c] sm:$0xf]
        %v593 = vld [vmem:[%s198 + $0x460] sm:$0xf]
        %v594 = vld [vmem:[%s198 + $0x464] sm:$0xf]
        %v595 = vld [vmem:[%s198 + $0x468] sm:$0xf]
        %v596 = vld [vmem:[%s198 + $0x46c] sm:$0xf]
        %v597 = vld [vmem:[%s198 + $0x470] sm:$0xf]
        %v598 = vld [vmem:[%s198 + $0x474] sm:$0xf]
        %v599 = vld [vmem:[%s198 + $0x478] sm:$0xf]
        %v600 = vld [vmem:[%s198 + $0x47c] sm:$0xf]
        %v601 = vld [vmem:[%s198 + $0x480] sm:$0xf]
        %v602 = vld [vmem:[%s198 + $0x484] sm:$0xf]
        %v603 = vld [vmem:[%s198 + $0x488] sm:$0xf]
        %v604 = vld [vmem:[%s198 + $0x48c] sm:$0xf]
        %v605 = vld [vmem:[%s198 + $0x490] sm:$0xf]
        %v606 = vld [vmem:[%s198 + $0x494] sm:$0xf]
        %v607 = vld [vmem:[%s198 + $0x498] sm:$0xf]
        %v608 = vld [vmem:[%s198 + $0x49c] sm:$0xf]
        %v609 = vld [vmem:[%s198 + $0x4a0] sm:$0xf]
        %v610 = vld [vmem:[%s198 + $0x4a4] sm:$0xf]
        %v611 = vld [vmem:[%s198 + $0x4a8] sm:$0xf]
        %v612 = vld [vmem:[%s198 + $0x4ac] sm:$0xf]
        %v613 = vld [vmem:[%s198 + $0x4b0] sm:$0xf]
        %v614 = vld [vmem:[%s198 + $0x4b4] sm:$0xf]
        %v615 = vld [vmem:[%s198 + $0x4b8] sm:$0xf]
        %v616 = vld [vmem:[%s198 + $0x4bc] sm:$0xf]
        %v617 = vld [vmem:[%s198 + $0x4c0] sm:$0xf]
        %v618 = vld [vmem:[%s198 + $0x4c4] sm:$0xf]
        %v619 = vld [vmem:[%s198 + $0x4c8] sm:$0xf]
        %v620 = vld [vmem:[%s198 + $0x4cc] sm:$0xf]
        %v621 = vld [vmem:[%s198 + $0x4d0] sm:$0xf]
        %v622 = vld [vmem:[%s198 + $0x4d4] sm:$0xf]
        %v623 = vld [vmem:[%s198 + $0x4d8] sm:$0xf]
        %v624 = vld [vmem:[%s198 + $0x4dc] sm:$0xf]
        %v625 = vld [vmem:[%s198 + $0x4e0] sm:$0xf]
        %v626 = vld [vmem:[%s198 + $0x4e4] sm:$0xf]
        %v627 = vld [vmem:[%s198 + $0x4e8] sm:$0xf]
        %v628 = vld [vmem:[%s198 + $0x4ec] sm:$0xf]
        %v629 = vld [vmem:[%s198 + $0x4f0] sm:$0xf]
        %v630 = vld [vmem:[%s198 + $0x4f4] sm:$0xf]
        %v631 = vld [vmem:[%s198 + $0x4f8] sm:$0xf]
        %v632 = vld [vmem:[%s198 + $0x4fc] sm:$0xf]
        %v633 = vld [vmem:[%s198 + $0x500] sm:$0xf]
        %v634 = vld [vmem:[%s198 + $0x504] sm:$0xf]
        %v635 = vld [vmem:[%s198 + $0x508] sm:$0xf]
        %v636 = vld [vmem:[%s198 + $0x50c] sm:$0xf]
        %v637 = vld [vmem:[%s198 + $0x510] sm:$0xf]
        %v638 = vld [vmem:[%s198 + $0x514] sm:$0xf]
        %v639 = vld [vmem:[%s198 + $0x518] sm:$0xf]
        %v640 = vld [vmem:[%s198 + $0x51c] sm:$0xf]
        %v641 = vld [vmem:[%s198 + $0x520] sm:$0xf]
        %v642 = vld [vmem:[%s198 + $0x524] sm:$0xf]
        %v643 = vld [vmem:[%s198 + $0x528] sm:$0xf]
        %v644 = vld [vmem:[%s198 + $0x52c] sm:$0xf]
        %v645 = vld [vmem:[%s198 + $0x530] sm:$0xf]
        %v646 = vld [vmem:[%s198 + $0x534] sm:$0xf]
        %v647 = vld [vmem:[%s198 + $0x538] sm:$0xf]
        %v648 = vld [vmem:[%s198 + $0x53c] sm:$0xf]
        %v649 = vld [vmem:[%s198 + $0x540] sm:$0xf]
        %v650 = vld [vmem:[%s198 + $0x544] sm:$0xf]
        %v651 = vld [vmem:[%s198 + $0x548] sm:$0xf]
        %v652 = vld [vmem:[%s198 + $0x54c] sm:$0xf]
        %v653 = vld [vmem:[%s198 + $0x550] sm:$0xf]
        %v654 = vld [vmem:[%s198 + $0x554] sm:$0xf]
        %v655 = vld [vmem:[%s198 + $0x558] sm:$0xf]
        %v656 = vld [vmem:[%s198 + $0x55c] sm:$0xf]
        %v657 = vld [vmem:[%s198 + $0x560] sm:$0xf]
        %v658 = vld [vmem:[%s198 + $0x564] sm:$0xf]
        %v659 = vld [vmem:[%s198 + $0x568] sm:$0xf]
        %v660 = vld [vmem:[%s198 + $0x56c] sm:$0xf]
        %v661 = vld [vmem:[%s198 + $0x570] sm:$0xf]
        %v662 = vld [vmem:[%s198 + $0x574] sm:$0xf]
        %v663 = vld [vmem:[%s198 + $0x578] sm:$0xf]
        %v664 = vld [vmem:[%s198 + $0x57c] sm:$0xf]
        %v665 = vld [vmem:[%s198 + $0x580] sm:$0xf]
        %v666 = vld [vmem:[%s198 + $0x584] sm:$0xf]
        %v667 = vld [vmem:[%s198 + $0x588] sm:$0xf]
        %v668 = vld [vmem:[%s198 + $0x58c] sm:$0xf]
        %v669 = vld [vmem:[%s198 + $0x590] sm:$0xf]
        %v670 = vld [vmem:[%s198 + $0x594] sm:$0xf]
        %v671 = vld [vmem:[%s198 + $0x598] sm:$0xf]
        %v672 = vld [vmem:[%s198 + $0x59c] sm:$0xf]
        %v673 = vld [vmem:[%s198 + $0x5a0] sm:$0xf]
        %v674 = vld [vmem:[%s198 + $0x5a4] sm:$0xf]
        %v675 = vld [vmem:[%s198 + $0x5a8] sm:$0xf]
        %v676 = vld [vmem:[%s198 + $0x5ac] sm:$0xf]
        %v677 = vld [vmem:[%s198 + $0x5b0] sm:$0xf]
        %v678 = vld [vmem:[%s198 + $0x5b4] sm:$0xf]
        %v679 = vld [vmem:[%s198 + $0x5b8] sm:$0xf]
        %v680 = vld [vmem:[%s198 + $0x5bc] sm:$0xf]
        %v681 = vld [vmem:[%s198 + $0x5c0] sm:$0xf]
        %v682 = vld [vmem:[%s198 + $0x5c4] sm:$0xf]
        %v683 = vld [vmem:[%s198 + $0x5c8] sm:$0xf]
        %v684 = vld [vmem:[%s198 + $0x5cc] sm:$0xf]
        %v685 = vld [vmem:[%s198 + $0x5d0] sm:$0xf]
        %v686 = vld [vmem:[%s198 + $0x5d4] sm:$0xf]
        %v687 = vld [vmem:[%s198 + $0x5d8] sm:$0xf]
        %v688 = vld [vmem:[%s198 + $0x5dc] sm:$0xf]
        %v689 = vld [vmem:[%s198 + $0x5e0] sm:$0xf]
        %v690 = vld [vmem:[%s198 + $0x5e4] sm:$0xf]
        %v691 = vld [vmem:[%s198 + $0x5e8] sm:$0xf]
        %v692 = vld [vmem:[%s198 + $0x5ec] sm:$0xf]
        %v693 = vld [vmem:[%s198 + $0x5f0] sm:$0xf]
        %v694 = vld [vmem:[%s198 + $0x5f4] sm:$0xf]
        %v695 = vld [vmem:[%s198 + $0x5f8] sm:$0xf]
        %v696 = vld [vmem:[%s198 + $0x5fc] sm:$0xf]
        %v697 = vld [vmem:[%s198 + $0x600] sm:$0xf]
        %v698 = vld [vmem:[%s198 + $0x604] sm:$0xf]
        %v699 = vld [vmem:[%s198 + $0x608] sm:$0xf]
        %v700 = vld [vmem:[%s198 + $0x60c] sm:$0xf]
        %v701 = vld [vmem:[%s198 + $0x610] sm:$0xf]
        %v702 = vld [vmem:[%s198 + $0x614] sm:$0xf]
        %v703 = vld [vmem:[%s198 + $0x618] sm:$0xf]
        %v704 = vld [vmem:[%s198 + $0x61c] sm:$0xf]
        %v705 = vld [vmem:[%s198 + $0x620] sm:$0xf]
        %v706 = vld [vmem:[%s198 + $0x624] sm:$0xf]
        %v707 = vld [vmem:[%s198 + $0x628] sm:$0xf]
        %v708 = vld [vmem:[%s198 + $0x62c] sm:$0xf]
        %v709 = vld [vmem:[%s198 + $0x630] sm:$0xf]
        %v710 = vld [vmem:[%s198 + $0x634] sm:$0xf]
        %v711 = vld [vmem:[%s198 + $0x638] sm:$0xf]
        %v712 = vld [vmem:[%s198 + $0x63c] sm:$0xf]
        %v713 = vld [vmem:[%s198 + $0x640] sm:$0xf]
        %v714 = vld [vmem:[%s198 + $0x644] sm:$0xf]
        %v715 = vld [vmem:[%s198 + $0x648] sm:$0xf]
        %v716 = vld [vmem:[%s198 + $0x64c] sm:$0xf]
        %v717 = vld [vmem:[%s198 + $0x650] sm:$0xf]
        %v718 = vld [vmem:[%s198 + $0x654] sm:$0xf]
        %v719 = vld [vmem:[%s198 + $0x658] sm:$0xf]
        %v720 = vld [vmem:[%s198 + $0x65c] sm:$0xf]
        %v721 = vld [vmem:[%s198 + $0x660] sm:$0xf]
        %v722 = vld [vmem:[%s198 + $0x664] sm:$0xf]
        %v723 = vld [vmem:[%s198 + $0x668] sm:$0xf]
        %v724 = vld [vmem:[%s198 + $0x66c] sm:$0xf]
        %v725 = vld [vmem:[%s198 + $0x670] sm:$0xf]
        %v726 = vld [vmem:[%s198 + $0x674] sm:$0xf]
        %v727 = vld [vmem:[%s198 + $0x678] sm:$0xf]
        %v728 = vld [vmem:[%s198 + $0x67c] sm:$0xf]
        %v729 = vld [vmem:[%s198 + $0x680] sm:$0xf]
        %v730 = vld [vmem:[%s198 + $0x684] sm:$0xf]
        %v731 = vld [vmem:[%s198 + $0x688] sm:$0xf]
        %v732 = vld [vmem:[%s198 + $0x68c] sm:$0xf]
        %v733 = vld [vmem:[%s198 + $0x690] sm:$0xf]
        %v734 = vld [vmem:[%s198 + $0x694] sm:$0xf]
        %v735 = vld [vmem:[%s198 + $0x698] sm:$0xf]
        %v736 = vld [vmem:[%s198 + $0x69c] sm:$0xf]
        %v737 = vld [vmem:[%s198 + $0x6a0] sm:$0xf]
        %v738 = vld [vmem:[%s198 + $0x6a4] sm:$0xf]
        %v739 = vld [vmem:[%s198 + $0x6a8] sm:$0xf]
        %v740 = vld [vmem:[%s198 + $0x6ac] sm:$0xf]
        %v741 = vld [vmem:[%s198 + $0x6b0] sm:$0xf]
        %v742 = vld [vmem:[%s198 + $0x6b4] sm:$0xf]
        %v743 = vld [vmem:[%s198 + $0x6b8] sm:$0xf]
        %v744 = vld [vmem:[%s198 + $0x6bc] sm:$0xf]
        %v745 = vld [vmem:[%s198 + $0x6c0] sm:$0xf]
        %v746 = vld [vmem:[%s198 + $0x6c4] sm:$0xf]
        %v747 = vld [vmem:[%s198 + $0x6c8] sm:$0xf]
        %v748 = vld [vmem:[%s198 + $0x6cc] sm:$0xf]
        %v749 = vld [vmem:[%s198 + $0x6d0] sm:$0xf]
        %v750 = vld [vmem:[%s198 + $0x6d4] sm:$0xf]
        %v751 = vld [vmem:[%s198 + $0x6d8] sm:$0xf]
        %v752 = vld [vmem:[%s198 + $0x6dc] sm:$0xf]
        %v753 = vld [vmem:[%s198 + $0x6e0] sm:$0xf]
        %v754 = vld [vmem:[%s198 + $0x6e4] sm:$0xf]
        %v755 = vld [vmem:[%s198 + $0x6e8] sm:$0xf]
        %v756 = vld [vmem:[%s198 + $0x6ec] sm:$0xf]
        %v757 = vld [vmem:[%s198 + $0x6f0] sm:$0xf]
        %v758 = vld [vmem:[%s198 + $0x6f4] sm:$0xf]
        %v759 = vld [vmem:[%s198 + $0x6f8] sm:$0xf]
        %v760 = vld [vmem:[%s198 + $0x6fc] sm:$0xf]
        %v761 = vld [vmem:[%s198 + $0x700] sm:$0xf]
        %v762 = vld [vmem:[%s198 + $0x704] sm:$0xf]
        %v763 = vld [vmem:[%s198 + $0x708] sm:$0xf]
        %v764 = vld [vmem:[%s198 + $0x70c] sm:$0xf]
        %v765 = vld [vmem:[%s198 + $0x710] sm:$0xf]
        %v766 = vld [vmem:[%s198 + $0x714] sm:$0xf]
        %v767 = vld [vmem:[%s198 + $0x718] sm:$0xf]
        %v768 = vld [vmem:[%s198 + $0x71c] sm:$0xf]
        %v769 = vld [vmem:[%s198 + $0x720] sm:$0xf]
        %v770 = vld [vmem:[%s198 + $0x724] sm:$0xf]
        %v771 = vld [vmem:[%s198 + $0x728] sm:$0xf]
        %v772 = vld [vmem:[%s198 + $0x72c] sm:$0xf]
        %v773 = vld [vmem:[%s198 + $0x730] sm:$0xf]
        %v774 = vld [vmem:[%s198 + $0x734] sm:$0xf]
        %v775 = vld [vmem:[%s198 + $0x738] sm:$0xf]
        %v776 = vld [vmem:[%s198 + $0x73c] sm:$0xf]
        %v777 = vld [vmem:[%s198 + $0x740] sm:$0xf]
        %v778 = vld [vmem:[%s198 + $0x744] sm:$0xf]
        %v779 = vld [vmem:[%s198 + $0x748] sm:$0xf]
        %v780 = vld [vmem:[%s198 + $0x74c] sm:$0xf]
        %v781 = vld [vmem:[%s198 + $0x750] sm:$0xf]
        %v782 = vld [vmem:[%s198 + $0x754] sm:$0xf]
        %v783 = vld [vmem:[%s198 + $0x758] sm:$0xf]
        %v784 = vld [vmem:[%s198 + $0x75c] sm:$0xf]
        %v785 = vld [vmem:[%s198 + $0x760] sm:$0xf]
        %v786 = vld [vmem:[%s198 + $0x764] sm:$0xf]
        %v787 = vld [vmem:[%s198 + $0x768] sm:$0xf]
        %v788 = vld [vmem:[%s198 + $0x76c] sm:$0xf]
        %v789 = vld [vmem:[%s198 + $0x770] sm:$0xf]
        %v790 = vld [vmem:[%s198 + $0x774] sm:$0xf]
        %v791 = vld [vmem:[%s198 + $0x778] sm:$0xf]
        %v792 = vld [vmem:[%s198 + $0x77c] sm:$0xf]
        %v793 = vld [vmem:[%s198 + $0x780] sm:$0xf]
        %v794 = vld [vmem:[%s198 + $0x784] sm:$0xf]
        %v795 = vld [vmem:[%s198 + $0x788] sm:$0xf]
        %v796 = vld [vmem:[%s198 + $0x78c] sm:$0xf]
        %v797 = vld [vmem:[%s198 + $0x790] sm:$0xf]
        %v798 = vld [vmem:[%s198 + $0x794] sm:$0xf]
        %v799 = vld [vmem:[%s198 + $0x798] sm:$0xf]
        %v800 = vld [vmem:[%s198 + $0x79c] sm:$0xf]
        %v801 = vld [vmem:[%s198 + $0x7a0] sm:$0xf]
        %v802 = vld [vmem:[%s198 + $0x7a4] sm:$0xf]
        %v803 = vld [vmem:[%s198 + $0x7a8] sm:$0xf]
        %v804 = vld [vmem:[%s198 + $0x7ac] sm:$0xf]
        %v805 = vld [vmem:[%s198 + $0x7b0] sm:$0xf]
        %v806 = vld [vmem:[%s198 + $0x7b4] sm:$0xf]
        %v807 = vld [vmem:[%s198 + $0x7b8] sm:$0xf]
        %v808 = vld [vmem:[%s198 + $0x7bc] sm:$0xf]
        %v809 = vld [vmem:[%s198 + $0x7c0] sm:$0xf]
        %v810 = vld [vmem:[%s198 + $0x7c4] sm:$0xf]
        %v811 = vld [vmem:[%s198 + $0x7c8] sm:$0xf]
        %v812 = vld [vmem:[%s198 + $0x7cc] sm:$0xf]
        %v813 = vld [vmem:[%s198 + $0x7d0] sm:$0xf]
        %v814 = vld [vmem:[%s198 + $0x7d4] sm:$0xf]
        %v815 = vld [vmem:[%s198 + $0x7d8] sm:$0xf]
        %v816 = vld [vmem:[%s198 + $0x7dc] sm:$0xf]
        %v817 = vld [vmem:[%s198 + $0x7e0] sm:$0xf]
        %v818 = vld [vmem:[%s198 + $0x7e4] sm:$0xf]
        %v819 = vld [vmem:[%s198 + $0x7e8] sm:$0xf]
        %v820 = vld [vmem:[%s198 + $0x7ec] sm:$0xf]
        %v821 = vld [vmem:[%s198 + $0x7f0] sm:$0xf]
        %v822 = vld [vmem:[%s198 + $0x7f4] sm:$0xf]
        %v823 = vld [vmem:[%s198 + $0x7f8] sm:$0xf]
        %v824 = vld [vmem:[%s198 + $0x7fc] sm:$0xf]
        %v825 = vld [vmem:[%s198 + $0x800] sm:$0xf]
        %v826 = vld [vmem:[%s198 + $0x804] sm:$0xf]
        %v827 = vld [vmem:[%s198 + $0x808] sm:$0xf]
        %v828 = vld [vmem:[%s198 + $0x80c] sm:$0xf]
        %v829 = vld [vmem:[%s198 + $0x810] sm:$0xf]
        %v830 = vld [vmem:[%s198 + $0x814] sm:$0xf]
        %v831 = vld [vmem:[%s198 + $0x818] sm:$0xf]
        %v832 = vld [vmem:[%s198 + $0x81c] sm:$0xf]
        %v833 = vld [vmem:[%s198 + $0x820] sm:$0xf]
        %v834 = vld [vmem:[%s198 + $0x824] sm:$0xf]
        %v835 = vld [vmem:[%s198 + $0x828] sm:$0xf]
        %v836 = vld [vmem:[%s198 + $0x82c] sm:$0xf]
        %v837 = vld [vmem:[%s198 + $0x830] sm:$0xf]
        %v838 = vld [vmem:[%s198 + $0x834] sm:$0xf]
        %v839 = vld [vmem:[%s198 + $0x838] sm:$0xf]
        %v840 = vld [vmem:[%s198 + $0x83c] sm:$0xf]
        %v841 = vld [vmem:[%s198 + $0x840] sm:$0xf]
        %v842 = vld [vmem:[%s198 + $0x844] sm:$0xf]
        %v843 = vld [vmem:[%s198 + $0x848] sm:$0xf]
        %v844 = vld [vmem:[%s198 + $0x84c] sm:$0xf]
        %v845 = vld [vmem:[%s198 + $0x850] sm:$0xf]
        %v846 = vld [vmem:[%s198 + $0x854] sm:$0xf]
        %v847 = vld [vmem:[%s198 + $0x858] sm:$0xf]
        %v848 = vld [vmem:[%s198 + $0x85c] sm:$0xf]
        %v849 = vld [vmem:[%s198 + $0x860] sm:$0xf]
        %v850 = vld [vmem:[%s198 + $0x864] sm:$0xf]
        %v851 = vld [vmem:[%s198 + $0x868] sm:$0xf]
        %v852 = vld [vmem:[%s198 + $0x86c] sm:$0xf]
        %v853 = vld [vmem:[%s198 + $0x870] sm:$0xf]
        %v854 = vld [vmem:[%s198 + $0x874] sm:$0xf]
        %v855 = vld [vmem:[%s198 + $0x878] sm:$0xf]
        %v856 = vld [vmem:[%s198 + $0x87c] sm:$0xf]
        %v857 = vld [vmem:[%s198 + $0x880] sm:$0xf]
        %v858 = vld [vmem:[%s198 + $0x884] sm:$0xf]
        %v859 = vld [vmem:[%s198 + $0x888] sm:$0xf]
        %v860 = vld [vmem:[%s198 + $0x88c] sm:$0xf]
        %v861 = vld [vmem:[%s198 + $0x890] sm:$0xf]
        %v862 = vld [vmem:[%s198 + $0x894] sm:$0xf]
        %v863 = vld [vmem:[%s198 + $0x898] sm:$0xf]
        %v864 = vld [vmem:[%s198 + $0x89c] sm:$0xf]
        %v865 = vld [vmem:[%s198 + $0x8a0] sm:$0xf]
        %v866 = vld [vmem:[%s198 + $0x8a4] sm:$0xf]
        %v867 = vld [vmem:[%s198 + $0x8a8] sm:$0xf]
        %v868 = vld [vmem:[%s198 + $0x8ac] sm:$0xf]
        %v869 = vld [vmem:[%s198 + $0x8b0] sm:$0xf]
        %v870 = vld [vmem:[%s198 + $0x8b4] sm:$0xf]
        %v871 = vld [vmem:[%s198 + $0x8b8] sm:$0xf]
        %v872 = vld [vmem:[%s198 + $0x8bc] sm:$0xf]
        %v873 = vld [vmem:[%s198 + $0x8c0] sm:$0xf]
        %v874 = vld [vmem:[%s198 + $0x8c4] sm:$0xf]
        %v875 = vld [vmem:[%s198 + $0x8c8] sm:$0xf]
        %v876 = vld [vmem:[%s198 + $0x8cc] sm:$0xf]
        %v877 = vld [vmem:[%s198 + $0x8d0] sm:$0xf]
        %v878 = vld [vmem:[%s198 + $0x8d4] sm:$0xf]
        %v879 = vld [vmem:[%s198 + $0x8d8] sm:$0xf]
        %v880 = vld [vmem:[%s198 + $0x8dc] sm:$0xf]
        %v881 = vld [vmem:[%s198 + $0x8e0] sm:$0xf]
        %v882 = vld [vmem:[%s198 + $0x8e4] sm:$0xf]
        %v883 = vld [vmem:[%s198 + $0x8e8] sm:$0xf]
        %v884 = vld [vmem:[%s198 + $0x8ec] sm:$0xf]
        %v885 = vld [vmem:[%s198 + $0x8f0] sm:$0xf]
        %v886 = vld [vmem:[%s198 + $0x8f4] sm:$0xf]
        %v887 = vld [vmem:[%s198 + $0x8f8] sm:$0xf]
        %v888 = vld [vmem:[%s198 + $0x8fc] sm:$0xf]
        %v889 = vld [vmem:[%s198 + $0x900] sm:$0xf]
        %v890 = vld [vmem:[%s198 + $0x904] sm:$0xf]
        %v891 = vld [vmem:[%s198 + $0x908] sm:$0xf]
        %v892 = vld [vmem:[%s198 + $0x90c] sm:$0xf]
        %v893 = vld [vmem:[%s198 + $0x910] sm:$0xf]
        %v894 = vld [vmem:[%s198 + $0x914] sm:$0xf]
        %v895 = vld [vmem:[%s198 + $0x918] sm:$0xf]
        %v896 = vld [vmem:[%s198 + $0x91c] sm:$0xf]
        %v897 = vld [vmem:[%s198 + $0x920] sm:$0xf]
        %v898 = vld [vmem:[%s198 + $0x924] sm:$0xf]
        %v899 = vld [vmem:[%s198 + $0x928] sm:$0xf]
        %v900 = vld [vmem:[%s198 + $0x92c] sm:$0xf]
        %v901 = vld [vmem:[%s198 + $0x930] sm:$0xf]
        %v902 = vld [vmem:[%s198 + $0x934] sm:$0xf]
        %v903 = vld [vmem:[%s198 + $0x938] sm:$0xf]
        %v904 = vld [vmem:[%s198 + $0x93c] sm:$0xf]
        %v905 = vld [vmem:[%s198 + $0x940] sm:$0xf]
        %v906 = vld [vmem:[%s198 + $0x944] sm:$0xf]
        %v907 = vld [vmem:[%s198 + $0x948] sm:$0xf]
        %v908 = vld [vmem:[%s198 + $0x94c] sm:$0xf]
        %v909 = vld [vmem:[%s198 + $0x950] sm:$0xf]
        %v910 = vld [vmem:[%s198 + $0x954] sm:$0xf]
        %v911 = vld [vmem:[%s198 + $0x958] sm:$0xf]
        %v912 = vld [vmem:[%s198 + $0x95c] sm:$0xf]
        %v913 = vld [vmem:[%s198 + $0x960] sm:$0xf]
        %v914 = vld [vmem:[%s198 + $0x964] sm:$0xf]
        %v915 = vld [vmem:[%s198 + $0x968] sm:$0xf]
        %v916 = vld [vmem:[%s198 + $0x96c] sm:$0xf]
        %v917 = vld [vmem:[%s198 + $0x970] sm:$0xf]
        %v918 = vld [vmem:[%s198 + $0x974] sm:$0xf]
        %v919 = vld [vmem:[%s198 + $0x978] sm:$0xf]
        %v920 = vld [vmem:[%s198 + $0x97c] sm:$0xf]
        %v921 = vld [vmem:[%s198 + $0x980] sm:$0xf]
        %v922 = vld [vmem:[%s198 + $0x984] sm:$0xf]
        %v923 = vld [vmem:[%s198 + $0x988] sm:$0xf]
        %v924 = vld [vmem:[%s198 + $0x98c] sm:$0xf]
        %v925 = vld [vmem:[%s198 + $0x990] sm:$0xf]
        %v926 = vld [vmem:[%s198 + $0x994] sm:$0xf]
        %v927 = vld [vmem:[%s198 + $0x998] sm:$0xf]
        %v928 = vld [vmem:[%s198 + $0x99c] sm:$0xf]
        %v929 = vld [vmem:[%s198 + $0x9a0] sm:$0xf]
        %v930 = vld [vmem:[%s198 + $0x9a4] sm:$0xf]
        %v931 = vld [vmem:[%s198 + $0x9a8] sm:$0xf]
        %v932 = vld [vmem:[%s198 + $0x9ac] sm:$0xf]
        %v933 = vld [vmem:[%s198 + $0x9b0] sm:$0xf]
        %v934 = vld [vmem:[%s198 + $0x9b4] sm:$0xf]
        %v935 = vld [vmem:[%s198 + $0x9b8] sm:$0xf]
        %v936 = vld [vmem:[%s198 + $0x9bc] sm:$0xf]
        %v937 = vld [vmem:[%s198 + $0x9c0] sm:$0xf]
        %v938 = vld [vmem:[%s198 + $0x9c4] sm:$0xf]
        %v939 = vld [vmem:[%s198 + $0x9c8] sm:$0xf]
        %v940 = vld [vmem:[%s198 + $0x9cc] sm:$0xf]
        %v941 = vld [vmem:[%s198 + $0x9d0] sm:$0xf]
        %v942 = vld [vmem:[%s198 + $0x9d4] sm:$0xf]
        %v943 = vld [vmem:[%s198 + $0x9d8] sm:$0xf]
        %v944 = vld [vmem:[%s198 + $0x9dc] sm:$0xf]
        %v945 = vld [vmem:[%s198 + $0x9e0] sm:$0xf]
        %v946 = vld [vmem:[%s198 + $0x9e4] sm:$0xf]
        %v947 = vld [vmem:[%s198 + $0x9e8] sm:$0xf]
        %v948 = vld [vmem:[%s198 + $0x9ec] sm:$0xf]
        %v949 = vld [vmem:[%s198 + $0x9f0] sm:$0xf]
        %v950 = vld [vmem:[%s198 + $0x9f4] sm:$0xf]
        %v951 = vld [vmem:[%s198 + $0x9f8] sm:$0xf]
        %v952 = vld [vmem:[%s198 + $0x9fc] sm:$0xf]
        %v953 = vld [vmem:[%s198 + $0xa00] sm:$0xf]
        %v954 = vld [vmem:[%s198 + $0xa04] sm:$0xf]
        %v955 = vld [vmem:[%s198 + $0xa08] sm:$0xf]
        %v956 = vld [vmem:[%s198 + $0xa0c] sm:$0xf]
        %v957 = vld [vmem:[%s198 + $0xa10] sm:$0xf]
        %v958 = vld [vmem:[%s198 + $0xa14] sm:$0xf]
        %v959 = vld [vmem:[%s198 + $0xa18] sm:$0xf]
        %v960 = vld [vmem:[%s198 + $0xa1c] sm:$0xf]
        %v961 = vld [vmem:[%s198 + $0xa20] sm:$0xf]
        %v962 = vld [vmem:[%s198 + $0xa24] sm:$0xf]
        %v963 = vld [vmem:[%s198 + $0xa28] sm:$0xf]
        %v964 = vld [vmem:[%s198 + $0xa2c] sm:$0xf]
        %v965 = vld [vmem:[%s198 + $0xa30] sm:$0xf]
        %v966 = vld [vmem:[%s198 + $0xa34] sm:$0xf]
        %v967 = vld [vmem:[%s198 + $0xa38] sm:$0xf]
        %v968 = vld [vmem:[%s198 + $0xa3c] sm:$0xf]
        %v969 = vld [vmem:[%s198 + $0xa40] sm:$0xf]
        %v970 = vld [vmem:[%s198 + $0xa44] sm:$0xf]
        %v971 = vld [vmem:[%s198 + $0xa48] sm:$0xf]
        %v972 = vld [vmem:[%s198 + $0xa4c] sm:$0xf]
        %v973 = vld [vmem:[%s198 + $0xa50] sm:$0xf]
        %v974 = vld [vmem:[%s198 + $0xa54] sm:$0xf]
        %v975 = vld [vmem:[%s198 + $0xa58] sm:$0xf]
        %v976 = vld [vmem:[%s198 + $0xa5c] sm:$0xf]
        %v977 = vld [vmem:[%s198 + $0xa60] sm:$0xf]
        %v978 = vld [vmem:[%s198 + $0xa64] sm:$0xf]
        %v979 = vld [vmem:[%s198 + $0xa68] sm:$0xf]
        %v980 = vld [vmem:[%s198 + $0xa6c] sm:$0xf]
        %v981 = vld [vmem:[%s198 + $0xa70] sm:$0xf]
        %v982 = vld [vmem:[%s198 + $0xa74] sm:$0xf]
        %v983 = vld [vmem:[%s198 + $0xa78] sm:$0xf]
        %v984 = vld [vmem:[%s198 + $0xa7c] sm:$0xf]
        %v985 = vld [vmem:[%s198 + $0xa80] sm:$0xf]
        %v986 = vld [vmem:[%s198 + $0xa84] sm:$0xf]
        %v987 = vld [vmem:[%s198 + $0xa88] sm:$0xf]
        %v988 = vld [vmem:[%s198 + $0xa8c] sm:$0xf]
        %v989 = vld [vmem:[%s198 + $0xa90] sm:$0xf]
        %v990 = vld [vmem:[%s198 + $0xa94] sm:$0xf]
        %v991 = vld [vmem:[%s198 + $0xa98] sm:$0xf]
        %v992 = vld [vmem:[%s198 + $0xa9c] sm:$0xf]
        %v993 = vld [vmem:[%s198 + $0xaa0] sm:$0xf]
        %v994 = vld [vmem:[%s198 + $0xaa4] sm:$0xf]
        %v995 = vld [vmem:[%s198 + $0xaa8] sm:$0xf]
        %v996 = vld [vmem:[%s198 + $0xaac] sm:$0xf]
        %v997 = vld [vmem:[%s198 + $0xab0] sm:$0xf]
        %v998 = vld [vmem:[%s198 + $0xab4] sm:$0xf]
        %v999 = vld [vmem:[%s198 + $0xab8] sm:$0xf]
        %v1000 = vld [vmem:[%s198 + $0xabc] sm:$0xf]
        %v1001 = vld [vmem:[%s198 + $0xac0] sm:$0xf]
        %v1002 = vld [vmem:[%s198 + $0xac4] sm:$0xf]
        %v1003 = vld [vmem:[%s198 + $0xac8] sm:$0xf]
        %v1004 = vld [vmem:[%s198 + $0xacc] sm:$0xf]
        %v1005 = vld [vmem:[%s198 + $0xad0] sm:$0xf]
        %v1006 = vld [vmem:[%s198 + $0xad4] sm:$0xf]
        %v1007 = vld [vmem:[%s198 + $0xad8] sm:$0xf]
        %v1008 = vld [vmem:[%s198 + $0xadc] sm:$0xf]
        %v1009 = vld [vmem:[%s198 + $0xae0] sm:$0xf]
        %v1010 = vld [vmem:[%s198 + $0xae4] sm:$0xf]
        %v1011 = vld [vmem:[%s198 + $0xae8] sm:$0xf]
        %v1012 = vld [vmem:[%s198 + $0xaec] sm:$0xf]
        %v1013 = vld [vmem:[%s198 + $0xaf0] sm:$0xf]
        %v1014 = vld [vmem:[%s198 + $0xaf4] sm:$0xf]
        %v1015 = vld [vmem:[%s198 + $0xaf8] sm:$0xf]
        %v1016 = vld [vmem:[%s198 + $0xafc] sm:$0xf]
        %v1017 = vld [vmem:[%s198 + $0xb00] sm:$0xf]
        %v1018 = vld [vmem:[%s198 + $0xb04] sm:$0xf]
        %v1019 = vld [vmem:[%s198 + $0xb08] sm:$0xf]
        %v1020 = vld [vmem:[%s198 + $0xb0c] sm:$0xf]
        %v1021 = vld [vmem:[%s198 + $0xb10] sm:$0xf]
        %v1022 = vld [vmem:[%s198 + $0xb14] sm:$0xf]
        %v1023 = vld [vmem:[%s198 + $0xb18] sm:$0xf]
        %v1024 = vld [vmem:[%s198 + $0xb1c] sm:$0xf]
        %v1025 = vld [vmem:[%s198 + $0xb20] sm:$0xf]
        %v1026 = vld [vmem:[%s198 + $0xb24] sm:$0xf]
        %v1027 = vld [vmem:[%s198 + $0xb28] sm:$0xf]
        %v1028 = vld [vmem:[%s198 + $0xb2c] sm:$0xf]
        %v1029 = vld [vmem:[%s198 + $0xb30] sm:$0xf]
        %v1030 = vld [vmem:[%s198 + $0xb34] sm:$0xf]
        %v1031 = vld [vmem:[%s198 + $0xb38] sm:$0xf]
        %v1032 = vld [vmem:[%s198 + $0xb3c] sm:$0xf]
        %v1033 = vld [vmem:[%s198 + $0xb40] sm:$0xf]
        %v1034 = vld [vmem:[%s198 + $0xb44] sm:$0xf]
        %v1035 = vld [vmem:[%s198 + $0xb48] sm:$0xf]
        %v1036 = vld [vmem:[%s198 + $0xb4c] sm:$0xf]
        %v1037 = vld [vmem:[%s198 + $0xb50] sm:$0xf]
        %v1038 = vld [vmem:[%s198 + $0xb54] sm:$0xf]
        %v1039 = vld [vmem:[%s198 + $0xb58] sm:$0xf]
        %v1040 = vld [vmem:[%s198 + $0xb5c] sm:$0xf]
        %v1041 = vld [vmem:[%s198 + $0xb60] sm:$0xf]
        %v1042 = vld [vmem:[%s198 + $0xb64] sm:$0xf]
        %v1043 = vld [vmem:[%s198 + $0xb68] sm:$0xf]
        %v1044 = vld [vmem:[%s198 + $0xb6c] sm:$0xf]
        %v1045 = vld [vmem:[%s198 + $0xb70] sm:$0xf]
        %v1046 = vld [vmem:[%s198 + $0xb74] sm:$0xf]
        %v1047 = vld [vmem:[%s198 + $0xb78] sm:$0xf]
        %v1048 = vld [vmem:[%s198 + $0xb7c] sm:$0xf]
        %v1049 = vld [vmem:[%s198 + $0xb80] sm:$0xf]
        %v1050 = vld [vmem:[%s198 + $0xb84] sm:$0xf]
        %v1051 = vld [vmem:[%s198 + $0xb88] sm:$0xf]
        %v1052 = vld [vmem:[%s198 + $0xb8c] sm:$0xf]
        %v1053 = vld [vmem:[%s198 + $0xb90] sm:$0xf]
        %v1054 = vld [vmem:[%s198 + $0xb94] sm:$0xf]
        %v1055 = vld [vmem:[%s198 + $0xb98] sm:$0xf]
        %v1056 = vld [vmem:[%s198 + $0xb9c] sm:$0xf]
        %v1057 = vld [vmem:[%s198 + $0xba0] sm:$0xf]
        %v1058 = vld [vmem:[%s198 + $0xba4] sm:$0xf]
        %v1059 = vld [vmem:[%s198 + $0xba8] sm:$0xf]
        %v1060 = vld [vmem:[%s198 + $0xbac] sm:$0xf]
        %v1061 = vld [vmem:[%s198 + $0xbb0] sm:$0xf]
        %v1062 = vld [vmem:[%s198 + $0xbb4] sm:$0xf]
        %v1063 = vld [vmem:[%s198 + $0xbb8] sm:$0xf]
        %v1064 = vld [vmem:[%s198 + $0xbbc] sm:$0xf]
        %v1065 = vld [vmem:[%s198 + $0xbc0] sm:$0xf]
        %v1066 = vld [vmem:[%s198 + $0xbc4] sm:$0xf]
        %v1067 = vld [vmem:[%s198 + $0xbc8] sm:$0xf]
        %v1068 = vld [vmem:[%s198 + $0xbcc] sm:$0xf]
        %v1069 = vld [vmem:[%s198 + $0xbd0] sm:$0xf]
        %v1070 = vld [vmem:[%s198 + $0xbd4] sm:$0xf]
        %v1071 = vld [vmem:[%s198 + $0xbd8] sm:$0xf]
        %v1072 = vld [vmem:[%s198 + $0xbdc] sm:$0xf]
        %v1073 = vld [vmem:[%s198 + $0xbe0] sm:$0xf]
        %v1074 = vld [vmem:[%s198 + $0xbe4] sm:$0xf]
        %v1075 = vld [vmem:[%s198 + $0xbe8] sm:$0xf]
        %v1076 = vld [vmem:[%s198 + $0xbec] sm:$0xf]
        %v1077 = vld [vmem:[%s198 + $0xbf0] sm:$0xf]
        %v1078 = vld [vmem:[%s198 + $0xbf4] sm:$0xf]
        %v1079 = vld [vmem:[%s198 + $0xbf8] sm:$0xf]
        %v1080 = vld [vmem:[%s198 + $0xbfc] sm:$0xf]
        %v1081 = vld [vmem:[%s198 + $0xc00] sm:$0xf]
        %v1082 = vld [vmem:[%s198 + $0xc04] sm:$0xf]
        %v1083 = vld [vmem:[%s198 + $0xc08] sm:$0xf]
        %v1084 = vld [vmem:[%s198 + $0xc0c] sm:$0xf]
        %v1085 = vld [vmem:[%s198 + $0xc10] sm:$0xf]
        %v1086 = vld [vmem:[%s198 + $0xc14] sm:$0xf]
        %v1087 = vld [vmem:[%s198 + $0xc18] sm:$0xf]
        %v1088 = vld [vmem:[%s198 + $0xc1c] sm:$0xf]
        %v1089 = vld [vmem:[%s198 + $0xc20] sm:$0xf]
        %v1090 = vld [vmem:[%s198 + $0xc24] sm:$0xf]
        %v1091 = vld [vmem:[%s198 + $0xc28] sm:$0xf]
        %v1092 = vld [vmem:[%s198 + $0xc2c] sm:$0xf]
        %v1093 = vld [vmem:[%s198 + $0xc30] sm:$0xf]
        %v1094 = vld [vmem:[%s198 + $0xc34] sm:$0xf]
        %v1095 = vld [vmem:[%s198 + $0xc38] sm:$0xf]
        %v1096 = vld [vmem:[%s198 + $0xc3c] sm:$0xf]
        %v1097 = vld [vmem:[%s198 + $0xc40] sm:$0xf]
        %v1098 = vld [vmem:[%s198 + $0xc44] sm:$0xf]
        %v1099 = vld [vmem:[%s198 + $0xc48] sm:$0xf]
        %v1100 = vld [vmem:[%s198 + $0xc4c] sm:$0xf]
        %v1101 = vld [vmem:[%s198 + $0xc50] sm:$0xf]
        %v1102 = vld [vmem:[%s198 + $0xc54] sm:$0xf]
        %v1103 = vld [vmem:[%s198 + $0xc58] sm:$0xf]
        %v1104 = vld [vmem:[%s198 + $0xc5c] sm:$0xf]
        %v1105 = vld [vmem:[%s198 + $0xc60] sm:$0xf]
        %v1106 = vld [vmem:[%s198 + $0xc64] sm:$0xf]
        %v1107 = vld [vmem:[%s198 + $0xc68] sm:$0xf]
        %v1108 = vld [vmem:[%s198 + $0xc6c] sm:$0xf]
        %v1109 = vld [vmem:[%s198 + $0xc70] sm:$0xf]
        %v1110 = vld [vmem:[%s198 + $0xc74] sm:$0xf]
        %v1111 = vld [vmem:[%s198 + $0xc78] sm:$0xf]
        %v1112 = vld [vmem:[%s198 + $0xc7c] sm:$0xf]
        %v1113 = vld [vmem:[%s198 + $0xc80] sm:$0xf]
        %v1114 = vld [vmem:[%s198 + $0xc84] sm:$0xf]
        %v1115 = vld [vmem:[%s198 + $0xc88] sm:$0xf]
        %v1116 = vld [vmem:[%s198 + $0xc8c] sm:$0xf]
        %v1117 = vld [vmem:[%s198 + $0xc90] sm:$0xf]
        %v1118 = vld [vmem:[%s198 + $0xc94] sm:$0xf]
        %v1119 = vld [vmem:[%s198 + $0xc98] sm:$0xf]
        %v1120 = vld [vmem:[%s198 + $0xc9c] sm:$0xf]
        %v1121 = vld [vmem:[%s198 + $0xca0] sm:$0xf]
        %v1122 = vld [vmem:[%s198 + $0xca4] sm:$0xf]
        %v1123 = vld [vmem:[%s198 + $0xca8] sm:$0xf]
        %v1124 = vld [vmem:[%s198 + $0xcac] sm:$0xf]
        %v1125 = vld [vmem:[%s198 + $0xcb0] sm:$0xf]
        %v1126 = vld [vmem:[%s198 + $0xcb4] sm:$0xf]
        %v1127 = vld [vmem:[%s198 + $0xcb8] sm:$0xf]
        %v1128 = vld [vmem:[%s198 + $0xcbc] sm:$0xf]
        %v1129 = vld [vmem:[%s198 + $0xcc0] sm:$0xf]
        %v1130 = vld [vmem:[%s198 + $0xcc4] sm:$0xf]
        %v1131 = vld [vmem:[%s198 + $0xcc8] sm:$0xf]
        %v1132 = vld [vmem:[%s198 + $0xccc] sm:$0xf]
        %v1133 = vld [vmem:[%s198 + $0xcd0] sm:$0xf]
        %v1134 = vld [vmem:[%s198 + $0xcd4] sm:$0xf]
        %v1135 = vld [vmem:[%s198 + $0xcd8] sm:$0xf]
        %v1136 = vld [vmem:[%s198 + $0xcdc] sm:$0xf]
        %v1137 = vld [vmem:[%s198 + $0xce0] sm:$0xf]
        %v1138 = vld [vmem:[%s198 + $0xce4] sm:$0xf]
        %v1139 = vld [vmem:[%s198 + $0xce8] sm:$0xf]
        %v1140 = vld [vmem:[%s198 + $0xcec] sm:$0xf]
        %v1141 = vld [vmem:[%s198 + $0xcf0] sm:$0xf]
        %v1142 = vld [vmem:[%s198 + $0xcf4] sm:$0xf]
        %v1143 = vld [vmem:[%s198 + $0xcf8] sm:$0xf]
        %v1144 = vld [vmem:[%s198 + $0xcfc] sm:$0xf]
        %v1145 = vld [vmem:[%s198 + $0xd00] sm:$0xf]
        %v1146 = vld [vmem:[%s198 + $0xd04] sm:$0xf]
        %v1147 = vld [vmem:[%s198 + $0xd08] sm:$0xf]
        %v1148 = vld [vmem:[%s198 + $0xd0c] sm:$0xf]
        %v1149 = vld [vmem:[%s198 + $0xd10] sm:$0xf]
        %v1150 = vld [vmem:[%s198 + $0xd14] sm:$0xf]
        %v1151 = vld [vmem:[%s198 + $0xd18] sm:$0xf]
        %v1152 = vld [vmem:[%s198 + $0xd1c] sm:$0xf]
        %v1153 = vld [vmem:[%s198 + $0xd20] sm:$0xf]
        %v1154 = vld [vmem:[%s198 + $0xd24] sm:$0xf]
        %v1155 = vld [vmem:[%s198 + $0xd28] sm:$0xf]
        %v1156 = vld [vmem:[%s198 + $0xd2c] sm:$0xf]
        %v1157 = vld [vmem:[%s198 + $0xd30] sm:$0xf]
        %v1158 = vld [vmem:[%s198 + $0xd34] sm:$0xf]
        %v1159 = vld [vmem:[%s198 + $0xd38] sm:$0xf]
        %v1160 = vld [vmem:[%s198 + $0xd3c] sm:$0xf]
        %v1161 = vld [vmem:[%s198 + $0xd40] sm:$0xf]
        %v1162 = vld [vmem:[%s198 + $0xd44] sm:$0xf]
        %v1163 = vld [vmem:[%s198 + $0xd48] sm:$0xf]
        %v1164 = vld [vmem:[%s198 + $0xd4c] sm:$0xf]
        %v1165 = vld [vmem:[%s198 + $0xd50] sm:$0xf]
        %v1166 = vld [vmem:[%s198 + $0xd54] sm:$0xf]
        %v1167 = vld [vmem:[%s198 + $0xd58] sm:$0xf]
        %v1168 = vld [vmem:[%s198 + $0xd5c] sm:$0xf]
        %v1169 = vld [vmem:[%s198 + $0xd60] sm:$0xf]
        %v1170 = vld [vmem:[%s198 + $0xd64] sm:$0xf]
        %v1171 = vld [vmem:[%s198 + $0xd68] sm:$0xf]
        %v1172 = vld [vmem:[%s198 + $0xd6c] sm:$0xf]
        %v1173 = vld [vmem:[%s198 + $0xd70] sm:$0xf]
        %v1174 = vld [vmem:[%s198 + $0xd74] sm:$0xf]
        %v1175 = vld [vmem:[%s198 + $0xd78] sm:$0xf]
        %v1176 = vld [vmem:[%s198 + $0xd7c] sm:$0xf]
        %v1177 = vld [vmem:[%s198 + $0xd80] sm:$0xf]
        %v1178 = vld [vmem:[%s198 + $0xd84] sm:$0xf]
        %v1179 = vld [vmem:[%s198 + $0xd88] sm:$0xf]
        %v1180 = vld [vmem:[%s198 + $0xd8c] sm:$0xf]
        %v1181 = vld [vmem:[%s198 + $0xd90] sm:$0xf]
        %v1182 = vld [vmem:[%s198 + $0xd94] sm:$0xf]
        %v1183 = vld [vmem:[%s198 + $0xd98] sm:$0xf]
        %v1184 = vld [vmem:[%s198 + $0xd9c] sm:$0xf]
        %v1185 = vld [vmem:[%s198 + $0xda0] sm:$0xf]
        %v1186 = vld [vmem:[%s198 + $0xda4] sm:$0xf]
        %v1187 = vld [vmem:[%s198 + $0xda8] sm:$0xf]
        %v1188 = vld [vmem:[%s198 + $0xdac] sm:$0xf]
        %v1189 = vld [vmem:[%s198 + $0xdb0] sm:$0xf]
        %v1190 = vld [vmem:[%s198 + $0xdb4] sm:$0xf]
        %v1191 = vld [vmem:[%s198 + $0xdb8] sm:$0xf]
        %v1192 = vld [vmem:[%s198 + $0xdbc] sm:$0xf]
        %v1193 = vld [vmem:[%s198 + $0xdc0] sm:$0xf]
        %v1194 = vld [vmem:[%s198 + $0xdc4] sm:$0xf]
        %v1195 = vld [vmem:[%s198 + $0xdc8] sm:$0xf]
        %v1196 = vld [vmem:[%s198 + $0xdcc] sm:$0xf]
        %v1197 = vld [vmem:[%s198 + $0xdd0] sm:$0xf]
        %v1198 = vld [vmem:[%s198 + $0xdd4] sm:$0xf]
        %v1199 = vld [vmem:[%s198 + $0xdd8] sm:$0xf]
        %v1200 = vld [vmem:[%s198 + $0xddc] sm:$0xf]
        %v1201 = vld [vmem:[%s198 + $0xde0] sm:$0xf]
        %v1202 = vld [vmem:[%s198 + $0xde4] sm:$0xf]
        %v1203 = vld [vmem:[%s198 + $0xde8] sm:$0xf]
        %v1204 = vld [vmem:[%s198 + $0xdec] sm:$0xf]
        %v1205 = vld [vmem:[%s198 + $0xdf0] sm:$0xf]
        %v1206 = vld [vmem:[%s198 + $0xdf4] sm:$0xf]
        %v1207 = vld [vmem:[%s198 + $0xdf8] sm:$0xf]
        %v1208 = vld [vmem:[%s198 + $0xdfc] sm:$0xf]
        %v1209 = vld [vmem:[%s198 + $0xe00] sm:$0xf]
        %v1210 = vld [vmem:[%s198 + $0xe04] sm:$0xf]
        %v1211 = vld [vmem:[%s198 + $0xe08] sm:$0xf]
        %v1212 = vld [vmem:[%s198 + $0xe0c] sm:$0xf]
        %v1213 = vld [vmem:[%s198 + $0xe10] sm:$0xf]
        %v1214 = vld [vmem:[%s198 + $0xe14] sm:$0xf]
        %v1215 = vld [vmem:[%s198 + $0xe18] sm:$0xf]
        %v1216 = vld [vmem:[%s198 + $0xe1c] sm:$0xf]
        %v1217 = vld [vmem:[%s198 + $0xe20] sm:$0xf]
        %v1218 = vld [vmem:[%s198 + $0xe24] sm:$0xf]
        %v1219 = vld [vmem:[%s198 + $0xe28] sm:$0xf]
        %v1220 = vld [vmem:[%s198 + $0xe2c] sm:$0xf]
        %v1221 = vld [vmem:[%s198 + $0xe30] sm:$0xf]
        %v1222 = vld [vmem:[%s198 + $0xe34] sm:$0xf]
        %v1223 = vld [vmem:[%s198 + $0xe38] sm:$0xf]
        %v1224 = vld [vmem:[%s198 + $0xe3c] sm:$0xf]
        %v1225 = vld [vmem:[%s198 + $0xe40] sm:$0xf]
        %v1226 = vld [vmem:[%s198 + $0xe44] sm:$0xf]
        %v1227 = vld [vmem:[%s198 + $0xe48] sm:$0xf]
        %v1228 = vld [vmem:[%s198 + $0xe4c] sm:$0xf]
        %v1229 = vld [vmem:[%s198 + $0xe50] sm:$0xf]
        %v1230 = vld [vmem:[%s198 + $0xe54] sm:$0xf]
        %v1231 = vld [vmem:[%s198 + $0xe58] sm:$0xf]
        %v1232 = vld [vmem:[%s198 + $0xe5c] sm:$0xf]
        %v1233 = vld [vmem:[%s198 + $0xe60] sm:$0xf]
        %v1234 = vld [vmem:[%s198 + $0xe64] sm:$0xf]
        %v1235 = vld [vmem:[%s198 + $0xe68] sm:$0xf]
        %v1236 = vld [vmem:[%s198 + $0xe6c] sm:$0xf]
        %v1237 = vld [vmem:[%s198 + $0xe70] sm:$0xf]
        %v1238 = vld [vmem:[%s198 + $0xe74] sm:$0xf]
        %v1239 = vld [vmem:[%s198 + $0xe78] sm:$0xf]
        %v1240 = vld [vmem:[%s198 + $0xe7c] sm:$0xf]
        %v1241 = vld [vmem:[%s198 + $0xe80] sm:$0xf]
        %v1242 = vld [vmem:[%s198 + $0xe84] sm:$0xf]
        %v1243 = vld [vmem:[%s198 + $0xe88] sm:$0xf]
        %v1244 = vld [vmem:[%s198 + $0xe8c] sm:$0xf]
        %v1245 = vld [vmem:[%s198 + $0xe90] sm:$0xf]
        %v1246 = vld [vmem:[%s198 + $0xe94] sm:$0xf]
        %v1247 = vld [vmem:[%s198 + $0xe98] sm:$0xf]
        %v1248 = vld [vmem:[%s198 + $0xe9c] sm:$0xf]
        %v1249 = vld [vmem:[%s198 + $0xea0] sm:$0xf]
        %v1250 = vld [vmem:[%s198 + $0xea4] sm:$0xf]
        %v1251 = vld [vmem:[%s198 + $0xea8] sm:$0xf]
        %v1252 = vld [vmem:[%s198 + $0xeac] sm:$0xf]
        %v1253 = vld [vmem:[%s198 + $0xeb0] sm:$0xf]
        %v1254 = vld [vmem:[%s198 + $0xeb4] sm:$0xf]
        %v1255 = vld [vmem:[%s198 + $0xeb8] sm:$0xf]
        %v1256 = vld [vmem:[%s198 + $0xebc] sm:$0xf]
        %v1257 = vld [vmem:[%s198 + $0xec0] sm:$0xf]
        %v1258 = vld [vmem:[%s198 + $0xec4] sm:$0xf]
        %v1259 = vld [vmem:[%s198 + $0xec8] sm:$0xf]
        %v1260 = vld [vmem:[%s198 + $0xecc] sm:$0xf]
        %v1261 = vld [vmem:[%s198 + $0xed0] sm:$0xf]
        %v1262 = vld [vmem:[%s198 + $0xed4] sm:$0xf]
        %v1263 = vld [vmem:[%s198 + $0xed8] sm:$0xf]
        %v1264 = vld [vmem:[%s198 + $0xedc] sm:$0xf]
        %v1265 = vld [vmem:[%s198 + $0xee0] sm:$0xf]
        %v1266 = vld [vmem:[%s198 + $0xee4] sm:$0xf]
        %v1267 = vld [vmem:[%s198 + $0xee8] sm:$0xf]
        %v1268 = vld [vmem:[%s198 + $0xeec] sm:$0xf]
        %v1269 = vld [vmem:[%s198 + $0xef0] sm:$0xf]
        %v1270 = vld [vmem:[%s198 + $0xef4] sm:$0xf]
        %v1271 = vld [vmem:[%s198 + $0xef8] sm:$0xf]
        %v1272 = vld [vmem:[%s198 + $0xefc] sm:$0xf]
        %v1273 = vld [vmem:[%s198 + $0xf00] sm:$0xf]
        %v1274 = vld [vmem:[%s198 + $0xf04] sm:$0xf]
        %v1275 = vld [vmem:[%s198 + $0xf08] sm:$0xf]
        %v1276 = vld [vmem:[%s198 + $0xf0c] sm:$0xf]
        %v1277 = vld [vmem:[%s198 + $0xf10] sm:$0xf]
        %v1278 = vld [vmem:[%s198 + $0xf14] sm:$0xf]
        %v1279 = vld [vmem:[%s198 + $0xf18] sm:$0xf]
        %v1280 = vld [vmem:[%s198 + $0xf1c] sm:$0xf]
        %v1281 = vld [vmem:[%s198 + $0xf20] sm:$0xf]
        %v1282 = vld [vmem:[%s198 + $0xf24] sm:$0xf]
        %v1283 = vld [vmem:[%s198 + $0xf28] sm:$0xf]
        %v1284 = vld [vmem:[%s198 + $0xf2c] sm:$0xf]
        %v1285 = vld [vmem:[%s198 + $0xf30] sm:$0xf]
        %v1286 = vld [vmem:[%s198 + $0xf34] sm:$0xf]
        %v1287 = vld [vmem:[%s198 + $0xf38] sm:$0xf]
        %v1288 = vld [vmem:[%s198 + $0xf3c] sm:$0xf]
        %v1289 = vld [vmem:[%s198 + $0xf40] sm:$0xf]
        %v1290 = vld [vmem:[%s198 + $0xf44] sm:$0xf]
        %v1291 = vld [vmem:[%s198 + $0xf48] sm:$0xf]
        %v1292 = vld [vmem:[%s198 + $0xf4c] sm:$0xf]
        %v1293 = vld [vmem:[%s198 + $0xf50] sm:$0xf]
        %v1294 = vld [vmem:[%s198 + $0xf54] sm:$0xf]
        %v1295 = vld [vmem:[%s198 + $0xf58] sm:$0xf]
        %v1296 = vld [vmem:[%s198 + $0xf5c] sm:$0xf]
        %v1297 = vld [vmem:[%s198 + $0xf60] sm:$0xf]
        %v1298 = vld [vmem:[%s198 + $0xf64] sm:$0xf]
        %v1299 = vld [vmem:[%s198 + $0xf68] sm:$0xf]
        %v1300 = vld [vmem:[%s198 + $0xf6c] sm:$0xf]
        %v1301 = vld [vmem:[%s198 + $0xf70] sm:$0xf]
        %v1302 = vld [vmem:[%s198 + $0xf74] sm:$0xf]
        %v1303 = vld [vmem:[%s198 + $0xf78] sm:$0xf]
        %v1304 = vld [vmem:[%s198 + $0xf7c] sm:$0xf]
        %v1305 = vld [vmem:[%s198 + $0xf80] sm:$0xf]
        %v1306 = vld [vmem:[%s198 + $0xf84] sm:$0xf]
        %v1307 = vld [vmem:[%s198 + $0xf88] sm:$0xf]
        %v1308 = vld [vmem:[%s198 + $0xf8c] sm:$0xf]
        %v1309 = vld [vmem:[%s198 + $0xf90] sm:$0xf]
        %v1310 = vld [vmem:[%s198 + $0xf94] sm:$0xf]
        %v1311 = vld [vmem:[%s198 + $0xf98] sm:$0xf]
        %v1312 = vld [vmem:[%s198 + $0xf9c] sm:$0xf]
        %v1313 = vld [vmem:[%s198 + $0xfa0] sm:$0xf]
        %v1314 = vld [vmem:[%s198 + $0xfa4] sm:$0xf]
        %v1315 = vld [vmem:[%s198 + $0xfa8] sm:$0xf]
        %v1316 = vld [vmem:[%s198 + $0xfac] sm:$0xf]
        %v1317 = vld [vmem:[%s198 + $0xfb0] sm:$0xf]
        %v1318 = vld [vmem:[%s198 + $0xfb4] sm:$0xf]
        %v1319 = vld [vmem:[%s198 + $0xfb8] sm:$0xf]
        %v1320 = vld [vmem:[%s198 + $0xfbc] sm:$0xf]
        %v1321 = vld [vmem:[%s198 + $0xfc0] sm:$0xf]
        %v1322 = vld [vmem:[%s198 + $0xfc4] sm:$0xf]
        %v1323 = vld [vmem:[%s198 + $0xfc8] sm:$0xf]
        %v1324 = vld [vmem:[%s198 + $0xfcc] sm:$0xf]
        %v1325 = vld [vmem:[%s198 + $0xfd0] sm:$0xf]
        %v1326 = vld [vmem:[%s198 + $0xfd4] sm:$0xf]
        %v1327 = vld [vmem:[%s198 + $0xfd8] sm:$0xf]
        %v1328 = vld [vmem:[%s198 + $0xfdc] sm:$0xf]
        %v1329 = vld [vmem:[%s198 + $0xfe0] sm:$0xf]
        %v1330 = vld [vmem:[%s198 + $0xfe4] sm:$0xf]
        %v1331 = vld [vmem:[%s198 + $0xfe8] sm:$0xf]
        %v1332 = vld [vmem:[%s198 + $0xfec] sm:$0xf]
        %v1333 = vld [vmem:[%s198 + $0xff0] sm:$0xf]
        %v1334 = vld [vmem:[%s198 + $0xff4] sm:$0xf]
        %v1335 = vld [vmem:[%s198 + $0xff8] sm:$0xf]
        %v1336 = vld [vmem:[%s198 + $0xffc] sm:$0xf]
        %v1369 = vunpack.c.l.b16 %v280
        %v1370 = vunpack.c.h.b16 %v280
        %v1371 = vunpack.c.l.b16 %v281
        %v1372 = vunpack.c.h.b16 %v281
        %v1373 = vunpack.c.l.b16 %v282
        %v1374 = vunpack.c.h.b16 %v282
        %v1375 = vunpack.c.l.b16 %v283
        %v1376 = vunpack.c.h.b16 %v283
        %v1377 = vunpack.c.l.b16 %v284
        %v1378 = vunpack.c.h.b16 %v284
        %v1379 = vunpack.c.l.b16 %v285
        %v1380 = vunpack.c.h.b16 %v285
        %v1381 = vunpack.c.l.b16 %v286
        %v1382 = vunpack.c.h.b16 %v286
        %v1383 = vunpack.c.l.b16 %v287
        %v1384 = vunpack.c.h.b16 %v287
        %v1385 = vunpack.c.l.b16 %v288
        %v1386 = vunpack.c.h.b16 %v288
        %v1387 = vunpack.c.l.b16 %v289
        %v1388 = vunpack.c.h.b16 %v289
        %v1389 = vunpack.c.l.b16 %v290
        %v1390 = vunpack.c.h.b16 %v290
        %v1391 = vunpack.c.l.b16 %v291
        %v1392 = vunpack.c.h.b16 %v291
        %v1393 = vunpack.c.l.b16 %v292
        %v1394 = vunpack.c.h.b16 %v292
        %v1395 = vunpack.c.l.b16 %v293
        %v1396 = vunpack.c.h.b16 %v293
        %v1397 = vunpack.c.l.b16 %v294
        %v1398 = vunpack.c.h.b16 %v294
        %v1399 = vunpack.c.l.b16 %v295
        %v1400 = vunpack.c.h.b16 %v295
        %v1401 = vunpack.c.l.b16 %v296
        %v1402 = vunpack.c.h.b16 %v296
        %v1403 = vunpack.c.l.b16 %v297
        %v1404 = vunpack.c.h.b16 %v297
        %v1405 = vunpack.c.l.b16 %v298
        %v1406 = vunpack.c.h.b16 %v298
        %v1407 = vunpack.c.l.b16 %v299
        %v1408 = vunpack.c.h.b16 %v299
        %v1409 = vunpack.c.l.b16 %v300
        %v1410 = vunpack.c.h.b16 %v300
        %v1411 = vunpack.c.l.b16 %v301
        %v1412 = vunpack.c.h.b16 %v301
        %v1413 = vunpack.c.l.b16 %v302
        %v1414 = vunpack.c.h.b16 %v302
        %v1415 = vunpack.c.l.b16 %v303
        %v1416 = vunpack.c.h.b16 %v303
        %v1417 = vunpack.c.l.b16 %v304
        %v1418 = vunpack.c.h.b16 %v304
        %v1419 = vunpack.c.l.b16 %v305
        %v1420 = vunpack.c.h.b16 %v305
        %v1421 = vunpack.c.l.b16 %v306
        %v1422 = vunpack.c.h.b16 %v306
        %v1423 = vunpack.c.l.b16 %v307
        %v1424 = vunpack.c.h.b16 %v307
        %v1425 = vunpack.c.l.b16 %v308
        %v1426 = vunpack.c.h.b16 %v308
        %v1427 = vunpack.c.l.b16 %v309
        %v1428 = vunpack.c.h.b16 %v309
        %v1429 = vunpack.c.l.b16 %v310
        %v1430 = vunpack.c.h.b16 %v310
        %v1431 = vunpack.c.l.b16 %v311
        %v1432 = vunpack.c.h.b16 %v311
        %v1433 = vpack.c.b16 %v1369, %v1369
        %v1434 = vpack.c.b16 %v1370, %v1370
        %v1435 = vpack.c.b16 %v1371, %v1371
        %v1436 = vpack.c.b16 %v1372, %v1372
        %v1437 = vpack.c.b16 %v1373, %v1373
        %v1438 = vpack.c.b16 %v1374, %v1374
        %v1439 = vpack.c.b16 %v1375, %v1375
        %v1440 = vpack.c.b16 %v1376, %v1376
        %v1441 = vpack.c.b16 %v1377, %v1377
        %v1442 = vpack.c.b16 %v1378, %v1378
        %v1443 = vpack.c.b16 %v1379, %v1379
        %v1444 = vpack.c.b16 %v1380, %v1380
        %v1445 = vpack.c.b16 %v1381, %v1381
        %v1446 = vpack.c.b16 %v1382, %v1382
        %v1447 = vpack.c.b16 %v1383, %v1383
        %v1448 = vpack.c.b16 %v1384, %v1384
        %v1449 = vpack.c.b16 %v1385, %v1385
        %v1450 = vpack.c.b16 %v1386, %v1386
        %v1451 = vpack.c.b16 %v1387, %v1387
        %v1452 = vpack.c.b16 %v1388, %v1388
        %v1453 = vpack.c.b16 %v1389, %v1389
        %v1454 = vpack.c.b16 %v1390, %v1390
        %v1455 = vpack.c.b16 %v1391, %v1391
        %v1456 = vpack.c.b16 %v1392, %v1392
        %v1457 = vpack.c.b16 %v1393, %v1393
        %v1458 = vpack.c.b16 %v1394, %v1394
        %v1459 = vpack.c.b16 %v1395, %v1395
        %v1460 = vpack.c.b16 %v1396, %v1396
        %v1461 = vpack.c.b16 %v1397, %v1397
        %v1462 = vpack.c.b16 %v1398, %v1398
        %v1463 = vpack.c.b16 %v1399, %v1399
        %v1464 = vpack.c.b16 %v1400, %v1400
        %v1465 = vpack.c.b16 %v1401, %v1401
        %v1466 = vpack.c.b16 %v1402, %v1402
        %v1467 = vpack.c.b16 %v1403, %v1403
        %v1468 = vpack.c.b16 %v1404, %v1404
        %v1469 = vpack.c.b16 %v1405, %v1405
        %v1470 = vpack.c.b16 %v1406, %v1406
        %v1471 = vpack.c.b16 %v1407, %v1407
        %v1472 = vpack.c.b16 %v1408, %v1408
        %v1473 = vpack.c.b16 %v1409, %v1409
        %v1474 = vpack.c.b16 %v1410, %v1410
        %v1475 = vpack.c.b16 %v1411, %v1411
        %v1476 = vpack.c.b16 %v1412, %v1412
        %v1477 = vpack.c.b16 %v1413, %v1413
        %v1478 = vpack.c.b16 %v1414, %v1414
        %v1479 = vpack.c.b16 %v1415, %v1415
        %v1480 = vpack.c.b16 %v1416, %v1416
        %v1481 = vpack.c.b16 %v1417, %v1417
        %v1482 = vpack.c.b16 %v1418, %v1418
        %v1483 = vpack.c.b16 %v1419, %v1419
        %v1484 = vpack.c.b16 %v1420, %v1420
        %v1485 = vpack.c.b16 %v1421, %v1421
        %v1486 = vpack.c.b16 %v1422, %v1422
        %v1487 = vpack.c.b16 %v1423, %v1423
        %v1488 = vpack.c.b16 %v1424, %v1424
        %v1489 = vpack.c.b16 %v1425, %v1425
        %v1490 = vpack.c.b16 %v1426, %v1426
        %v1491 = vpack.c.b16 %v1427, %v1427
        %v1492 = vpack.c.b16 %v1428, %v1428
        %v1493 = vpack.c.b16 %v1429, %v1429
        %v1494 = vpack.c.b16 %v1430, %v1430
        %v1495 = vpack.c.b16 %v1431, %v1431
        %v1496 = vpack.c.b16 %v1432, %v1432
        %v2585 = vunpack.c.l.b16 %v313
        %v2586 = vunpack.c.l.b16 %v314
        %v2587 = vunpack.c.l.b16 %v315
        %v2588 = vunpack.c.l.b16 %v316
        %v2589 = vunpack.c.l.b16 %v317
        %v2590 = vunpack.c.l.b16 %v318
        %v2591 = vunpack.c.l.b16 %v319
        %v2592 = vunpack.c.l.b16 %v320
        %v2593 = vunpack.c.l.b16 %v321
        %v2594 = vunpack.c.l.b16 %v322
        %v2595 = vunpack.c.l.b16 %v323
        %v2596 = vunpack.c.l.b16 %v324
        %v2597 = vunpack.c.l.b16 %v325
        %v2598 = vunpack.c.l.b16 %v326
        %v2599 = vunpack.c.l.b16 %v327
        %v2600 = vunpack.c.l.b16 %v328
        %v2601 = vunpack.c.l.b16 %v329
        %v2602 = vunpack.c.l.b16 %v330
        %v2603 = vunpack.c.l.b16 %v331
        %v2604 = vunpack.c.l.b16 %v332
        %v2605 = vunpack.c.l.b16 %v333
        %v2606 = vunpack.c.l.b16 %v334
        %v2607 = vunpack.c.l.b16 %v335
        %v2608 = vunpack.c.l.b16 %v336
        %v2609 = vunpack.c.l.b16 %v337
        %v2610 = vunpack.c.l.b16 %v338
        %v2611 = vunpack.c.l.b16 %v339
        %v2612 = vunpack.c.l.b16 %v340
        %v2613 = vunpack.c.l.b16 %v341
        %v2614 = vunpack.c.l.b16 %v342
        %v2615 = vunpack.c.l.b16 %v343
        %v2616 = vunpack.c.l.b16 %v344
        %v2617 = vunpack.c.l.b16 %v345
        %v2618 = vunpack.c.l.b16 %v346
        %v2619 = vunpack.c.l.b16 %v347
        %v2620 = vunpack.c.l.b16 %v348
        %v2621 = vunpack.c.l.b16 %v349
        %v2622 = vunpack.c.l.b16 %v350
        %v2623 = vunpack.c.l.b16 %v351
        %v2624 = vunpack.c.l.b16 %v352
        %v2625 = vunpack.c.l.b16 %v353
        %v2626 = vunpack.c.l.b16 %v354
        %v2627 = vunpack.c.l.b16 %v355
        %v2628 = vunpack.c.l.b16 %v356
        %v2629 = vunpack.c.l.b16 %v357
        %v2630 = vunpack.c.l.b16 %v358
        %v2631 = vunpack.c.l.b16 %v359
        %v2632 = vunpack.c.l.b16 %v360
        %v2633 = vunpack.c.l.b16 %v361
        %v2634 = vunpack.c.l.b16 %v362
        %v2635 = vunpack.c.l.b16 %v363
        %v2636 = vunpack.c.l.b16 %v364
        %v2637 = vunpack.c.l.b16 %v365
        %v2638 = vunpack.c.l.b16 %v366
        %v2639 = vunpack.c.l.b16 %v367
        %v2640 = vunpack.c.l.b16 %v368
        %v2641 = vunpack.c.l.b16 %v369
        %v2642 = vunpack.c.l.b16 %v370
        %v2643 = vunpack.c.l.b16 %v371
        %v2644 = vunpack.c.l.b16 %v372
        %v2645 = vunpack.c.l.b16 %v373
        %v2646 = vunpack.c.l.b16 %v374
        %v2647 = vunpack.c.l.b16 %v375
        %v2648 = vunpack.c.l.b16 %v376
        %v2649 = vunpack.c.l.b16 %v377
        %v2650 = vunpack.c.l.b16 %v378
        %v2651 = vunpack.c.l.b16 %v379
        %v2652 = vunpack.c.l.b16 %v380
        %v2653 = vunpack.c.l.b16 %v381
        %v2654 = vunpack.c.l.b16 %v382
        %v2655 = vunpack.c.l.b16 %v383
        %v2656 = vunpack.c.l.b16 %v384
        %v2657 = vunpack.c.l.b16 %v385
        %v2658 = vunpack.c.l.b16 %v386
        %v2659 = vunpack.c.l.b16 %v387
        %v2660 = vunpack.c.l.b16 %v388
        %v2661 = vunpack.c.l.b16 %v389
        %v2662 = vunpack.c.l.b16 %v390
        %v2663 = vunpack.c.l.b16 %v391
        %v2664 = vunpack.c.l.b16 %v392
        %v2665 = vunpack.c.l.b16 %v393
        %v2666 = vunpack.c.l.b16 %v394
        %v2667 = vunpack.c.l.b16 %v395
        %v2668 = vunpack.c.l.b16 %v396
        %v2669 = vunpack.c.l.b16 %v397
        %v2670 = vunpack.c.l.b16 %v398
        %v2671 = vunpack.c.l.b16 %v399
        %v2672 = vunpack.c.l.b16 %v400
        %v2673 = vunpack.c.l.b16 %v401
        %v2674 = vunpack.c.l.b16 %v402
        %v2675 = vunpack.c.l.b16 %v403
        %v2676 = vunpack.c.l.b16 %v404
        %v2677 = vunpack.c.l.b16 %v405
        %v2678 = vunpack.c.l.b16 %v406
        %v2679 = vunpack.c.l.b16 %v407
        %v2680 = vunpack.c.l.b16 %v408
        %v2681 = vunpack.c.l.b16 %v409
        %v2682 = vunpack.c.l.b16 %v410
        %v2683 = vunpack.c.l.b16 %v411
        %v2684 = vunpack.c.l.b16 %v412
        %v2685 = vunpack.c.l.b16 %v413
        %v2686 = vunpack.c.l.b16 %v414
        %v2687 = vunpack.c.l.b16 %v415
        %v2688 = vunpack.c.l.b16 %v416
        %v2689 = vunpack.c.l.b16 %v417
        %v2690 = vunpack.c.l.b16 %v418
        %v2691 = vunpack.c.l.b16 %v419
        %v2692 = vunpack.c.l.b16 %v420
        %v2693 = vunpack.c.l.b16 %v421
        %v2694 = vunpack.c.l.b16 %v422
        %v2695 = vunpack.c.l.b16 %v423
        %v2696 = vunpack.c.l.b16 %v424
        %v2697 = vunpack.c.l.b16 %v425
        %v2698 = vunpack.c.l.b16 %v426
        %v2699 = vunpack.c.l.b16 %v427
        %v2700 = vunpack.c.l.b16 %v428
        %v2701 = vunpack.c.l.b16 %v429
        %v2702 = vunpack.c.l.b16 %v430
        %v2703 = vunpack.c.l.b16 %v431
        %v2704 = vunpack.c.l.b16 %v432
        %v2705 = vunpack.c.l.b16 %v433
        %v2706 = vunpack.c.l.b16 %v434
        %v2707 = vunpack.c.l.b16 %v435
        %v2708 = vunpack.c.l.b16 %v436
        %v2709 = vunpack.c.l.b16 %v437
        %v2710 = vunpack.c.l.b16 %v438
        %v2711 = vunpack.c.l.b16 %v439
        %v2712 = vunpack.c.l.b16 %v440
        %v2713 = vunpack.c.l.b16 %v441
        %v2714 = vunpack.c.l.b16 %v442
        %v2715 = vunpack.c.l.b16 %v443
        %v2716 = vunpack.c.l.b16 %v444
        %v2717 = vunpack.c.l.b16 %v445
        %v2718 = vunpack.c.l.b16 %v446
        %v2719 = vunpack.c.l.b16 %v447
        %v2720 = vunpack.c.l.b16 %v448
        %v2721 = vunpack.c.l.b16 %v449
        %v2722 = vunpack.c.l.b16 %v450
        %v2723 = vunpack.c.l.b16 %v451
        %v2724 = vunpack.c.l.b16 %v452
        %v2725 = vunpack.c.l.b16 %v453
        %v2726 = vunpack.c.l.b16 %v454
        %v2727 = vunpack.c.l.b16 %v455
        %v2728 = vunpack.c.l.b16 %v456
        %v2729 = vunpack.c.l.b16 %v457
        %v2730 = vunpack.c.l.b16 %v458
        %v2731 = vunpack.c.l.b16 %v459
        %v2732 = vunpack.c.l.b16 %v460
        %v2733 = vunpack.c.l.b16 %v461
        %v2734 = vunpack.c.l.b16 %v462
        %v2735 = vunpack.c.l.b16 %v463
        %v2736 = vunpack.c.l.b16 %v464
        %v2737 = vunpack.c.l.b16 %v465
        %v2738 = vunpack.c.l.b16 %v466
        %v2739 = vunpack.c.l.b16 %v467
        %v2740 = vunpack.c.l.b16 %v468
        %v2741 = vunpack.c.l.b16 %v469
        %v2742 = vunpack.c.l.b16 %v470
        %v2743 = vunpack.c.l.b16 %v471
        %v2744 = vunpack.c.l.b16 %v472
        %v2745 = vunpack.c.l.b16 %v473
        %v2746 = vunpack.c.l.b16 %v474
        %v2747 = vunpack.c.l.b16 %v475
        %v2748 = vunpack.c.l.b16 %v476
        %v2749 = vunpack.c.l.b16 %v477
        %v2750 = vunpack.c.l.b16 %v478
        %v2751 = vunpack.c.l.b16 %v479
        %v2752 = vunpack.c.l.b16 %v480
        %v2753 = vunpack.c.l.b16 %v481
        %v2754 = vunpack.c.l.b16 %v482
        %v2755 = vunpack.c.l.b16 %v483
        %v2756 = vunpack.c.l.b16 %v484
        %v2757 = vunpack.c.l.b16 %v485
        %v2758 = vunpack.c.l.b16 %v486
        %v2759 = vunpack.c.l.b16 %v487
        %v2760 = vunpack.c.l.b16 %v488
        %v2761 = vunpack.c.l.b16 %v489
        %v2762 = vunpack.c.l.b16 %v490
        %v2763 = vunpack.c.l.b16 %v491
        %v2764 = vunpack.c.l.b16 %v492
        %v2765 = vunpack.c.l.b16 %v493
        %v2766 = vunpack.c.l.b16 %v494
        %v2767 = vunpack.c.l.b16 %v495
        %v2768 = vunpack.c.l.b16 %v496
        %v2769 = vunpack.c.l.b16 %v497
        %v2770 = vunpack.c.l.b16 %v498
        %v2771 = vunpack.c.l.b16 %v499
        %v2772 = vunpack.c.l.b16 %v500
        %v2773 = vunpack.c.l.b16 %v501
        %v2774 = vunpack.c.l.b16 %v502
        %v2775 = vunpack.c.l.b16 %v503
        %v2776 = vunpack.c.l.b16 %v504
        %v2777 = vunpack.c.l.b16 %v505
        %v2778 = vunpack.c.l.b16 %v506
        %v2779 = vunpack.c.l.b16 %v507
        %v2780 = vunpack.c.l.b16 %v508
        %v2781 = vunpack.c.l.b16 %v509
        %v2782 = vunpack.c.l.b16 %v510
        %v2783 = vunpack.c.l.b16 %v511
        %v2784 = vunpack.c.l.b16 %v512
        %v2785 = vunpack.c.l.b16 %v513
        %v2786 = vunpack.c.l.b16 %v514
        %v2787 = vunpack.c.l.b16 %v515
        %v2788 = vunpack.c.l.b16 %v516
        %v2789 = vunpack.c.l.b16 %v517
        %v2790 = vunpack.c.l.b16 %v518
        %v2791 = vunpack.c.l.b16 %v519
        %v2792 = vunpack.c.l.b16 %v520
        %v2793 = vunpack.c.l.b16 %v521
        %v2794 = vunpack.c.l.b16 %v522
        %v2795 = vunpack.c.l.b16 %v523
        %v2796 = vunpack.c.l.b16 %v524
        %v2797 = vunpack.c.l.b16 %v525
        %v2798 = vunpack.c.l.b16 %v526
        %v2799 = vunpack.c.l.b16 %v527
        %v2800 = vunpack.c.l.b16 %v528
        %v2801 = vunpack.c.l.b16 %v529
        %v2802 = vunpack.c.l.b16 %v530
        %v2803 = vunpack.c.l.b16 %v531
        %v2804 = vunpack.c.l.b16 %v532
        %v2805 = vunpack.c.l.b16 %v533
        %v2806 = vunpack.c.l.b16 %v534
        %v2807 = vunpack.c.l.b16 %v535
        %v2808 = vunpack.c.l.b16 %v536
        %v2809 = vunpack.c.l.b16 %v537
        %v2810 = vunpack.c.l.b16 %v538
        %v2811 = vunpack.c.l.b16 %v539
        %v2812 = vunpack.c.l.b16 %v540
        %v2813 = vunpack.c.l.b16 %v541
        %v2814 = vunpack.c.l.b16 %v542
        %v2815 = vunpack.c.l.b16 %v543
        %v2816 = vunpack.c.l.b16 %v544
        %v2817 = vunpack.c.l.b16 %v545
        %v2818 = vunpack.c.l.b16 %v546
        %v2819 = vunpack.c.l.b16 %v547
        %v2820 = vunpack.c.l.b16 %v548
        %v2821 = vunpack.c.l.b16 %v549
        %v2822 = vunpack.c.l.b16 %v550
        %v2823 = vunpack.c.l.b16 %v551
        %v2824 = vunpack.c.l.b16 %v552
        %v2825 = vunpack.c.l.b16 %v553
        %v2826 = vunpack.c.l.b16 %v554
        %v2827 = vunpack.c.l.b16 %v555
        %v2828 = vunpack.c.l.b16 %v556
        %v2829 = vunpack.c.l.b16 %v557
        %v2830 = vunpack.c.l.b16 %v558
        %v2831 = vunpack.c.l.b16 %v559
        %v2832 = vunpack.c.l.b16 %v560
        %v2833 = vunpack.c.l.b16 %v561
        %v2834 = vunpack.c.l.b16 %v562
        %v2835 = vunpack.c.l.b16 %v563
        %v2836 = vunpack.c.l.b16 %v564
        %v2837 = vunpack.c.l.b16 %v565
        %v2838 = vunpack.c.l.b16 %v566
        %v2839 = vunpack.c.l.b16 %v567
        %v2840 = vunpack.c.l.b16 %v568
        %v2841 = vunpack.c.l.b16 %v569
        %v2842 = vunpack.c.l.b16 %v570
        %v2843 = vunpack.c.l.b16 %v571
        %v2844 = vunpack.c.l.b16 %v572
        %v2845 = vunpack.c.l.b16 %v573
        %v2846 = vunpack.c.l.b16 %v574
        %v2847 = vunpack.c.l.b16 %v575
        %v2848 = vunpack.c.l.b16 %v576
        %v2849 = vunpack.c.l.b16 %v577
        %v2850 = vunpack.c.l.b16 %v578
        %v2851 = vunpack.c.l.b16 %v579
        %v2852 = vunpack.c.l.b16 %v580
        %v2853 = vunpack.c.l.b16 %v581
        %v2854 = vunpack.c.l.b16 %v582
        %v2855 = vunpack.c.l.b16 %v583
        %v2856 = vunpack.c.l.b16 %v584
        %v2857 = vunpack.c.l.b16 %v585
        %v2858 = vunpack.c.l.b16 %v586
        %v2859 = vunpack.c.l.b16 %v587
        %v2860 = vunpack.c.l.b16 %v588
        %v2861 = vunpack.c.l.b16 %v589
        %v2862 = vunpack.c.l.b16 %v590
        %v2863 = vunpack.c.l.b16 %v591
        %v2864 = vunpack.c.l.b16 %v592
        %v2865 = vunpack.c.l.b16 %v593
        %v2866 = vunpack.c.l.b16 %v594
        %v2867 = vunpack.c.l.b16 %v595
        %v2868 = vunpack.c.l.b16 %v596
        %v2869 = vunpack.c.l.b16 %v597
        %v2870 = vunpack.c.l.b16 %v598
        %v2871 = vunpack.c.l.b16 %v599
        %v2872 = vunpack.c.l.b16 %v600
        %v2873 = vunpack.c.l.b16 %v601
        %v2874 = vunpack.c.l.b16 %v602
        %v2875 = vunpack.c.l.b16 %v603
        %v2876 = vunpack.c.l.b16 %v604
        %v2877 = vunpack.c.l.b16 %v605
        %v2878 = vunpack.c.l.b16 %v606
        %v2879 = vunpack.c.l.b16 %v607
        %v2880 = vunpack.c.l.b16 %v608
        %v2881 = vunpack.c.l.b16 %v609
        %v2882 = vunpack.c.l.b16 %v610
        %v2883 = vunpack.c.l.b16 %v611
        %v2884 = vunpack.c.l.b16 %v612
        %v2885 = vunpack.c.l.b16 %v613
        %v2886 = vunpack.c.l.b16 %v614
        %v2887 = vunpack.c.l.b16 %v615
        %v2888 = vunpack.c.l.b16 %v616
        %v2889 = vunpack.c.l.b16 %v617
        %v2890 = vunpack.c.l.b16 %v618
        %v2891 = vunpack.c.l.b16 %v619
        %v2892 = vunpack.c.l.b16 %v620
        %v2893 = vunpack.c.l.b16 %v621
        %v2894 = vunpack.c.l.b16 %v622
        %v2895 = vunpack.c.l.b16 %v623
        %v2896 = vunpack.c.l.b16 %v624
        %v2897 = vunpack.c.l.b16 %v625
        %v2898 = vunpack.c.l.b16 %v626
        %v2899 = vunpack.c.l.b16 %v627
        %v2900 = vunpack.c.l.b16 %v628
        %v2901 = vunpack.c.l.b16 %v629
        %v2902 = vunpack.c.l.b16 %v630
        %v2903 = vunpack.c.l.b16 %v631
        %v2904 = vunpack.c.l.b16 %v632
        %v2905 = vunpack.c.l.b16 %v633
        %v2906 = vunpack.c.l.b16 %v634
        %v2907 = vunpack.c.l.b16 %v635
        %v2908 = vunpack.c.l.b16 %v636
        %v2909 = vunpack.c.l.b16 %v637
        %v2910 = vunpack.c.l.b16 %v638
        %v2911 = vunpack.c.l.b16 %v639
        %v2912 = vunpack.c.l.b16 %v640
        %v2913 = vunpack.c.l.b16 %v641
        %v2914 = vunpack.c.l.b16 %v642
        %v2915 = vunpack.c.l.b16 %v643
        %v2916 = vunpack.c.l.b16 %v644
        %v2917 = vunpack.c.l.b16 %v645
        %v2918 = vunpack.c.l.b16 %v646
        %v2919 = vunpack.c.l.b16 %v647
        %v2920 = vunpack.c.l.b16 %v648
        %v2921 = vunpack.c.l.b16 %v649
        %v2922 = vunpack.c.l.b16 %v650
        %v2923 = vunpack.c.l.b16 %v651
        %v2924 = vunpack.c.l.b16 %v652
        %v2925 = vunpack.c.l.b16 %v653
        %v2926 = vunpack.c.l.b16 %v654
        %v2927 = vunpack.c.l.b16 %v655
        %v2928 = vunpack.c.l.b16 %v656
        %v2929 = vunpack.c.l.b16 %v657
        %v2930 = vunpack.c.l.b16 %v658
        %v2931 = vunpack.c.l.b16 %v659
        %v2932 = vunpack.c.l.b16 %v660
        %v2933 = vunpack.c.l.b16 %v661
        %v2934 = vunpack.c.l.b16 %v662
        %v2935 = vunpack.c.l.b16 %v663
        %v2936 = vunpack.c.l.b16 %v664
        %v2937 = vunpack.c.l.b16 %v665
        %v2938 = vunpack.c.l.b16 %v666
        %v2939 = vunpack.c.l.b16 %v667
        %v2940 = vunpack.c.l.b16 %v668
        %v2941 = vunpack.c.l.b16 %v669
        %v2942 = vunpack.c.l.b16 %v670
        %v2943 = vunpack.c.l.b16 %v671
        %v2944 = vunpack.c.l.b16 %v672
        %v2945 = vunpack.c.l.b16 %v673
        %v2946 = vunpack.c.l.b16 %v674
        %v2947 = vunpack.c.l.b16 %v675
        %v2948 = vunpack.c.l.b16 %v676
        %v2949 = vunpack.c.l.b16 %v677
        %v2950 = vunpack.c.l.b16 %v678
        %v2951 = vunpack.c.l.b16 %v679
        %v2952 = vunpack.c.l.b16 %v680
        %v2953 = vunpack.c.l.b16 %v681
        %v2954 = vunpack.c.l.b16 %v682
        %v2955 = vunpack.c.l.b16 %v683
        %v2956 = vunpack.c.l.b16 %v684
        %v2957 = vunpack.c.l.b16 %v685
        %v2958 = vunpack.c.l.b16 %v686
        %v2959 = vunpack.c.l.b16 %v687
        %v2960 = vunpack.c.l.b16 %v688
        %v2961 = vunpack.c.l.b16 %v689
        %v2962 = vunpack.c.l.b16 %v690
        %v2963 = vunpack.c.l.b16 %v691
        %v2964 = vunpack.c.l.b16 %v692
        %v2965 = vunpack.c.l.b16 %v693
        %v2966 = vunpack.c.l.b16 %v694
        %v2967 = vunpack.c.l.b16 %v695
        %v2968 = vunpack.c.l.b16 %v696
        %v2969 = vunpack.c.l.b16 %v697
        %v2970 = vunpack.c.l.b16 %v698
        %v2971 = vunpack.c.l.b16 %v699
        %v2972 = vunpack.c.l.b16 %v700
        %v2973 = vunpack.c.l.b16 %v701
        %v2974 = vunpack.c.l.b16 %v702
        %v2975 = vunpack.c.l.b16 %v703
        %v2976 = vunpack.c.l.b16 %v704
        %v2977 = vunpack.c.l.b16 %v705
        %v2978 = vunpack.c.l.b16 %v706
        %v2979 = vunpack.c.l.b16 %v707
        %v2980 = vunpack.c.l.b16 %v708
        %v2981 = vunpack.c.l.b16 %v709
        %v2982 = vunpack.c.l.b16 %v710
        %v2983 = vunpack.c.l.b16 %v711
        %v2984 = vunpack.c.l.b16 %v712
        %v2985 = vunpack.c.l.b16 %v713
        %v2986 = vunpack.c.l.b16 %v714
        %v2987 = vunpack.c.l.b16 %v715
        %v2988 = vunpack.c.l.b16 %v716
        %v2989 = vunpack.c.l.b16 %v717
        %v2990 = vunpack.c.l.b16 %v718
        %v2991 = vunpack.c.l.b16 %v719
        %v2992 = vunpack.c.l.b16 %v720
        %v2993 = vunpack.c.l.b16 %v721
        %v2994 = vunpack.c.l.b16 %v722
        %v2995 = vunpack.c.l.b16 %v723
        %v2996 = vunpack.c.l.b16 %v724
        %v2997 = vunpack.c.l.b16 %v725
        %v2998 = vunpack.c.l.b16 %v726
        %v2999 = vunpack.c.l.b16 %v727
        %v3000 = vunpack.c.l.b16 %v728
        %v3001 = vunpack.c.l.b16 %v729
        %v3002 = vunpack.c.l.b16 %v730
        %v3003 = vunpack.c.l.b16 %v731
        %v3004 = vunpack.c.l.b16 %v732
        %v3005 = vunpack.c.l.b16 %v733
        %v3006 = vunpack.c.l.b16 %v734
        %v3007 = vunpack.c.l.b16 %v735
        %v3008 = vunpack.c.l.b16 %v736
        %v3009 = vunpack.c.l.b16 %v737
        %v3010 = vunpack.c.l.b16 %v738
        %v3011 = vunpack.c.l.b16 %v739
        %v3012 = vunpack.c.l.b16 %v740
        %v3013 = vunpack.c.l.b16 %v741
        %v3014 = vunpack.c.l.b16 %v742
        %v3015 = vunpack.c.l.b16 %v743
        %v3016 = vunpack.c.l.b16 %v744
        %v3017 = vunpack.c.l.b16 %v745
        %v3018 = vunpack.c.l.b16 %v746
        %v3019 = vunpack.c.l.b16 %v747
        %v3020 = vunpack.c.l.b16 %v748
        %v3021 = vunpack.c.l.b16 %v749
        %v3022 = vunpack.c.l.b16 %v750
        %v3023 = vunpack.c.l.b16 %v751
        %v3024 = vunpack.c.l.b16 %v752
        %v3025 = vunpack.c.l.b16 %v753
        %v3026 = vunpack.c.l.b16 %v754
        %v3027 = vunpack.c.l.b16 %v755
        %v3028 = vunpack.c.l.b16 %v756
        %v3029 = vunpack.c.l.b16 %v757
        %v3030 = vunpack.c.l.b16 %v758
        %v3031 = vunpack.c.l.b16 %v759
        %v3032 = vunpack.c.l.b16 %v760
        %v3033 = vunpack.c.l.b16 %v761
        %v3034 = vunpack.c.l.b16 %v762
        %v3035 = vunpack.c.l.b16 %v763
        %v3036 = vunpack.c.l.b16 %v764
        %v3037 = vunpack.c.l.b16 %v765
        %v3038 = vunpack.c.l.b16 %v766
        %v3039 = vunpack.c.l.b16 %v767
        %v3040 = vunpack.c.l.b16 %v768
        %v3041 = vunpack.c.l.b16 %v769
        %v3042 = vunpack.c.l.b16 %v770
        %v3043 = vunpack.c.l.b16 %v771
        %v3044 = vunpack.c.l.b16 %v772
        %v3045 = vunpack.c.l.b16 %v773
        %v3046 = vunpack.c.l.b16 %v774
        %v3047 = vunpack.c.l.b16 %v775
        %v3048 = vunpack.c.l.b16 %v776
        %v3049 = vunpack.c.l.b16 %v777
        %v3050 = vunpack.c.l.b16 %v778
        %v3051 = vunpack.c.l.b16 %v779
        %v3052 = vunpack.c.l.b16 %v780
        %v3053 = vunpack.c.l.b16 %v781
        %v3054 = vunpack.c.l.b16 %v782
        %v3055 = vunpack.c.l.b16 %v783
        %v3056 = vunpack.c.l.b16 %v784
        %v3057 = vunpack.c.l.b16 %v785
        %v3058 = vunpack.c.l.b16 %v786
        %v3059 = vunpack.c.l.b16 %v787
        %v3060 = vunpack.c.l.b16 %v788
        %v3061 = vunpack.c.l.b16 %v789
        %v3062 = vunpack.c.l.b16 %v790
        %v3063 = vunpack.c.l.b16 %v791
        %v3064 = vunpack.c.l.b16 %v792
        %v3065 = vunpack.c.l.b16 %v793
        %v3066 = vunpack.c.l.b16 %v794
        %v3067 = vunpack.c.l.b16 %v795
        %v3068 = vunpack.c.l.b16 %v796
        %v3069 = vunpack.c.l.b16 %v797
        %v3070 = vunpack.c.l.b16 %v798
        %v3071 = vunpack.c.l.b16 %v799
        %v3072 = vunpack.c.l.b16 %v800
        %v3073 = vunpack.c.l.b16 %v801
        %v3074 = vunpack.c.l.b16 %v802
        %v3075 = vunpack.c.l.b16 %v803
        %v3076 = vunpack.c.l.b16 %v804
        %v3077 = vunpack.c.l.b16 %v805
        %v3078 = vunpack.c.l.b16 %v806
        %v3079 = vunpack.c.l.b16 %v807
        %v3080 = vunpack.c.l.b16 %v808
        %v3081 = vunpack.c.l.b16 %v809
        %v3082 = vunpack.c.l.b16 %v810
        %v3083 = vunpack.c.l.b16 %v811
        %v3084 = vunpack.c.l.b16 %v812
        %v3085 = vunpack.c.l.b16 %v813
        %v3086 = vunpack.c.l.b16 %v814
        %v3087 = vunpack.c.l.b16 %v815
        %v3088 = vunpack.c.l.b16 %v816
        %v3089 = vunpack.c.l.b16 %v817
        %v3090 = vunpack.c.l.b16 %v818
        %v3091 = vunpack.c.l.b16 %v819
        %v3092 = vunpack.c.l.b16 %v820
        %v3093 = vunpack.c.l.b16 %v821
        %v3094 = vunpack.c.l.b16 %v822
        %v3095 = vunpack.c.l.b16 %v823
        %v3096 = vunpack.c.l.b16 %v824
        %v3097 = vunpack.c.l.b16 %v825
        %v3098 = vunpack.c.l.b16 %v826
        %v3099 = vunpack.c.l.b16 %v827
        %v3100 = vunpack.c.l.b16 %v828
        %v3101 = vunpack.c.l.b16 %v829
        %v3102 = vunpack.c.l.b16 %v830
        %v3103 = vunpack.c.l.b16 %v831
        %v3104 = vunpack.c.l.b16 %v832
        %v3105 = vunpack.c.l.b16 %v833
        %v3106 = vunpack.c.l.b16 %v834
        %v3107 = vunpack.c.l.b16 %v835
        %v3108 = vunpack.c.l.b16 %v836
        %v3109 = vunpack.c.l.b16 %v837
        %v3110 = vunpack.c.l.b16 %v838
        %v3111 = vunpack.c.l.b16 %v839
        %v3112 = vunpack.c.l.b16 %v840
        %v3113 = vunpack.c.l.b16 %v841
        %v3114 = vunpack.c.l.b16 %v842
        %v3115 = vunpack.c.l.b16 %v843
        %v3116 = vunpack.c.l.b16 %v844
        %v3117 = vunpack.c.l.b16 %v845
        %v3118 = vunpack.c.l.b16 %v846
        %v3119 = vunpack.c.l.b16 %v847
        %v3120 = vunpack.c.l.b16 %v848
        %v3121 = vunpack.c.l.b16 %v849
        %v3122 = vunpack.c.l.b16 %v850
        %v3123 = vunpack.c.l.b16 %v851
        %v3124 = vunpack.c.l.b16 %v852
        %v3125 = vunpack.c.l.b16 %v853
        %v3126 = vunpack.c.l.b16 %v854
        %v3127 = vunpack.c.l.b16 %v855
        %v3128 = vunpack.c.l.b16 %v856
        %v3129 = vunpack.c.l.b16 %v857
        %v3130 = vunpack.c.l.b16 %v858
        %v3131 = vunpack.c.l.b16 %v859
        %v3132 = vunpack.c.l.b16 %v860
        %v3133 = vunpack.c.l.b16 %v861
        %v3134 = vunpack.c.l.b16 %v862
        %v3135 = vunpack.c.l.b16 %v863
        %v3136 = vunpack.c.l.b16 %v864
        %v3137 = vunpack.c.l.b16 %v865
        %v3138 = vunpack.c.l.b16 %v866
        %v3139 = vunpack.c.l.b16 %v867
        %v3140 = vunpack.c.l.b16 %v868
        %v3141 = vunpack.c.l.b16 %v869
        %v3142 = vunpack.c.l.b16 %v870
        %v3143 = vunpack.c.l.b16 %v871
        %v3144 = vunpack.c.l.b16 %v872
        %v3145 = vunpack.c.l.b16 %v873
        %v3146 = vunpack.c.l.b16 %v874
        %v3147 = vunpack.c.l.b16 %v875
        %v3148 = vunpack.c.l.b16 %v876
        %v3149 = vunpack.c.l.b16 %v877
        %v3150 = vunpack.c.l.b16 %v878
        %v3151 = vunpack.c.l.b16 %v879
        %v3152 = vunpack.c.l.b16 %v880
        %v3153 = vunpack.c.l.b16 %v881
        %v3154 = vunpack.c.l.b16 %v882
        %v3155 = vunpack.c.l.b16 %v883
        %v3156 = vunpack.c.l.b16 %v884
        %v3157 = vunpack.c.l.b16 %v885
        %v3158 = vunpack.c.l.b16 %v886
        %v3159 = vunpack.c.l.b16 %v887
        %v3160 = vunpack.c.l.b16 %v888
        %v3161 = vunpack.c.l.b16 %v889
        %v3162 = vunpack.c.l.b16 %v890
        %v3163 = vunpack.c.l.b16 %v891
        %v3164 = vunpack.c.l.b16 %v892
        %v3165 = vunpack.c.l.b16 %v893
        %v3166 = vunpack.c.l.b16 %v894
        %v3167 = vunpack.c.l.b16 %v895
        %v3168 = vunpack.c.l.b16 %v896
        %v3169 = vunpack.c.l.b16 %v897
        %v3170 = vunpack.c.l.b16 %v898
        %v3171 = vunpack.c.l.b16 %v899
        %v3172 = vunpack.c.l.b16 %v900
        %v3173 = vunpack.c.l.b16 %v901
        %v3174 = vunpack.c.l.b16 %v902
        %v3175 = vunpack.c.l.b16 %v903
        %v3176 = vunpack.c.l.b16 %v904
        %v3177 = vunpack.c.l.b16 %v905
        %v3178 = vunpack.c.l.b16 %v906
        %v3179 = vunpack.c.l.b16 %v907
        %v3180 = vunpack.c.l.b16 %v908
        %v3181 = vunpack.c.l.b16 %v909
        %v3182 = vunpack.c.l.b16 %v910
        %v3183 = vunpack.c.l.b16 %v911
        %v3184 = vunpack.c.l.b16 %v912
        %v3185 = vunpack.c.l.b16 %v913
        %v3186 = vunpack.c.l.b16 %v914
        %v3187 = vunpack.c.l.b16 %v915
        %v3188 = vunpack.c.l.b16 %v916
        %v3189 = vunpack.c.l.b16 %v917
        %v3190 = vunpack.c.l.b16 %v918
        %v3191 = vunpack.c.l.b16 %v919
        %v3192 = vunpack.c.l.b16 %v920
        %v3193 = vunpack.c.l.b16 %v921
        %v3194 = vunpack.c.l.b16 %v922
        %v3195 = vunpack.c.l.b16 %v923
        %v3196 = vunpack.c.l.b16 %v924
        %v3197 = vunpack.c.l.b16 %v925
        %v3198 = vunpack.c.l.b16 %v926
        %v3199 = vunpack.c.l.b16 %v927
        %v3200 = vunpack.c.l.b16 %v928
        %v3201 = vunpack.c.l.b16 %v929
        %v3202 = vunpack.c.l.b16 %v930
        %v3203 = vunpack.c.l.b16 %v931
        %v3204 = vunpack.c.l.b16 %v932
        %v3205 = vunpack.c.l.b16 %v933
        %v3206 = vunpack.c.l.b16 %v934
        %v3207 = vunpack.c.l.b16 %v935
        %v3208 = vunpack.c.l.b16 %v936
        %v3209 = vunpack.c.l.b16 %v937
        %v3210 = vunpack.c.l.b16 %v938
        %v3211 = vunpack.c.l.b16 %v939
        %v3212 = vunpack.c.l.b16 %v940
        %v3213 = vunpack.c.l.b16 %v941
        %v3214 = vunpack.c.l.b16 %v942
        %v3215 = vunpack.c.l.b16 %v943
        %v3216 = vunpack.c.l.b16 %v944
        %v3217 = vunpack.c.l.b16 %v945
        %v3218 = vunpack.c.l.b16 %v946
        %v3219 = vunpack.c.l.b16 %v947
        %v3220 = vunpack.c.l.b16 %v948
        %v3221 = vunpack.c.l.b16 %v949
        %v3222 = vunpack.c.l.b16 %v950
        %v3223 = vunpack.c.l.b16 %v951
        %v3224 = vunpack.c.l.b16 %v952
        %v3225 = vunpack.c.l.b16 %v953
        %v3226 = vunpack.c.l.b16 %v954
        %v3227 = vunpack.c.l.b16 %v955
        %v3228 = vunpack.c.l.b16 %v956
        %v3229 = vunpack.c.l.b16 %v957
        %v3230 = vunpack.c.l.b16 %v958
        %v3231 = vunpack.c.l.b16 %v959
        %v3232 = vunpack.c.l.b16 %v960
        %v3233 = vunpack.c.l.b16 %v961
        %v3234 = vunpack.c.l.b16 %v962
        %v3235 = vunpack.c.l.b16 %v963
        %v3236 = vunpack.c.l.b16 %v964
        %v3237 = vunpack.c.l.b16 %v965
        %v3238 = vunpack.c.l.b16 %v966
        %v3239 = vunpack.c.l.b16 %v967
        %v3240 = vunpack.c.l.b16 %v968
        %v3241 = vunpack.c.l.b16 %v969
        %v3242 = vunpack.c.l.b16 %v970
        %v3243 = vunpack.c.l.b16 %v971
        %v3244 = vunpack.c.l.b16 %v972
        %v3245 = vunpack.c.l.b16 %v973
        %v3246 = vunpack.c.l.b16 %v974
        %v3247 = vunpack.c.l.b16 %v975
        %v3248 = vunpack.c.l.b16 %v976
        %v3249 = vunpack.c.l.b16 %v977
        %v3250 = vunpack.c.l.b16 %v978
        %v3251 = vunpack.c.l.b16 %v979
        %v3252 = vunpack.c.l.b16 %v980
        %v3253 = vunpack.c.l.b16 %v981
        %v3254 = vunpack.c.l.b16 %v982
        %v3255 = vunpack.c.l.b16 %v983
        %v3256 = vunpack.c.l.b16 %v984
        %v3257 = vunpack.c.l.b16 %v985
        %v3258 = vunpack.c.l.b16 %v986
        %v3259 = vunpack.c.l.b16 %v987
        %v3260 = vunpack.c.l.b16 %v988
        %v3261 = vunpack.c.l.b16 %v989
        %v3262 = vunpack.c.l.b16 %v990
        %v3263 = vunpack.c.l.b16 %v991
        %v3264 = vunpack.c.l.b16 %v992
        %v3265 = vunpack.c.l.b16 %v993
        %v3266 = vunpack.c.l.b16 %v994
        %v3267 = vunpack.c.l.b16 %v995
        %v3268 = vunpack.c.l.b16 %v996
        %v3269 = vunpack.c.l.b16 %v997
        %v3270 = vunpack.c.l.b16 %v998
        %v3271 = vunpack.c.l.b16 %v999
        %v3272 = vunpack.c.l.b16 %v1000
        %v3273 = vunpack.c.l.b16 %v1001
        %v3274 = vunpack.c.l.b16 %v1002
        %v3275 = vunpack.c.l.b16 %v1003
        %v3276 = vunpack.c.l.b16 %v1004
        %v3277 = vunpack.c.l.b16 %v1005
        %v3278 = vunpack.c.l.b16 %v1006
        %v3279 = vunpack.c.l.b16 %v1007
        %v3280 = vunpack.c.l.b16 %v1008
        %v3281 = vunpack.c.l.b16 %v1009
        %v3282 = vunpack.c.l.b16 %v1010
        %v3283 = vunpack.c.l.b16 %v1011
        %v3284 = vunpack.c.l.b16 %v1012
        %v3285 = vunpack.c.l.b16 %v1013
        %v3286 = vunpack.c.l.b16 %v1014
        %v3287 = vunpack.c.l.b16 %v1015
        %v3288 = vunpack.c.l.b16 %v1016
        %v3289 = vunpack.c.l.b16 %v1017
        %v3290 = vunpack.c.l.b16 %v1018
        %v3291 = vunpack.c.l.b16 %v1019
        %v3292 = vunpack.c.l.b16 %v1020
        %v3293 = vunpack.c.l.b16 %v1021
        %v3294 = vunpack.c.l.b16 %v1022
        %v3295 = vunpack.c.l.b16 %v1023
        %v3296 = vunpack.c.l.b16 %v1024
        %v3297 = vunpack.c.l.b16 %v1025
        %v3298 = vunpack.c.l.b16 %v1026
        %v3299 = vunpack.c.l.b16 %v1027
        %v3300 = vunpack.c.l.b16 %v1028
        %v3301 = vunpack.c.l.b16 %v1029
        %v3302 = vunpack.c.l.b16 %v1030
        %v3303 = vunpack.c.l.b16 %v1031
        %v3304 = vunpack.c.l.b16 %v1032
        %v3305 = vunpack.c.l.b16 %v1033
        %v3306 = vunpack.c.l.b16 %v1034
        %v3307 = vunpack.c.l.b16 %v1035
        %v3308 = vunpack.c.l.b16 %v1036
        %v3309 = vunpack.c.l.b16 %v1037
        %v3310 = vunpack.c.l.b16 %v1038
        %v3311 = vunpack.c.l.b16 %v1039
        %v3312 = vunpack.c.l.b16 %v1040
        %v3313 = vunpack.c.l.b16 %v1041
        %v3314 = vunpack.c.l.b16 %v1042
        %v3315 = vunpack.c.l.b16 %v1043
        %v3316 = vunpack.c.l.b16 %v1044
        %v3317 = vunpack.c.l.b16 %v1045
        %v3318 = vunpack.c.l.b16 %v1046
        %v3319 = vunpack.c.l.b16 %v1047
        %v3320 = vunpack.c.l.b16 %v1048
        %v3321 = vunpack.c.l.b16 %v1049
        %v3322 = vunpack.c.l.b16 %v1050
        %v3323 = vunpack.c.l.b16 %v1051
        %v3324 = vunpack.c.l.b16 %v1052
        %v3325 = vunpack.c.l.b16 %v1053
        %v3326 = vunpack.c.l.b16 %v1054
        %v3327 = vunpack.c.l.b16 %v1055
        %v3328 = vunpack.c.l.b16 %v1056
        %v3329 = vunpack.c.l.b16 %v1057
        %v3330 = vunpack.c.l.b16 %v1058
        %v3331 = vunpack.c.l.b16 %v1059
        %v3332 = vunpack.c.l.b16 %v1060
        %v3333 = vunpack.c.l.b16 %v1061
        %v3334 = vunpack.c.l.b16 %v1062
        %v3335 = vunpack.c.l.b16 %v1063
        %v3336 = vunpack.c.l.b16 %v1064
        %v3337 = vunpack.c.l.b16 %v1065
        %v3338 = vunpack.c.l.b16 %v1066
        %v3339 = vunpack.c.l.b16 %v1067
        %v3340 = vunpack.c.l.b16 %v1068
        %v3341 = vunpack.c.l.b16 %v1069
        %v3342 = vunpack.c.l.b16 %v1070
        %v3343 = vunpack.c.l.b16 %v1071
        %v3344 = vunpack.c.l.b16 %v1072
        %v3345 = vunpack.c.l.b16 %v1073
        %v3346 = vunpack.c.l.b16 %v1074
        %v3347 = vunpack.c.l.b16 %v1075
        %v3348 = vunpack.c.l.b16 %v1076
        %v3349 = vunpack.c.l.b16 %v1077
        %v3350 = vunpack.c.l.b16 %v1078
        %v3351 = vunpack.c.l.b16 %v1079
        %v3352 = vunpack.c.l.b16 %v1080
        %v3353 = vunpack.c.l.b16 %v1081
        %v3354 = vunpack.c.l.b16 %v1082
        %v3355 = vunpack.c.l.b16 %v1083
        %v3356 = vunpack.c.l.b16 %v1084
        %v3357 = vunpack.c.l.b16 %v1085
        %v3358 = vunpack.c.l.b16 %v1086
        %v3359 = vunpack.c.l.b16 %v1087
        %v3360 = vunpack.c.l.b16 %v1088
        %v3361 = vunpack.c.l.b16 %v1089
        %v3362 = vunpack.c.l.b16 %v1090
        %v3363 = vunpack.c.l.b16 %v1091
        %v3364 = vunpack.c.l.b16 %v1092
        %v3365 = vunpack.c.l.b16 %v1093
        %v3366 = vunpack.c.l.b16 %v1094
        %v3367 = vunpack.c.l.b16 %v1095
        %v3368 = vunpack.c.l.b16 %v1096
        %v3369 = vunpack.c.l.b16 %v1097
        %v3370 = vunpack.c.l.b16 %v1098
        %v3371 = vunpack.c.l.b16 %v1099
        %v3372 = vunpack.c.l.b16 %v1100
        %v3373 = vunpack.c.l.b16 %v1101
        %v3374 = vunpack.c.l.b16 %v1102
        %v3375 = vunpack.c.l.b16 %v1103
        %v3376 = vunpack.c.l.b16 %v1104
        %v3377 = vunpack.c.l.b16 %v1105
        %v3378 = vunpack.c.l.b16 %v1106
        %v3379 = vunpack.c.l.b16 %v1107
        %v3380 = vunpack.c.l.b16 %v1108
        %v3381 = vunpack.c.l.b16 %v1109
        %v3382 = vunpack.c.l.b16 %v1110
        %v3383 = vunpack.c.l.b16 %v1111
        %v3384 = vunpack.c.l.b16 %v1112
        %v3385 = vunpack.c.l.b16 %v1113
        %v3386 = vunpack.c.l.b16 %v1114
        %v3387 = vunpack.c.l.b16 %v1115
        %v3388 = vunpack.c.l.b16 %v1116
        %v3389 = vunpack.c.l.b16 %v1117
        %v3390 = vunpack.c.l.b16 %v1118
        %v3391 = vunpack.c.l.b16 %v1119
        %v3392 = vunpack.c.l.b16 %v1120
        %v3393 = vunpack.c.l.b16 %v1121
        %v3394 = vunpack.c.l.b16 %v1122
        %v3395 = vunpack.c.l.b16 %v1123
        %v3396 = vunpack.c.l.b16 %v1124
        %v3397 = vunpack.c.l.b16 %v1125
        %v3398 = vunpack.c.l.b16 %v1126
        %v3399 = vunpack.c.l.b16 %v1127
        %v3400 = vunpack.c.l.b16 %v1128
        %v3401 = vunpack.c.l.b16 %v1129
        %v3402 = vunpack.c.l.b16 %v1130
        %v3403 = vunpack.c.l.b16 %v1131
        %v3404 = vunpack.c.l.b16 %v1132
        %v3405 = vunpack.c.l.b16 %v1133
        %v3406 = vunpack.c.l.b16 %v1134
        %v3407 = vunpack.c.l.b16 %v1135
        %v3408 = vunpack.c.l.b16 %v1136
        %v3409 = vunpack.c.l.b16 %v1137
        %v3410 = vunpack.c.l.b16 %v1138
        %v3411 = vunpack.c.l.b16 %v1139
        %v3412 = vunpack.c.l.b16 %v1140
        %v3413 = vunpack.c.l.b16 %v1141
        %v3414 = vunpack.c.l.b16 %v1142
        %v3415 = vunpack.c.l.b16 %v1143
        %v3416 = vunpack.c.l.b16 %v1144
        %v3417 = vunpack.c.l.b16 %v1145
        %v3418 = vunpack.c.l.b16 %v1146
        %v3419 = vunpack.c.l.b16 %v1147
        %v3420 = vunpack.c.l.b16 %v1148
        %v3421 = vunpack.c.l.b16 %v1149
        %v3422 = vunpack.c.l.b16 %v1150
        %v3423 = vunpack.c.l.b16 %v1151
        %v3424 = vunpack.c.l.b16 %v1152
        %v3425 = vunpack.c.l.b16 %v1153
        %v3426 = vunpack.c.l.b16 %v1154
        %v3427 = vunpack.c.l.b16 %v1155
        %v3428 = vunpack.c.l.b16 %v1156
        %v3429 = vunpack.c.l.b16 %v1157
        %v3430 = vunpack.c.l.b16 %v1158
        %v3431 = vunpack.c.l.b16 %v1159
        %v3432 = vunpack.c.l.b16 %v1160
        %v3433 = vunpack.c.l.b16 %v1161
        %v3434 = vunpack.c.l.b16 %v1162
        %v3435 = vunpack.c.l.b16 %v1163
        %v3436 = vunpack.c.l.b16 %v1164
        %v3437 = vunpack.c.l.b16 %v1165
        %v3438 = vunpack.c.l.b16 %v1166
        %v3439 = vunpack.c.l.b16 %v1167
        %v3440 = vunpack.c.l.b16 %v1168
        %v3441 = vunpack.c.l.b16 %v1169
        %v3442 = vunpack.c.l.b16 %v1170
        %v3443 = vunpack.c.l.b16 %v1171
        %v3444 = vunpack.c.l.b16 %v1172
        %v3445 = vunpack.c.l.b16 %v1173
        %v3446 = vunpack.c.l.b16 %v1174
        %v3447 = vunpack.c.l.b16 %v1175
        %v3448 = vunpack.c.l.b16 %v1176
        %v3449 = vunpack.c.l.b16 %v1177
        %v3450 = vunpack.c.l.b16 %v1178
        %v3451 = vunpack.c.l.b16 %v1179
        %v3452 = vunpack.c.l.b16 %v1180
        %v3453 = vunpack.c.l.b16 %v1181
        %v3454 = vunpack.c.l.b16 %v1182
        %v3455 = vunpack.c.l.b16 %v1183
        %v3456 = vunpack.c.l.b16 %v1184
        %v3457 = vunpack.c.l.b16 %v1185
        %v3458 = vunpack.c.l.b16 %v1186
        %v3459 = vunpack.c.l.b16 %v1187
        %v3460 = vunpack.c.l.b16 %v1188
        %v3461 = vunpack.c.l.b16 %v1189
        %v3462 = vunpack.c.l.b16 %v1190
        %v3463 = vunpack.c.l.b16 %v1191
        %v3464 = vunpack.c.l.b16 %v1192
        %v3465 = vunpack.c.l.b16 %v1193
        %v3466 = vunpack.c.l.b16 %v1194
        %v3467 = vunpack.c.l.b16 %v1195
        %v3468 = vunpack.c.l.b16 %v1196
        %v3469 = vunpack.c.l.b16 %v1197
        %v3470 = vunpack.c.l.b16 %v1198
        %v3471 = vunpack.c.l.b16 %v1199
        %v3472 = vunpack.c.l.b16 %v1200
        %v3473 = vunpack.c.l.b16 %v1201
        %v3474 = vunpack.c.l.b16 %v1202
        %v3475 = vunpack.c.l.b16 %v1203
        %v3476 = vunpack.c.l.b16 %v1204
        %v3477 = vunpack.c.l.b16 %v1205
        %v3478 = vunpack.c.l.b16 %v1206
        %v3479 = vunpack.c.l.b16 %v1207
        %v3480 = vunpack.c.l.b16 %v1208
        %v3481 = vunpack.c.l.b16 %v1209
        %v3482 = vunpack.c.l.b16 %v1210
        %v3483 = vunpack.c.l.b16 %v1211
        %v3484 = vunpack.c.l.b16 %v1212
        %v3485 = vunpack.c.l.b16 %v1213
        %v3486 = vunpack.c.l.b16 %v1214
        %v3487 = vunpack.c.l.b16 %v1215
        %v3488 = vunpack.c.l.b16 %v1216
        %v3489 = vunpack.c.l.b16 %v1217
        %v3490 = vunpack.c.l.b16 %v1218
        %v3491 = vunpack.c.l.b16 %v1219
        %v3492 = vunpack.c.l.b16 %v1220
        %v3493 = vunpack.c.l.b16 %v1221
        %v3494 = vunpack.c.l.b16 %v1222
        %v3495 = vunpack.c.l.b16 %v1223
        %v3496 = vunpack.c.l.b16 %v1224
        %v3497 = vunpack.c.l.b16 %v1225
        %v3498 = vunpack.c.l.b16 %v1226
        %v3499 = vunpack.c.l.b16 %v1227
        %v3500 = vunpack.c.l.b16 %v1228
        %v3501 = vunpack.c.l.b16 %v1229
        %v3502 = vunpack.c.l.b16 %v1230
        %v3503 = vunpack.c.l.b16 %v1231
        %v3504 = vunpack.c.l.b16 %v1232
        %v3505 = vunpack.c.l.b16 %v1233
        %v3506 = vunpack.c.l.b16 %v1234
        %v3507 = vunpack.c.l.b16 %v1235
        %v3508 = vunpack.c.l.b16 %v1236
        %v3509 = vunpack.c.l.b16 %v1237
        %v3510 = vunpack.c.l.b16 %v1238
        %v3511 = vunpack.c.l.b16 %v1239
        %v3512 = vunpack.c.l.b16 %v1240
        %v3513 = vunpack.c.l.b16 %v1241
        %v3514 = vunpack.c.l.b16 %v1242
        %v3515 = vunpack.c.l.b16 %v1243
        %v3516 = vunpack.c.l.b16 %v1244
        %v3517 = vunpack.c.l.b16 %v1245
        %v3518 = vunpack.c.l.b16 %v1246
        %v3519 = vunpack.c.l.b16 %v1247
        %v3520 = vunpack.c.l.b16 %v1248
        %v3521 = vunpack.c.l.b16 %v1249
        %v3522 = vunpack.c.l.b16 %v1250
        %v3523 = vunpack.c.l.b16 %v1251
        %v3524 = vunpack.c.l.b16 %v1252
        %v3525 = vunpack.c.l.b16 %v1253
        %v3526 = vunpack.c.l.b16 %v1254
        %v3527 = vunpack.c.l.b16 %v1255
        %v3528 = vunpack.c.l.b16 %v1256
        %v3529 = vunpack.c.l.b16 %v1257
        %v3530 = vunpack.c.l.b16 %v1258
        %v3531 = vunpack.c.l.b16 %v1259
        %v3532 = vunpack.c.l.b16 %v1260
        %v3533 = vunpack.c.l.b16 %v1261
        %v3534 = vunpack.c.l.b16 %v1262
        %v3535 = vunpack.c.l.b16 %v1263
        %v3536 = vunpack.c.l.b16 %v1264
        %v3537 = vunpack.c.l.b16 %v1265
        %v3538 = vunpack.c.l.b16 %v1266
        %v3539 = vunpack.c.l.b16 %v1267
        %v3540 = vunpack.c.l.b16 %v1268
        %v3541 = vunpack.c.l.b16 %v1269
        %v3542 = vunpack.c.l.b16 %v1270
        %v3543 = vunpack.c.l.b16 %v1271
        %v3544 = vunpack.c.l.b16 %v1272
        %v3545 = vunpack.c.l.b16 %v1273
        %v3546 = vunpack.c.l.b16 %v1274
        %v3547 = vunpack.c.l.b16 %v1275
        %v3548 = vunpack.c.l.b16 %v1276
        %v3549 = vunpack.c.l.b16 %v1277
        %v3550 = vunpack.c.l.b16 %v1278
        %v3551 = vunpack.c.l.b16 %v1279
        %v3552 = vunpack.c.l.b16 %v1280
        %v3553 = vunpack.c.l.b16 %v1281
        %v3554 = vunpack.c.l.b16 %v1282
        %v3555 = vunpack.c.l.b16 %v1283
        %v3556 = vunpack.c.l.b16 %v1284
        %v3557 = vunpack.c.l.b16 %v1285
        %v3558 = vunpack.c.l.b16 %v1286
        %v3559 = vunpack.c.l.b16 %v1287
        %v3560 = vunpack.c.l.b16 %v1288
        %v3561 = vunpack.c.l.b16 %v1289
        %v3562 = vunpack.c.l.b16 %v1290
        %v3563 = vunpack.c.l.b16 %v1291
        %v3564 = vunpack.c.l.b16 %v1292
        %v3565 = vunpack.c.l.b16 %v1293
        %v3566 = vunpack.c.l.b16 %v1294
        %v3567 = vunpack.c.l.b16 %v1295
        %v3568 = vunpack.c.l.b16 %v1296
        %v3569 = vunpack.c.l.b16 %v1297
        %v3570 = vunpack.c.l.b16 %v1298
        %v3571 = vunpack.c.l.b16 %v1299
        %v3572 = vunpack.c.l.b16 %v1300
        %v3573 = vunpack.c.l.b16 %v1301
        %v3574 = vunpack.c.l.b16 %v1302
        %v3575 = vunpack.c.l.b16 %v1303
        %v3576 = vunpack.c.l.b16 %v1304
        %v3577 = vunpack.c.l.b16 %v1305
        %v3578 = vunpack.c.l.b16 %v1306
        %v3579 = vunpack.c.l.b16 %v1307
        %v3580 = vunpack.c.l.b16 %v1308
        %v3581 = vunpack.c.l.b16 %v1309
        %v3582 = vunpack.c.l.b16 %v1310
        %v3583 = vunpack.c.l.b16 %v1311
        %v3584 = vunpack.c.l.b16 %v1312
        %v3585 = vunpack.c.l.b16 %v1313
        %v3586 = vunpack.c.l.b16 %v1314
        %v3587 = vunpack.c.l.b16 %v1315
        %v3588 = vunpack.c.l.b16 %v1316
        %v3589 = vunpack.c.l.b16 %v1317
        %v3590 = vunpack.c.l.b16 %v1318
        %v3591 = vunpack.c.l.b16 %v1319
        %v3592 = vunpack.c.l.b16 %v1320
        %v3593 = vunpack.c.l.b16 %v1321
        %v3594 = vunpack.c.l.b16 %v1322
        %v3595 = vunpack.c.l.b16 %v1323
        %v3596 = vunpack.c.l.b16 %v1324
        %v3597 = vunpack.c.l.b16 %v1325
        %v3598 = vunpack.c.l.b16 %v1326
        %v3599 = vunpack.c.l.b16 %v1327
        %v3600 = vunpack.c.l.b16 %v1328
        %v3601 = vunpack.c.l.b16 %v1329
        %v3602 = vunpack.c.l.b16 %v1330
        %v3603 = vunpack.c.l.b16 %v1331
        %v3604 = vunpack.c.l.b16 %v1332
        %v3605 = vunpack.c.l.b16 %v1333
        %v3606 = vunpack.c.l.b16 %v1334
        %v3607 = vunpack.c.l.b16 %v1335
        %v3608 = vunpack.c.l.b16 %v1336
        %v3609 = vpack.c.b16 %v2586, %v2585
        %v3610 = vpack.c.b16 %v2588, %v2587
        %v3611 = vpack.c.b16 %v2590, %v2589
        %v3612 = vpack.c.b16 %v2592, %v2591
        %v3613 = vpack.c.b16 %v2594, %v2593
        %v3614 = vpack.c.b16 %v2596, %v2595
        %v3615 = vpack.c.b16 %v2598, %v2597
        %v3616 = vpack.c.b16 %v2600, %v2599
        %v3617 = vpack.c.b16 %v2602, %v2601
        %v3618 = vpack.c.b16 %v2604, %v2603
        %v3619 = vpack.c.b16 %v2606, %v2605
        %v3620 = vpack.c.b16 %v2608, %v2607
        %v3621 = vpack.c.b16 %v2610, %v2609
        %v3622 = vpack.c.b16 %v2612, %v2611
        %v3623 = vpack.c.b16 %v2614, %v2613
        %v3624 = vpack.c.b16 %v2616, %v2615
        %v3625 = vpack.c.b16 %v2618, %v2617
        %v3626 = vpack.c.b16 %v2620, %v2619
        %v3627 = vpack.c.b16 %v2622, %v2621
        %v3628 = vpack.c.b16 %v2624, %v2623
        %v3629 = vpack.c.b16 %v2626, %v2625
        %v3630 = vpack.c.b16 %v2628, %v2627
        %v3631 = vpack.c.b16 %v2630, %v2629
        %v3632 = vpack.c.b16 %v2632, %v2631
        %v3633 = vpack.c.b16 %v2634, %v2633
        %v3634 = vpack.c.b16 %v2636, %v2635
        %v3635 = vpack.c.b16 %v2638, %v2637
        %v3636 = vpack.c.b16 %v2640, %v2639
        %v3637 = vpack.c.b16 %v2642, %v2641
        %v3638 = vpack.c.b16 %v2644, %v2643
        %v3639 = vpack.c.b16 %v2646, %v2645
        %v3640 = vpack.c.b16 %v2648, %v2647
        %v3641 = vpack.c.b16 %v2650, %v2649
        %v3642 = vpack.c.b16 %v2652, %v2651
        %v3643 = vpack.c.b16 %v2654, %v2653
        %v3644 = vpack.c.b16 %v2656, %v2655
        %v3645 = vpack.c.b16 %v2658, %v2657
        %v3646 = vpack.c.b16 %v2660, %v2659
        %v3647 = vpack.c.b16 %v2662, %v2661
        %v3648 = vpack.c.b16 %v2664, %v2663
        %v3649 = vpack.c.b16 %v2666, %v2665
        %v3650 = vpack.c.b16 %v2668, %v2667
        %v3651 = vpack.c.b16 %v2670, %v2669
        %v3652 = vpack.c.b16 %v2672, %v2671
        %v3653 = vpack.c.b16 %v2674, %v2673
        %v3654 = vpack.c.b16 %v2676, %v2675
        %v3655 = vpack.c.b16 %v2678, %v2677
        %v3656 = vpack.c.b16 %v2680, %v2679
        %v3657 = vpack.c.b16 %v2682, %v2681
        %v3658 = vpack.c.b16 %v2684, %v2683
        %v3659 = vpack.c.b16 %v2686, %v2685
        %v3660 = vpack.c.b16 %v2688, %v2687
        %v3661 = vpack.c.b16 %v2690, %v2689
        %v3662 = vpack.c.b16 %v2692, %v2691
        %v3663 = vpack.c.b16 %v2694, %v2693
        %v3664 = vpack.c.b16 %v2696, %v2695
        %v3665 = vpack.c.b16 %v2698, %v2697
        %v3666 = vpack.c.b16 %v2700, %v2699
        %v3667 = vpack.c.b16 %v2702, %v2701
        %v3668 = vpack.c.b16 %v2704, %v2703
        %v3669 = vpack.c.b16 %v2706, %v2705
        %v3670 = vpack.c.b16 %v2708, %v2707
        %v3671 = vpack.c.b16 %v2710, %v2709
        %v3672 = vpack.c.b16 %v2712, %v2711
        %v3673 = vpack.c.b16 %v2714, %v2713
        %v3674 = vpack.c.b16 %v2716, %v2715
        %v3675 = vpack.c.b16 %v2718, %v2717
        %v3676 = vpack.c.b16 %v2720, %v2719
        %v3677 = vpack.c.b16 %v2722, %v2721
        %v3678 = vpack.c.b16 %v2724, %v2723
        %v3679 = vpack.c.b16 %v2726, %v2725
        %v3680 = vpack.c.b16 %v2728, %v2727
        %v3681 = vpack.c.b16 %v2730, %v2729
        %v3682 = vpack.c.b16 %v2732, %v2731
        %v3683 = vpack.c.b16 %v2734, %v2733
        %v3684 = vpack.c.b16 %v2736, %v2735
        %v3685 = vpack.c.b16 %v2738, %v2737
        %v3686 = vpack.c.b16 %v2740, %v2739
        %v3687 = vpack.c.b16 %v2742, %v2741
        %v3688 = vpack.c.b16 %v2744, %v2743
        %v3689 = vpack.c.b16 %v2746, %v2745
        %v3690 = vpack.c.b16 %v2748, %v2747
        %v3691 = vpack.c.b16 %v2750, %v2749
        %v3692 = vpack.c.b16 %v2752, %v2751
        %v3693 = vpack.c.b16 %v2754, %v2753
        %v3694 = vpack.c.b16 %v2756, %v2755
        %v3695 = vpack.c.b16 %v2758, %v2757
        %v3696 = vpack.c.b16 %v2760, %v2759
        %v3697 = vpack.c.b16 %v2762, %v2761
        %v3698 = vpack.c.b16 %v2764, %v2763
        %v3699 = vpack.c.b16 %v2766, %v2765
        %v3700 = vpack.c.b16 %v2768, %v2767
        %v3701 = vpack.c.b16 %v2770, %v2769
        %v3702 = vpack.c.b16 %v2772, %v2771
        %v3703 = vpack.c.b16 %v2774, %v2773
        %v3704 = vpack.c.b16 %v2776, %v2775
        %v3705 = vpack.c.b16 %v2778, %v2777
        %v3706 = vpack.c.b16 %v2780, %v2779
        %v3707 = vpack.c.b16 %v2782, %v2781
        %v3708 = vpack.c.b16 %v2784, %v2783
        %v3709 = vpack.c.b16 %v2786, %v2785
        %v3710 = vpack.c.b16 %v2788, %v2787
        %v3711 = vpack.c.b16 %v2790, %v2789
        %v3712 = vpack.c.b16 %v2792, %v2791
        %v3713 = vpack.c.b16 %v2794, %v2793
        %v3714 = vpack.c.b16 %v2796, %v2795
        %v3715 = vpack.c.b16 %v2798, %v2797
        %v3716 = vpack.c.b16 %v2800, %v2799
        %v3717 = vpack.c.b16 %v2802, %v2801
        %v3718 = vpack.c.b16 %v2804, %v2803
        %v3719 = vpack.c.b16 %v2806, %v2805
        %v3720 = vpack.c.b16 %v2808, %v2807
        %v3721 = vpack.c.b16 %v2810, %v2809
        %v3722 = vpack.c.b16 %v2812, %v2811
        %v3723 = vpack.c.b16 %v2814, %v2813
        %v3724 = vpack.c.b16 %v2816, %v2815
        %v3725 = vpack.c.b16 %v2818, %v2817
        %v3726 = vpack.c.b16 %v2820, %v2819
        %v3727 = vpack.c.b16 %v2822, %v2821
        %v3728 = vpack.c.b16 %v2824, %v2823
        %v3729 = vpack.c.b16 %v2826, %v2825
        %v3730 = vpack.c.b16 %v2828, %v2827
        %v3731 = vpack.c.b16 %v2830, %v2829
        %v3732 = vpack.c.b16 %v2832, %v2831
        %v3733 = vpack.c.b16 %v2834, %v2833
        %v3734 = vpack.c.b16 %v2836, %v2835
        %v3735 = vpack.c.b16 %v2838, %v2837
        %v3736 = vpack.c.b16 %v2840, %v2839
        %v3737 = vpack.c.b16 %v2842, %v2841
        %v3738 = vpack.c.b16 %v2844, %v2843
        %v3739 = vpack.c.b16 %v2846, %v2845
        %v3740 = vpack.c.b16 %v2848, %v2847
        %v3741 = vpack.c.b16 %v2850, %v2849
        %v3742 = vpack.c.b16 %v2852, %v2851
        %v3743 = vpack.c.b16 %v2854, %v2853
        %v3744 = vpack.c.b16 %v2856, %v2855
        %v3745 = vpack.c.b16 %v2858, %v2857
        %v3746 = vpack.c.b16 %v2860, %v2859
        %v3747 = vpack.c.b16 %v2862, %v2861
        %v3748 = vpack.c.b16 %v2864, %v2863
        %v3749 = vpack.c.b16 %v2866, %v2865
        %v3750 = vpack.c.b16 %v2868, %v2867
        %v3751 = vpack.c.b16 %v2870, %v2869
        %v3752 = vpack.c.b16 %v2872, %v2871
        %v3753 = vpack.c.b16 %v2874, %v2873
        %v3754 = vpack.c.b16 %v2876, %v2875
        %v3755 = vpack.c.b16 %v2878, %v2877
        %v3756 = vpack.c.b16 %v2880, %v2879
        %v3757 = vpack.c.b16 %v2882, %v2881
        %v3758 = vpack.c.b16 %v2884, %v2883
        %v3759 = vpack.c.b16 %v2886, %v2885
        %v3760 = vpack.c.b16 %v2888, %v2887
        %v3761 = vpack.c.b16 %v2890, %v2889
        %v3762 = vpack.c.b16 %v2892, %v2891
        %v3763 = vpack.c.b16 %v2894, %v2893
        %v3764 = vpack.c.b16 %v2896, %v2895
        %v3765 = vpack.c.b16 %v2898, %v2897
        %v3766 = vpack.c.b16 %v2900, %v2899
        %v3767 = vpack.c.b16 %v2902, %v2901
        %v3768 = vpack.c.b16 %v2904, %v2903
        %v3769 = vpack.c.b16 %v2906, %v2905
        %v3770 = vpack.c.b16 %v2908, %v2907
        %v3771 = vpack.c.b16 %v2910, %v2909
        %v3772 = vpack.c.b16 %v2912, %v2911
        %v3773 = vpack.c.b16 %v2914, %v2913
        %v3774 = vpack.c.b16 %v2916, %v2915
        %v3775 = vpack.c.b16 %v2918, %v2917
        %v3776 = vpack.c.b16 %v2920, %v2919
        %v3777 = vpack.c.b16 %v2922, %v2921
        %v3778 = vpack.c.b16 %v2924, %v2923
        %v3779 = vpack.c.b16 %v2926, %v2925
        %v3780 = vpack.c.b16 %v2928, %v2927
        %v3781 = vpack.c.b16 %v2930, %v2929
        %v3782 = vpack.c.b16 %v2932, %v2931
        %v3783 = vpack.c.b16 %v2934, %v2933
        %v3784 = vpack.c.b16 %v2936, %v2935
        %v3785 = vpack.c.b16 %v2938, %v2937
        %v3786 = vpack.c.b16 %v2940, %v2939
        %v3787 = vpack.c.b16 %v2942, %v2941
        %v3788 = vpack.c.b16 %v2944, %v2943
        %v3789 = vpack.c.b16 %v2946, %v2945
        %v3790 = vpack.c.b16 %v2948, %v2947
        %v3791 = vpack.c.b16 %v2950, %v2949
        %v3792 = vpack.c.b16 %v2952, %v2951
        %v3793 = vpack.c.b16 %v2954, %v2953
        %v3794 = vpack.c.b16 %v2956, %v2955
        %v3795 = vpack.c.b16 %v2958, %v2957
        %v3796 = vpack.c.b16 %v2960, %v2959
        %v3797 = vpack.c.b16 %v2962, %v2961
        %v3798 = vpack.c.b16 %v2964, %v2963
        %v3799 = vpack.c.b16 %v2966, %v2965
        %v3800 = vpack.c.b16 %v2968, %v2967
        %v3801 = vpack.c.b16 %v2970, %v2969
        %v3802 = vpack.c.b16 %v2972, %v2971
        %v3803 = vpack.c.b16 %v2974, %v2973
        %v3804 = vpack.c.b16 %v2976, %v2975
        %v3805 = vpack.c.b16 %v2978, %v2977
        %v3806 = vpack.c.b16 %v2980, %v2979
        %v3807 = vpack.c.b16 %v2982, %v2981
        %v3808 = vpack.c.b16 %v2984, %v2983
        %v3809 = vpack.c.b16 %v2986, %v2985
        %v3810 = vpack.c.b16 %v2988, %v2987
        %v3811 = vpack.c.b16 %v2990, %v2989
        %v3812 = vpack.c.b16 %v2992, %v2991
        %v3813 = vpack.c.b16 %v2994, %v2993
        %v3814 = vpack.c.b16 %v2996, %v2995
        %v3815 = vpack.c.b16 %v2998, %v2997
        %v3816 = vpack.c.b16 %v3000, %v2999
        %v3817 = vpack.c.b16 %v3002, %v3001
        %v3818 = vpack.c.b16 %v3004, %v3003
        %v3819 = vpack.c.b16 %v3006, %v3005
        %v3820 = vpack.c.b16 %v3008, %v3007
        %v3821 = vpack.c.b16 %v3010, %v3009
        %v3822 = vpack.c.b16 %v3012, %v3011
        %v3823 = vpack.c.b16 %v3014, %v3013
        %v3824 = vpack.c.b16 %v3016, %v3015
        %v3825 = vpack.c.b16 %v3018, %v3017
        %v3826 = vpack.c.b16 %v3020, %v3019
        %v3827 = vpack.c.b16 %v3022, %v3021
        %v3828 = vpack.c.b16 %v3024, %v3023
        %v3829 = vpack.c.b16 %v3026, %v3025
        %v3830 = vpack.c.b16 %v3028, %v3027
        %v3831 = vpack.c.b16 %v3030, %v3029
        %v3832 = vpack.c.b16 %v3032, %v3031
        %v3833 = vpack.c.b16 %v3034, %v3033
        %v3834 = vpack.c.b16 %v3036, %v3035
        %v3835 = vpack.c.b16 %v3038, %v3037
        %v3836 = vpack.c.b16 %v3040, %v3039
        %v3837 = vpack.c.b16 %v3042, %v3041
        %v3838 = vpack.c.b16 %v3044, %v3043
        %v3839 = vpack.c.b16 %v3046, %v3045
        %v3840 = vpack.c.b16 %v3048, %v3047
        %v3841 = vpack.c.b16 %v3050, %v3049
        %v3842 = vpack.c.b16 %v3052, %v3051
        %v3843 = vpack.c.b16 %v3054, %v3053
        %v3844 = vpack.c.b16 %v3056, %v3055
        %v3845 = vpack.c.b16 %v3058, %v3057
        %v3846 = vpack.c.b16 %v3060, %v3059
        %v3847 = vpack.c.b16 %v3062, %v3061
        %v3848 = vpack.c.b16 %v3064, %v3063
        %v3849 = vpack.c.b16 %v3066, %v3065
        %v3850 = vpack.c.b16 %v3068, %v3067
        %v3851 = vpack.c.b16 %v3070, %v3069
        %v3852 = vpack.c.b16 %v3072, %v3071
        %v3853 = vpack.c.b16 %v3074, %v3073
        %v3854 = vpack.c.b16 %v3076, %v3075
        %v3855 = vpack.c.b16 %v3078, %v3077
        %v3856 = vpack.c.b16 %v3080, %v3079
        %v3857 = vpack.c.b16 %v3082, %v3081
        %v3858 = vpack.c.b16 %v3084, %v3083
        %v3859 = vpack.c.b16 %v3086, %v3085
        %v3860 = vpack.c.b16 %v3088, %v3087
        %v3861 = vpack.c.b16 %v3090, %v3089
        %v3862 = vpack.c.b16 %v3092, %v3091
        %v3863 = vpack.c.b16 %v3094, %v3093
        %v3864 = vpack.c.b16 %v3096, %v3095
        %v3865 = vpack.c.b16 %v3098, %v3097
        %v3866 = vpack.c.b16 %v3100, %v3099
        %v3867 = vpack.c.b16 %v3102, %v3101
        %v3868 = vpack.c.b16 %v3104, %v3103
        %v3869 = vpack.c.b16 %v3106, %v3105
        %v3870 = vpack.c.b16 %v3108, %v3107
        %v3871 = vpack.c.b16 %v3110, %v3109
        %v3872 = vpack.c.b16 %v3112, %v3111
        %v3873 = vpack.c.b16 %v3114, %v3113
        %v3874 = vpack.c.b16 %v3116, %v3115
        %v3875 = vpack.c.b16 %v3118, %v3117
        %v3876 = vpack.c.b16 %v3120, %v3119
        %v3877 = vpack.c.b16 %v3122, %v3121
        %v3878 = vpack.c.b16 %v3124, %v3123
        %v3879 = vpack.c.b16 %v3126, %v3125
        %v3880 = vpack.c.b16 %v3128, %v3127
        %v3881 = vpack.c.b16 %v3130, %v3129
        %v3882 = vpack.c.b16 %v3132, %v3131
        %v3883 = vpack.c.b16 %v3134, %v3133
        %v3884 = vpack.c.b16 %v3136, %v3135
        %v3885 = vpack.c.b16 %v3138, %v3137
        %v3886 = vpack.c.b16 %v3140, %v3139
        %v3887 = vpack.c.b16 %v3142, %v3141
        %v3888 = vpack.c.b16 %v3144, %v3143
        %v3889 = vpack.c.b16 %v3146, %v3145
        %v3890 = vpack.c.b16 %v3148, %v3147
        %v3891 = vpack.c.b16 %v3150, %v3149
        %v3892 = vpack.c.b16 %v3152, %v3151
        %v3893 = vpack.c.b16 %v3154, %v3153
        %v3894 = vpack.c.b16 %v3156, %v3155
        %v3895 = vpack.c.b16 %v3158, %v3157
        %v3896 = vpack.c.b16 %v3160, %v3159
        %v3897 = vpack.c.b16 %v3162, %v3161
        %v3898 = vpack.c.b16 %v3164, %v3163
        %v3899 = vpack.c.b16 %v3166, %v3165
        %v3900 = vpack.c.b16 %v3168, %v3167
        %v3901 = vpack.c.b16 %v3170, %v3169
        %v3902 = vpack.c.b16 %v3172, %v3171
        %v3903 = vpack.c.b16 %v3174, %v3173
        %v3904 = vpack.c.b16 %v3176, %v3175
        %v3905 = vpack.c.b16 %v3178, %v3177
        %v3906 = vpack.c.b16 %v3180, %v3179
        %v3907 = vpack.c.b16 %v3182, %v3181
        %v3908 = vpack.c.b16 %v3184, %v3183
        %v3909 = vpack.c.b16 %v3186, %v3185
        %v3910 = vpack.c.b16 %v3188, %v3187
        %v3911 = vpack.c.b16 %v3190, %v3189
        %v3912 = vpack.c.b16 %v3192, %v3191
        %v3913 = vpack.c.b16 %v3194, %v3193
        %v3914 = vpack.c.b16 %v3196, %v3195
        %v3915 = vpack.c.b16 %v3198, %v3197
        %v3916 = vpack.c.b16 %v3200, %v3199
        %v3917 = vpack.c.b16 %v3202, %v3201
        %v3918 = vpack.c.b16 %v3204, %v3203
        %v3919 = vpack.c.b16 %v3206, %v3205
        %v3920 = vpack.c.b16 %v3208, %v3207
        %v3921 = vpack.c.b16 %v3210, %v3209
        %v3922 = vpack.c.b16 %v3212, %v3211
        %v3923 = vpack.c.b16 %v3214, %v3213
        %v3924 = vpack.c.b16 %v3216, %v3215
        %v3925 = vpack.c.b16 %v3218, %v3217
        %v3926 = vpack.c.b16 %v3220, %v3219
        %v3927 = vpack.c.b16 %v3222, %v3221
        %v3928 = vpack.c.b16 %v3224, %v3223
        %v3929 = vpack.c.b16 %v3226, %v3225
        %v3930 = vpack.c.b16 %v3228, %v3227
        %v3931 = vpack.c.b16 %v3230, %v3229
        %v3932 = vpack.c.b16 %v3232, %v3231
        %v3933 = vpack.c.b16 %v3234, %v3233
        %v3934 = vpack.c.b16 %v3236, %v3235
        %v3935 = vpack.c.b16 %v3238, %v3237
        %v3936 = vpack.c.b16 %v3240, %v3239
        %v3937 = vpack.c.b16 %v3242, %v3241
        %v3938 = vpack.c.b16 %v3244, %v3243
        %v3939 = vpack.c.b16 %v3246, %v3245
        %v3940 = vpack.c.b16 %v3248, %v3247
        %v3941 = vpack.c.b16 %v3250, %v3249
        %v3942 = vpack.c.b16 %v3252, %v3251
        %v3943 = vpack.c.b16 %v3254, %v3253
        %v3944 = vpack.c.b16 %v3256, %v3255
        %v3945 = vpack.c.b16 %v3258, %v3257
        %v3946 = vpack.c.b16 %v3260, %v3259
        %v3947 = vpack.c.b16 %v3262, %v3261
        %v3948 = vpack.c.b16 %v3264, %v3263
        %v3949 = vpack.c.b16 %v3266, %v3265
        %v3950 = vpack.c.b16 %v3268, %v3267
        %v3951 = vpack.c.b16 %v3270, %v3269
        %v3952 = vpack.c.b16 %v3272, %v3271
        %v3953 = vpack.c.b16 %v3274, %v3273
        %v3954 = vpack.c.b16 %v3276, %v3275
        %v3955 = vpack.c.b16 %v3278, %v3277
        %v3956 = vpack.c.b16 %v3280, %v3279
        %v3957 = vpack.c.b16 %v3282, %v3281
        %v3958 = vpack.c.b16 %v3284, %v3283
        %v3959 = vpack.c.b16 %v3286, %v3285
        %v3960 = vpack.c.b16 %v3288, %v3287
        %v3961 = vpack.c.b16 %v3290, %v3289
        %v3962 = vpack.c.b16 %v3292, %v3291
        %v3963 = vpack.c.b16 %v3294, %v3293
        %v3964 = vpack.c.b16 %v3296, %v3295
        %v3965 = vpack.c.b16 %v3298, %v3297
        %v3966 = vpack.c.b16 %v3300, %v3299
        %v3967 = vpack.c.b16 %v3302, %v3301
        %v3968 = vpack.c.b16 %v3304, %v3303
        %v3969 = vpack.c.b16 %v3306, %v3305
        %v3970 = vpack.c.b16 %v3308, %v3307
        %v3971 = vpack.c.b16 %v3310, %v3309
        %v3972 = vpack.c.b16 %v3312, %v3311
        %v3973 = vpack.c.b16 %v3314, %v3313
        %v3974 = vpack.c.b16 %v3316, %v3315
        %v3975 = vpack.c.b16 %v3318, %v3317
        %v3976 = vpack.c.b16 %v3320, %v3319
        %v3977 = vpack.c.b16 %v3322, %v3321
        %v3978 = vpack.c.b16 %v3324, %v3323
        %v3979 = vpack.c.b16 %v3326, %v3325
        %v3980 = vpack.c.b16 %v3328, %v3327
        %v3981 = vpack.c.b16 %v3330, %v3329
        %v3982 = vpack.c.b16 %v3332, %v3331
        %v3983 = vpack.c.b16 %v3334, %v3333
        %v3984 = vpack.c.b16 %v3336, %v3335
        %v3985 = vpack.c.b16 %v3338, %v3337
        %v3986 = vpack.c.b16 %v3340, %v3339
        %v3987 = vpack.c.b16 %v3342, %v3341
        %v3988 = vpack.c.b16 %v3344, %v3343
        %v3989 = vpack.c.b16 %v3346, %v3345
        %v3990 = vpack.c.b16 %v3348, %v3347
        %v3991 = vpack.c.b16 %v3350, %v3349
        %v3992 = vpack.c.b16 %v3352, %v3351
        %v3993 = vpack.c.b16 %v3354, %v3353
        %v3994 = vpack.c.b16 %v3356, %v3355
        %v3995 = vpack.c.b16 %v3358, %v3357
        %v3996 = vpack.c.b16 %v3360, %v3359
        %v3997 = vpack.c.b16 %v3362, %v3361
        %v3998 = vpack.c.b16 %v3364, %v3363
        %v3999 = vpack.c.b16 %v3366, %v3365
        %v4000 = vpack.c.b16 %v3368, %v3367
        %v4001 = vpack.c.b16 %v3370, %v3369
        %v4002 = vpack.c.b16 %v3372, %v3371
        %v4003 = vpack.c.b16 %v3374, %v3373
        %v4004 = vpack.c.b16 %v3376, %v3375
        %v4005 = vpack.c.b16 %v3378, %v3377
        %v4006 = vpack.c.b16 %v3380, %v3379
        %v4007 = vpack.c.b16 %v3382, %v3381
        %v4008 = vpack.c.b16 %v3384, %v3383
        %v4009 = vpack.c.b16 %v3386, %v3385
        %v4010 = vpack.c.b16 %v3388, %v3387
        %v4011 = vpack.c.b16 %v3390, %v3389
        %v4012 = vpack.c.b16 %v3392, %v3391
        %v4013 = vpack.c.b16 %v3394, %v3393
        %v4014 = vpack.c.b16 %v3396, %v3395
        %v4015 = vpack.c.b16 %v3398, %v3397
        %v4016 = vpack.c.b16 %v3400, %v3399
        %v4017 = vpack.c.b16 %v3402, %v3401
        %v4018 = vpack.c.b16 %v3404, %v3403
        %v4019 = vpack.c.b16 %v3406, %v3405
        %v4020 = vpack.c.b16 %v3408, %v3407
        %v4021 = vpack.c.b16 %v3410, %v3409
        %v4022 = vpack.c.b16 %v3412, %v3411
        %v4023 = vpack.c.b16 %v3414, %v3413
        %v4024 = vpack.c.b16 %v3416, %v3415
        %v4025 = vpack.c.b16 %v3418, %v3417
        %v4026 = vpack.c.b16 %v3420, %v3419
        %v4027 = vpack.c.b16 %v3422, %v3421
        %v4028 = vpack.c.b16 %v3424, %v3423
        %v4029 = vpack.c.b16 %v3426, %v3425
        %v4030 = vpack.c.b16 %v3428, %v3427
        %v4031 = vpack.c.b16 %v3430, %v3429
        %v4032 = vpack.c.b16 %v3432, %v3431
        %v4033 = vpack.c.b16 %v3434, %v3433
        %v4034 = vpack.c.b16 %v3436, %v3435
        %v4035 = vpack.c.b16 %v3438, %v3437
        %v4036 = vpack.c.b16 %v3440, %v3439
        %v4037 = vpack.c.b16 %v3442, %v3441
        %v4038 = vpack.c.b16 %v3444, %v3443
        %v4039 = vpack.c.b16 %v3446, %v3445
        %v4040 = vpack.c.b16 %v3448, %v3447
        %v4041 = vpack.c.b16 %v3450, %v3449
        %v4042 = vpack.c.b16 %v3452, %v3451
        %v4043 = vpack.c.b16 %v3454, %v3453
        %v4044 = vpack.c.b16 %v3456, %v3455
        %v4045 = vpack.c.b16 %v3458, %v3457
        %v4046 = vpack.c.b16 %v3460, %v3459
        %v4047 = vpack.c.b16 %v3462, %v3461
        %v4048 = vpack.c.b16 %v3464, %v3463
        %v4049 = vpack.c.b16 %v3466, %v3465
        %v4050 = vpack.c.b16 %v3468, %v3467
        %v4051 = vpack.c.b16 %v3470, %v3469
        %v4052 = vpack.c.b16 %v3472, %v3471
        %v4053 = vpack.c.b16 %v3474, %v3473
        %v4054 = vpack.c.b16 %v3476, %v3475
        %v4055 = vpack.c.b16 %v3478, %v3477
        %v4056 = vpack.c.b16 %v3480, %v3479
        %v4057 = vpack.c.b16 %v3482, %v3481
        %v4058 = vpack.c.b16 %v3484, %v3483
        %v4059 = vpack.c.b16 %v3486, %v3485
        %v4060 = vpack.c.b16 %v3488, %v3487
        %v4061 = vpack.c.b16 %v3490, %v3489
        %v4062 = vpack.c.b16 %v3492, %v3491
        %v4063 = vpack.c.b16 %v3494, %v3493
        %v4064 = vpack.c.b16 %v3496, %v3495
        %v4065 = vpack.c.b16 %v3498, %v3497
        %v4066 = vpack.c.b16 %v3500, %v3499
        %v4067 = vpack.c.b16 %v3502, %v3501
        %v4068 = vpack.c.b16 %v3504, %v3503
        %v4069 = vpack.c.b16 %v3506, %v3505
        %v4070 = vpack.c.b16 %v3508, %v3507
        %v4071 = vpack.c.b16 %v3510, %v3509
        %v4072 = vpack.c.b16 %v3512, %v3511
        %v4073 = vpack.c.b16 %v3514, %v3513
        %v4074 = vpack.c.b16 %v3516, %v3515
        %v4075 = vpack.c.b16 %v3518, %v3517
        %v4076 = vpack.c.b16 %v3520, %v3519
        %v4077 = vpack.c.b16 %v3522, %v3521
        %v4078 = vpack.c.b16 %v3524, %v3523
        %v4079 = vpack.c.b16 %v3526, %v3525
        %v4080 = vpack.c.b16 %v3528, %v3527
        %v4081 = vpack.c.b16 %v3530, %v3529
        %v4082 = vpack.c.b16 %v3532, %v3531
        %v4083 = vpack.c.b16 %v3534, %v3533
        %v4084 = vpack.c.b16 %v3536, %v3535
        %v4085 = vpack.c.b16 %v3538, %v3537
        %v4086 = vpack.c.b16 %v3540, %v3539
        %v4087 = vpack.c.b16 %v3542, %v3541
        %v4088 = vpack.c.b16 %v3544, %v3543
        %v4089 = vpack.c.b16 %v3546, %v3545
        %v4090 = vpack.c.b16 %v3548, %v3547
        %v4091 = vpack.c.b16 %v3550, %v3549
        %v4092 = vpack.c.b16 %v3552, %v3551
        %v4093 = vpack.c.b16 %v3554, %v3553
        %v4094 = vpack.c.b16 %v3556, %v3555
        %v4095 = vpack.c.b16 %v3558, %v3557
        %v4096 = vpack.c.b16 %v3560, %v3559
        %v4097 = vpack.c.b16 %v3562, %v3561
        %v4098 = vpack.c.b16 %v3564, %v3563
        %v4099 = vpack.c.b16 %v3566, %v3565
        %v4100 = vpack.c.b16 %v3568, %v3567
        %v4101 = vpack.c.b16 %v3570, %v3569
        %v4102 = vpack.c.b16 %v3572, %v3571
        %v4103 = vpack.c.b16 %v3574, %v3573
        %v4104 = vpack.c.b16 %v3576, %v3575
        %v4105 = vpack.c.b16 %v3578, %v3577
        %v4106 = vpack.c.b16 %v3580, %v3579
        %v4107 = vpack.c.b16 %v3582, %v3581
        %v4108 = vpack.c.b16 %v3584, %v3583
        %v4109 = vpack.c.b16 %v3586, %v3585
        %v4110 = vpack.c.b16 %v3588, %v3587
        %v4111 = vpack.c.b16 %v3590, %v3589
        %v4112 = vpack.c.b16 %v3592, %v3591
        %v4113 = vpack.c.b16 %v3594, %v3593
        %v4114 = vpack.c.b16 %v3596, %v3595
        %v4115 = vpack.c.b16 %v3598, %v3597
        %v4116 = vpack.c.b16 %v3600, %v3599
        %v4117 = vpack.c.b16 %v3602, %v3601
        %v4118 = vpack.c.b16 %v3604, %v3603
        %v4119 = vpack.c.b16 %v3606, %v3605
        %v4120 = vpack.c.b16 %v3608, %v3607
        %4633 = vmatprep.subr.bf16.mxu0 0
        %4634 = vmatpush1.bf16.msra.mxu0 %v3609
        %4635 = vmatprep.subr.bf16.mxu0 0
        %4636 = vmatpush1.bf16.msra.mxu0 %v3610
        %4637 = vmatprep.subr.bf16.mxu0 0
        %4638 = vmatpush1.bf16.msra.mxu0 %v3611
        %4639 = vmatprep.subr.bf16.mxu0 0
        %4640 = vmatpush1.bf16.msra.mxu0 %v3612
        %4641 = vmatprep.subr.bf16.mxu0 0
        %4642 = vmatpush1.bf16.msra.mxu0 %v3613
        %4643 = vmatprep.subr.bf16.mxu0 0
        %4644 = vmatpush1.bf16.msra.mxu0 %v3614
        %4645 = vmatprep.subr.bf16.mxu0 0
        %4646 = vmatpush1.bf16.msra.mxu0 %v3615
        %4647 = vmatprep.subr.bf16.mxu0 0
        %4648 = vmatpush1.bf16.msra.mxu0 %v3616
        %4649 = vmatprep.subr.bf16.mxu0 0
        %4650 = vmatpush1.bf16.msra.mxu0 %v3617
        %4651 = vmatprep.subr.bf16.mxu0 0
        %4652 = vmatpush1.bf16.msra.mxu0 %v3618
        %4653 = vmatprep.subr.bf16.mxu0 0
        %4654 = vmatpush1.bf16.msra.mxu0 %v3619
        %4655 = vmatprep.subr.bf16.mxu0 0
        %4656 = vmatpush1.bf16.msra.mxu0 %v3620
        %4657 = vmatprep.subr.bf16.mxu0 0
        %4658 = vmatpush1.bf16.msra.mxu0 %v3621
        %4659 = vmatprep.subr.bf16.mxu0 0
        %4660 = vmatpush1.bf16.msra.mxu0 %v3622
        %4661 = vmatprep.subr.bf16.mxu0 0
        %4662 = vmatpush1.bf16.msra.mxu0 %v3623
        %4663 = vmatprep.subr.bf16.mxu0 0
        %4664 = vmatpush1.bf16.msra.mxu0 %v3624
        %4665 = vmatprep.mubr.bf16.mxu0 %v1434
        %4666 = vmatmul.mubr.bf16.gmra.mrb[0].mxu0 %v1433
        %v4667 = vpop.f32.mrb[0].mxu0
        %v4668 = vadd.f32 0.0, %v4667
        %v4669 = vpop.f32.mrb[0].mxu0
        %v4670 = vpop.f32.mrb[0].mxu0
        %v4671 = vpop.f32.mrb[0].mxu0
        %4672 = vdwg.mxu0
        %4673 = vmatprep.subr.bf16.mxu0 0
        %4674 = vmatpush1.bf16.msra.mxu0 %v3625
        %4675 = vmatprep.subr.bf16.mxu0 0
        %4676 = vmatpush1.bf16.msra.mxu0 %v3626
        %4677 = vmatprep.subr.bf16.mxu0 0
        %4678 = vmatpush1.bf16.msra.mxu0 %v3627
        %4679 = vmatprep.subr.bf16.mxu0 0
        %4680 = vmatpush1.bf16.msra.mxu0 %v3628
        %4681 = vmatprep.subr.bf16.mxu0 0
        %4682 = vmatpush1.bf16.msra.mxu0 %v3629
        %4683 = vmatprep.subr.bf16.mxu0 0
        %4684 = vmatpush1.bf16.msra.mxu0 %v3630
        %4685 = vmatprep.subr.bf16.mxu0 0
        %4686 = vmatpush1.bf16.msra.mxu0 %v3631
        %4687 = vmatprep.subr.bf16.mxu0 0
        %4688 = vmatpush1.bf16.msra.mxu0 %v3632
        %4689 = vmatprep.subr.bf16.mxu0 0
        %4690 = vmatpush1.bf16.msra.mxu0 %v3633
        %4691 = vmatprep.subr.bf16.mxu0 0
        %4692 = vmatpush1.bf16.msra.mxu0 %v3634
        %4693 = vmatprep.subr.bf16.mxu0 0
        %4694 = vmatpush1.bf16.msra.mxu0 %v3635
        %4695 = vmatprep.subr.bf16.mxu0 0
        %4696 = vmatpush1.bf16.msra.mxu0 %v3636
        %4697 = vmatprep.subr.bf16.mxu0 0
        %4698 = vmatpush1.bf16.msra.mxu0 %v3637
        %4699 = vmatprep.subr.bf16.mxu0 0
        %4700 = vmatpush1.bf16.msra.mxu0 %v3638
        %4701 = vmatprep.subr.bf16.mxu0 0
        %4702 = vmatpush1.bf16.msra.mxu0 %v3639
        %4703 = vmatprep.subr.bf16.mxu0 0
        %4704 = vmatpush1.bf16.msra.mxu0 %v3640
        %4705 = vmatprep.mubr.bf16.mxu0 %v1436
        %4706 = vmatmul.mubr.bf16.gmra.mrb[0].mxu0 %v1435
        %v4707 = vpop.f32.mrb[0].mxu0
        %v4708 = vadd.f32 %v4668, %v4707
        %v4709 = vpop.f32.mrb[0].mxu0
        %v4710 = vpop.f32.mrb[0].mxu0
        %v4711 = vpop.f32.mrb[0].mxu0
        %4712 = vdwg.mxu0
        %4713 = vmatprep.subr.bf16.mxu0 0
        %4714 = vmatpush1.bf16.msra.mxu0 %v3641
        %4715 = vmatprep.subr.bf16.mxu0 0
        %4716 = vmatpush1.bf16.msra.mxu0 %v3642
        %4717 = vmatprep.subr.bf16.mxu0 0
        %4718 = vmatpush1.bf16.msra.mxu0 %v3643
        %4719 = vmatprep.subr.bf16.mxu0 0
        %4720 = vmatpush1.bf16.msra.mxu0 %v3644
        %4721 = vmatprep.subr.bf16.mxu0 0
        %4722 = vmatpush1.bf16.msra.mxu0 %v3645
        %4723 = vmatprep.subr.bf16.mxu0 0
        %4724 = vmatpush1.bf16.msra.mxu0 %v3646
        %4725 = vmatprep.subr.bf16.mxu0 0
        %4726 = vmatpush1.bf16.msra.mxu0 %v3647
        %4727 = vmatprep.subr.bf16.mxu0 0
        %4728 = vmatpush1.bf16.msra.mxu0 %v3648
        %4729 = vmatprep.subr.bf16.mxu0 0
        %4730 = vmatpush1.bf16.msra.mxu0 %v3649
        %4731 = vmatprep.subr.bf16.mxu0 0
        %4732 = vmatpush1.bf16.msra.mxu0 %v3650
        %4733 = vmatprep.subr.bf16.mxu0 0
        %4734 = vmatpush1.bf16.msra.mxu0 %v3651
        %4735 = vmatprep.subr.bf16.mxu0 0
        %4736 = vmatpush1.bf16.msra.mxu0 %v3652
        %4737 = vmatprep.subr.bf16.mxu0 0
        %4738 = vmatpush1.bf16.msra.mxu0 %v3653
        %4739 = vmatprep.subr.bf16.mxu0 0
        %4740 = vmatpush1.bf16.msra.mxu0 %v3654
        %4741 = vmatprep.subr.bf16.mxu0 0
        %4742 = vmatpush1.bf16.msra.mxu0 %v3655
        %4743 = vmatprep.subr.bf16.mxu0 0
        %4744 = vmatpush1.bf16.msra.mxu0 %v3656
        %4745 = vmatprep.mubr.bf16.mxu0 %v1438
        %4746 = vmatmul.mubr.bf16.gmra.mrb[0].mxu0 %v1437
        %v4747 = vpop.f32.mrb[0].mxu0
        %v4748 = vadd.f32 %v4708, %v4747
        %v4749 = vpop.f32.mrb[0].mxu0
        %v4750 = vpop.f32.mrb[0].mxu0
        %v4751 = vpop.f32.mrb[0].mxu0
        %4752 = vdwg.mxu0
        %4753 = vmatprep.subr.bf16.mxu0 0
        %4754 = vmatpush1.bf16.msra.mxu0 %v3657
        %4755 = vmatprep.subr.bf16.mxu0 0
        %4756 = vmatpush1.bf16.msra.mxu0 %v3658
        %4757 = vmatprep.subr.bf16.mxu0 0
        %4758 = vmatpush1.bf16.msra.mxu0 %v3659
        %4759 = vmatprep.subr.bf16.mxu0 0
        %4760 = vmatpush1.bf16.msra.mxu0 %v3660
        %4761 = vmatprep.subr.bf16.mxu0 0
        %4762 = vmatpush1.bf16.msra.mxu0 %v3661
        %4763 = vmatprep.subr.bf16.mxu0 0
        %4764 = vmatpush1.bf16.msra.mxu0 %v3662
        %4765 = vmatprep.subr.bf16.mxu0 0
        %4766 = vmatpush1.bf16.msra.mxu0 %v3663
        %4767 = vmatprep.subr.bf16.mxu0 0
        %4768 = vmatpush1.bf16.msra.mxu0 %v3664
        %4769 = vmatprep.subr.bf16.mxu0 0
        %4770 = vmatpush1.bf16.msra.mxu0 %v3665
        %4771 = vmatprep.subr.bf16.mxu0 0
        %4772 = vmatpush1.bf16.msra.mxu0 %v3666
        %4773 = vmatprep.subr.bf16.mxu0 0
        %4774 = vmatpush1.bf16.msra.mxu0 %v3667
        %4775 = vmatprep.subr.bf16.mxu0 0
        %4776 = vmatpush1.bf16.msra.mxu0 %v3668
        %4777 = vmatprep.subr.bf16.mxu0 0
        %4778 = vmatpush1.bf16.msra.mxu0 %v3669
        %4779 = vmatprep.subr.bf16.mxu0 0
        %4780 = vmatpush1.bf16.msra.mxu0 %v3670
        %4781 = vmatprep.subr.bf16.mxu0 0
        %4782 = vmatpush1.bf16.msra.mxu0 %v3671
        %4783 = vmatprep.subr.bf16.mxu0 0
        %4784 = vmatpush1.bf16.msra.mxu0 %v3672
        %4785 = vmatprep.mubr.bf16.mxu0 %v1440
        %4786 = vmatmul.mubr.bf16.gmra.mrb[0].mxu0 %v1439
        %v4787 = vpop.f32.mrb[0].mxu0
        %v4788 = vadd.f32 %v4748, %v4787
        %v4789 = vpop.f32.mrb[0].mxu0
        %v4790 = vpop.f32.mrb[0].mxu0
        %v4791 = vpop.f32.mrb[0].mxu0
        %4792 = vdwg.mxu0
        %4793 = vmatprep.subr.bf16.mxu0 0
        %4794 = vmatpush1.bf16.msra.mxu0 %v3673
        %4795 = vmatprep.subr.bf16.mxu0 0
        %4796 = vmatpush1.bf16.msra.mxu0 %v3674
        %4797 = vmatprep.subr.bf16.mxu0 0
        %4798 = vmatpush1.bf16.msra.mxu0 %v3675
        %4799 = vmatprep.subr.bf16.mxu0 0
        %4800 = vmatpush1.bf16.msra.mxu0 %v3676
        %4801 = vmatprep.subr.bf16.mxu0 0
        %4802 = vmatpush1.bf16.msra.mxu0 %v3677
        %4803 = vmatprep.subr.bf16.mxu0 0
        %4804 = vmatpush1.bf16.msra.mxu0 %v3678
        %4805 = vmatprep.subr.bf16.mxu0 0
        %4806 = vmatpush1.bf16.msra.mxu0 %v3679
        %4807 = vmatprep.subr.bf16.mxu0 0
        %4808 = vmatpush1.bf16.msra.mxu0 %v3680
        %4809 = vmatprep.subr.bf16.mxu0 0
        %4810 = vmatpush1.bf16.msra.mxu0 %v3681
        %4811 = vmatprep.subr.bf16.mxu0 0
        %4812 = vmatpush1.bf16.msra.mxu0 %v3682
        %4813 = vmatprep.subr.bf16.mxu0 0
        %4814 = vmatpush1.bf16.msra.mxu0 %v3683
        %4815 = vmatprep.subr.bf16.mxu0 0
        %4816 = vmatpush1.bf16.msra.mxu0 %v3684
        %4817 = vmatprep.subr.bf16.mxu0 0
        %4818 = vmatpush1.bf16.msra.mxu0 %v3685
        %4819 = vmatprep.subr.bf16.mxu0 0
        %4820 = vmatpush1.bf16.msra.mxu0 %v3686
        %4821 = vmatprep.subr.bf16.mxu0 0
        %4822 = vmatpush1.bf16.msra.mxu0 %v3687
        %4823 = vmatprep.subr.bf16.mxu0 0
        %4824 = vmatpush1.bf16.msra.mxu0 %v3688
        %4825 = vmatprep.mubr.bf16.mxu0 %v1442
        %4826 = vmatmul.mubr.bf16.gmra.mrb[0].mxu0 %v1441
        %v4827 = vpop.f32.mrb[0].mxu0
        %v4828 = vadd.f32 %v4788, %v4827
        %v4829 = vpop.f32.mrb[0].mxu0
        %v4830 = vpop.f32.mrb[0].mxu0
        %v4831 = vpop.f32.mrb[0].mxu0
        %4832 = vdwg.mxu0
        %4833 = vmatprep.subr.bf16.mxu0 0
        %4834 = vmatpush1.bf16.msra.mxu0 %v3689
        %4835 = vmatprep.subr.bf16.mxu0 0
        %4836 = vmatpush1.bf16.msra.mxu0 %v3690
        %4837 = vmatprep.subr.bf16.mxu0 0
        %4838 = vmatpush1.bf16.msra.mxu0 %v3691
        %4839 = vmatprep.subr.bf16.mxu0 0
        %4840 = vmatpush1.bf16.msra.mxu0 %v3692
        %4841 = vmatprep.subr.bf16.mxu0 0
        %4842 = vmatpush1.bf16.msra.mxu0 %v3693
        %4843 = vmatprep.subr.bf16.mxu0 0
        %4844 = vmatpush1.bf16.msra.mxu0 %v3694
        %4845 = vmatprep.subr.bf16.mxu0 0
        %4846 = vmatpush1.bf16.msra.mxu0 %v3695
        %4847 = vmatprep.subr.bf16.mxu0 0
        %4848 = vmatpush1.bf16.msra.mxu0 %v3696
        %4849 = vmatprep.subr.bf16.mxu0 0
        %4850 = vmatpush1.bf16.msra.mxu0 %v3697
        %4851 = vmatprep.subr.bf16.mxu0 0
        %4852 = vmatpush1.bf16.msra.mxu0 %v3698
        %4853 = vmatprep.subr.bf16.mxu0 0
        %4854 = vmatpush1.bf16.msra.mxu0 %v3699
        %4855 = vmatprep.subr.bf16.mxu0 0
        %4856 = vmatpush1.bf16.msra.mxu0 %v3700
        %4857 = vmatprep.subr.bf16.mxu0 0
        %4858 = vmatpush1.bf16.msra.mxu0 %v3701
        %4859 = vmatprep.subr.bf16.mxu0 0
        %4860 = vmatpush1.bf16.msra.mxu0 %v3702
        %4861 = vmatprep.subr.bf16.mxu0 0
        %4862 = vmatpush1.bf16.msra.mxu0 %v3703
        %4863 = vmatprep.subr.bf16.mxu0 0
        %4864 = vmatpush1.bf16.msra.mxu0 %v3704
        %4865 = vmatprep.mubr.bf16.mxu0 %v1444
        %4866 = vmatmul.mubr.bf16.gmra.mrb[0].mxu0 %v1443
        %v4867 = vpop.f32.mrb[0].mxu0
        %v4868 = vadd.f32 %v4828, %v4867
        %v4869 = vpop.f32.mrb[0].mxu0
        %v4870 = vpop.f32.mrb[0].mxu0
        %v4871 = vpop.f32.mrb[0].mxu0
        %4872 = vdwg.mxu0
        %4873 = vmatprep.subr.bf16.mxu0 0
        %4874 = vmatpush1.bf16.msra.mxu0 %v3705
        %4875 = vmatprep.subr.bf16.mxu0 0
        %4876 = vmatpush1.bf16.msra.mxu0 %v3706
        %4877 = vmatprep.subr.bf16.mxu0 0
        %4878 = vmatpush1.bf16.msra.mxu0 %v3707
        %4879 = vmatprep.subr.bf16.mxu0 0
        %4880 = vmatpush1.bf16.msra.mxu0 %v3708
        %4881 = vmatprep.subr.bf16.mxu0 0
        %4882 = vmatpush1.bf16.msra.mxu0 %v3709
        %4883 = vmatprep.subr.bf16.mxu0 0
        %4884 = vmatpush1.bf16.msra.mxu0 %v3710
        %4885 = vmatprep.subr.bf16.mxu0 0
        %4886 = vmatpush1.bf16.msra.mxu0 %v3711
        %4887 = vmatprep.subr.bf16.mxu0 0
        %4888 = vmatpush1.bf16.msra.mxu0 %v3712
        %4889 = vmatprep.subr.bf16.mxu0 0
        %4890 = vmatpush1.bf16.msra.mxu0 %v3713
        %4891 = vmatprep.subr.bf16.mxu0 0
        %4892 = vmatpush1.bf16.msra.mxu0 %v3714
        %4893 = vmatprep.subr.bf16.mxu0 0
        %4894 = vmatpush1.bf16.msra.mxu0 %v3715
        %4895 = vmatprep.subr.bf16.mxu0 0
        %4896 = vmatpush1.bf16.msra.mxu0 %v3716
        %4897 = vmatprep.subr.bf16.mxu0 0
        %4898 = vmatpush1.bf16.msra.mxu0 %v3717
        %4899 = vmatprep.subr.bf16.mxu0 0
        %4900 = vmatpush1.bf16.msra.mxu0 %v3718
        %4901 = vmatprep.subr.bf16.mxu0 0
        %4902 = vmatpush1.bf16.msra.mxu0 %v3719
        %4903 = vmatprep.subr.bf16.mxu0 0
        %4904 = vmatpush1.bf16.msra.mxu0 %v3720
        %4905 = vmatprep.mubr.bf16.mxu0 %v1446
        %4906 = vmatmul.mubr.bf16.gmra.mrb[0].mxu0 %v1445
        %v4907 = vpop.f32.mrb[0].mxu0
        %v4908 = vadd.f32 %v4868, %v4907
        %v4909 = vpop.f32.mrb[0].mxu0
        %v4910 = vpop.f32.mrb[0].mxu0
        %v4911 = vpop.f32.mrb[0].mxu0
        %4912 = vdwg.mxu0
        %4913 = vmatprep.subr.bf16.mxu0 0
        %4914 = vmatpush1.bf16.msra.mxu0 %v3721
        %4915 = vmatprep.subr.bf16.mxu0 0
        %4916 = vmatpush1.bf16.msra.mxu0 %v3722
        %4917 = vmatprep.subr.bf16.mxu0 0
        %4918 = vmatpush1.bf16.msra.mxu0 %v3723
        %4919 = vmatprep.subr.bf16.mxu0 0
        %4920 = vmatpush1.bf16.msra.mxu0 %v3724
        %4921 = vmatprep.subr.bf16.mxu0 0
        %4922 = vmatpush1.bf16.msra.mxu0 %v3725
        %4923 = vmatprep.subr.bf16.mxu0 0
        %4924 = vmatpush1.bf16.msra.mxu0 %v3726
        %4925 = vmatprep.subr.bf16.mxu0 0
        %4926 = vmatpush1.bf16.msra.mxu0 %v3727
        %4927 = vmatprep.subr.bf16.mxu0 0
        %4928 = vmatpush1.bf16.msra.mxu0 %v3728
        %4929 = vmatprep.subr.bf16.mxu0 0
        %4930 = vmatpush1.bf16.msra.mxu0 %v3729
        %4931 = vmatprep.subr.bf16.mxu0 0
        %4932 = vmatpush1.bf16.msra.mxu0 %v3730
        %4933 = vmatprep.subr.bf16.mxu0 0
        %4934 = vmatpush1.bf16.msra.mxu0 %v3731
        %4935 = vmatprep.subr.bf16.mxu0 0
        %4936 = vmatpush1.bf16.msra.mxu0 %v3732
        %4937 = vmatprep.subr.bf16.mxu0 0
        %4938 = vmatpush1.bf16.msra.mxu0 %v3733
        %4939 = vmatprep.subr.bf16.mxu0 0
        %4940 = vmatpush1.bf16.msra.mxu0 %v3734
        %4941 = vmatprep.subr.bf16.mxu0 0
        %4942 = vmatpush1.bf16.msra.mxu0 %v3735
        %4943 = vmatprep.subr.bf16.mxu0 0
        %4944 = vmatpush1.bf16.msra.mxu0 %v3736
        %4945 = vmatprep.mubr.bf16.mxu0 %v1448
        %4946 = vmatmul.mubr.bf16.gmra.mrb[0].mxu0 %v1447
        %v4947 = vpop.f32.mrb[0].mxu0
        %v4948 = vadd.f32 %v4908, %v4947
        %v4949 = vpop.f32.mrb[0].mxu0
        %v4950 = vpop.f32.mrb[0].mxu0
        %v4951 = vpop.f32.mrb[0].mxu0
        %4952 = vdwg.mxu0
        %4953 = vmatprep.subr.bf16.mxu0 0
        %4954 = vmatpush1.bf16.msra.mxu0 %v3737
        %4955 = vmatprep.subr.bf16.mxu0 0
        %4956 = vmatpush1.bf16.msra.mxu0 %v3738
        %4957 = vmatprep.subr.bf16.mxu0 0
        %4958 = vmatpush1.bf16.msra.mxu0 %v3739
        %4959 = vmatprep.subr.bf16.mxu0 0
        %4960 = vmatpush1.bf16.msra.mxu0 %v3740
        %4961 = vmatprep.subr.bf16.mxu0 0
        %4962 = vmatpush1.bf16.msra.mxu0 %v3741
        %4963 = vmatprep.subr.bf16.mxu0 0
        %4964 = vmatpush1.bf16.msra.mxu0 %v3742
        %4965 = vmatprep.subr.bf16.mxu0 0
        %4966 = vmatpush1.bf16.msra.mxu0 %v3743
        %4967 = vmatprep.subr.bf16.mxu0 0
        %4968 = vmatpush1.bf16.msra.mxu0 %v3744
        %4969 = vmatprep.subr.bf16.mxu0 0
        %4970 = vmatpush1.bf16.msra.mxu0 %v3745
        %4971 = vmatprep.subr.bf16.mxu0 0
        %4972 = vmatpush1.bf16.msra.mxu0 %v3746
        %4973 = vmatprep.subr.bf16.mxu0 0
        %4974 = vmatpush1.bf16.msra.mxu0 %v3747
        %4975 = vmatprep.subr.bf16.mxu0 0
        %4976 = vmatpush1.bf16.msra.mxu0 %v3748
        %4977 = vmatprep.subr.bf16.mxu0 0
        %4978 = vmatpush1.bf16.msra.mxu0 %v3749
        %4979 = vmatprep.subr.bf16.mxu0 0
        %4980 = vmatpush1.bf16.msra.mxu0 %v3750
        %4981 = vmatprep.subr.bf16.mxu0 0
        %4982 = vmatpush1.bf16.msra.mxu0 %v3751
        %4983 = vmatprep.subr.bf16.mxu0 0
        %4984 = vmatpush1.bf16.msra.mxu0 %v3752
        %4985 = vmatprep.mubr.bf16.mxu0 %v1450
        %4986 = vmatmul.mubr.bf16.gmra.mrb[0].mxu0 %v1449
        %v4987 = vpop.f32.mrb[0].mxu0
        %v4988 = vadd.f32 %v4948, %v4987
        %v4989 = vpop.f32.mrb[0].mxu0
        %v4990 = vpop.f32.mrb[0].mxu0
        %v4991 = vpop.f32.mrb[0].mxu0
        %4992 = vdwg.mxu0
        %4993 = vmatprep.subr.bf16.mxu0 0
        %4994 = vmatpush1.bf16.msra.mxu0 %v3753
        %4995 = vmatprep.subr.bf16.mxu0 0
        %4996 = vmatpush1.bf16.msra.mxu0 %v3754
        %4997 = vmatprep.subr.bf16.mxu0 0
        %4998 = vmatpush1.bf16.msra.mxu0 %v3755
        %4999 = vmatprep.subr.bf16.mxu0 0
        %5000 = vmatpush1.bf16.msra.mxu0 %v3756
        %5001 = vmatprep.subr.bf16.mxu0 0
        %5002 = vmatpush1.bf16.msra.mxu0 %v3757
        %5003 = vmatprep.subr.bf16.mxu0 0
        %5004 = vmatpush1.bf16.msra.mxu0 %v3758
        %5005 = vmatprep.subr.bf16.mxu0 0
        %5006 = vmatpush1.bf16.msra.mxu0 %v3759
        %5007 = vmatprep.subr.bf16.mxu0 0
        %5008 = vmatpush1.bf16.msra.mxu0 %v3760
        %5009 = vmatprep.subr.bf16.mxu0 0
        %5010 = vmatpush1.bf16.msra.mxu0 %v3761
        %5011 = vmatprep.subr.bf16.mxu0 0
        %5012 = vmatpush1.bf16.msra.mxu0 %v3762
        %5013 = vmatprep.subr.bf16.mxu0 0
        %5014 = vmatpush1.bf16.msra.mxu0 %v3763
        %5015 = vmatprep.subr.bf16.mxu0 0
        %5016 = vmatpush1.bf16.msra.mxu0 %v3764
        %5017 = vmatprep.subr.bf16.mxu0 0
        %5018 = vmatpush1.bf16.msra.mxu0 %v3765
        %5019 = vmatprep.subr.bf16.mxu0 0
        %5020 = vmatpush1.bf16.msra.mxu0 %v3766
        %5021 = vmatprep.subr.bf16.mxu0 0
        %5022 = vmatpush1.bf16.msra.mxu0 %v3767
        %5023 = vmatprep.subr.bf16.mxu0 0
        %5024 = vmatpush1.bf16.msra.mxu0 %v3768
        %5025 = vmatprep.mubr.bf16.mxu0 %v1452
        %5026 = vmatmul.mubr.bf16.gmra.mrb[0].mxu0 %v1451
        %v5027 = vpop.f32.mrb[0].mxu0
        %v5028 = vadd.f32 %v4988, %v5027
        %v5029 = vpop.f32.mrb[0].mxu0
        %v5030 = vpop.f32.mrb[0].mxu0
        %v5031 = vpop.f32.mrb[0].mxu0
        %5032 = vdwg.mxu0
        %5033 = vmatprep.subr.bf16.mxu0 0
        %5034 = vmatpush1.bf16.msra.mxu0 %v3769
        %5035 = vmatprep.subr.bf16.mxu0 0
        %5036 = vmatpush1.bf16.msra.mxu0 %v3770
        %5037 = vmatprep.subr.bf16.mxu0 0
        %5038 = vmatpush1.bf16.msra.mxu0 %v3771
        %5039 = vmatprep.subr.bf16.mxu0 0
        %5040 = vmatpush1.bf16.msra.mxu0 %v3772
        %5041 = vmatprep.subr.bf16.mxu0 0
        %5042 = vmatpush1.bf16.msra.mxu0 %v3773
        %5043 = vmatprep.subr.bf16.mxu0 0
        %5044 = vmatpush1.bf16.msra.mxu0 %v3774
        %5045 = vmatprep.subr.bf16.mxu0 0
        %5046 = vmatpush1.bf16.msra.mxu0 %v3775
        %5047 = vmatprep.subr.bf16.mxu0 0
        %5048 = vmatpush1.bf16.msra.mxu0 %v3776
        %5049 = vmatprep.subr.bf16.mxu0 0
        %5050 = vmatpush1.bf16.msra.mxu0 %v3777
        %5051 = vmatprep.subr.bf16.mxu0 0
        %5052 = vmatpush1.bf16.msra.mxu0 %v3778
        %5053 = vmatprep.subr.bf16.mxu0 0
        %5054 = vmatpush1.bf16.msra.mxu0 %v3779
        %5055 = vmatprep.subr.bf16.mxu0 0
        %5056 = vmatpush1.bf16.msra.mxu0 %v3780
        %5057 = vmatprep.subr.bf16.mxu0 0
        %5058 = vmatpush1.bf16.msra.mxu0 %v3781
        %5059 = vmatprep.subr.bf16.mxu0 0
        %5060 = vmatpush1.bf16.msra.mxu0 %v3782
        %5061 = vmatprep.subr.bf16.mxu0 0
        %5062 = vmatpush1.bf16.msra.mxu0 %v3783
        %5063 = vmatprep.subr.bf16.mxu0 0
        %5064 = vmatpush1.bf16.msra.mxu0 %v3784
        %5065 = vmatprep.mubr.bf16.mxu0 %v1454
        %5066 = vmatmul.mubr.bf16.gmra.mrb[0].mxu0 %v1453
        %v5067 = vpop.f32.mrb[0].mxu0
        %v5068 = vadd.f32 %v5028, %v5067
        %v5069 = vpop.f32.mrb[0].mxu0
        %v5070 = vpop.f32.mrb[0].mxu0
        %v5071 = vpop.f32.mrb[0].mxu0
        %5072 = vdwg.mxu0
        %5073 = vmatprep.subr.bf16.mxu0 0
        %5074 = vmatpush1.bf16.msra.mxu0 %v3785
        %5075 = vmatprep.subr.bf16.mxu0 0
        %5076 = vmatpush1.bf16.msra.mxu0 %v3786
        %5077 = vmatprep.subr.bf16.mxu0 0
        %5078 = vmatpush1.bf16.msra.mxu0 %v3787
        %5079 = vmatprep.subr.bf16.mxu0 0
        %5080 = vmatpush1.bf16.msra.mxu0 %v3788
        %5081 = vmatprep.subr.bf16.mxu0 0
        %5082 = vmatpush1.bf16.msra.mxu0 %v3789
        %5083 = vmatprep.subr.bf16.mxu0 0
        %5084 = vmatpush1.bf16.msra.mxu0 %v3790
        %5085 = vmatprep.subr.bf16.mxu0 0
        %5086 = vmatpush1.bf16.msra.mxu0 %v3791
        %5087 = vmatprep.subr.bf16.mxu0 0
        %5088 = vmatpush1.bf16.msra.mxu0 %v3792
        %5089 = vmatprep.subr.bf16.mxu0 0
        %5090 = vmatpush1.bf16.msra.mxu0 %v3793
        %5091 = vmatprep.subr.bf16.mxu0 0
        %5092 = vmatpush1.bf16.msra.mxu0 %v3794
        %5093 = vmatprep.subr.bf16.mxu0 0
        %5094 = vmatpush1.bf16.msra.mxu0 %v3795
        %5095 = vmatprep.subr.bf16.mxu0 0
        %5096 = vmatpush1.bf16.msra.mxu0 %v3796
        %5097 = vmatprep.subr.bf16.mxu0 0
        %5098 = vmatpush1.bf16.msra.mxu0 %v3797
        %5099 = vmatprep.subr.bf16.mxu0 0
        %5100 = vmatpush1.bf16.msra.mxu0 %v3798
        %5101 = vmatprep.subr.bf16.mxu0 0
        %5102 = vmatpush1.bf16.msra.mxu0 %v3799
        %5103 = vmatprep.subr.bf16.mxu0 0
        %5104 = vmatpush1.bf16.msra.mxu0 %v3800
        %5105 = vmatprep.mubr.bf16.mxu0 %v1456
        %5106 = vmatmul.mubr.bf16.gmra.mrb[0].mxu0 %v1455
        %v5107 = vpop.f32.mrb[0].mxu0
        %v5108 = vadd.f32 %v5068, %v5107
        %v5109 = vpop.f32.mrb[0].mxu0
        %v5110 = vpop.f32.mrb[0].mxu0
        %v5111 = vpop.f32.mrb[0].mxu0
        %5112 = vdwg.mxu0
        %5113 = vmatprep.subr.bf16.mxu0 0
        %5114 = vmatpush1.bf16.msra.mxu0 %v3801
        %5115 = vmatprep.subr.bf16.mxu0 0
        %5116 = vmatpush1.bf16.msra.mxu0 %v3802
        %5117 = vmatprep.subr.bf16.mxu0 0
        %5118 = vmatpush1.bf16.msra.mxu0 %v3803
        %5119 = vmatprep.subr.bf16.mxu0 0
        %5120 = vmatpush1.bf16.msra.mxu0 %v3804
        %5121 = vmatprep.subr.bf16.mxu0 0
        %5122 = vmatpush1.bf16.msra.mxu0 %v3805
        %5123 = vmatprep.subr.bf16.mxu0 0
        %5124 = vmatpush1.bf16.msra.mxu0 %v3806
        %5125 = vmatprep.subr.bf16.mxu0 0
        %5126 = vmatpush1.bf16.msra.mxu0 %v3807
        %5127 = vmatprep.subr.bf16.mxu0 0
        %5128 = vmatpush1.bf16.msra.mxu0 %v3808
        %5129 = vmatprep.subr.bf16.mxu0 0
        %5130 = vmatpush1.bf16.msra.mxu0 %v3809
        %5131 = vmatprep.subr.bf16.mxu0 0
        %5132 = vmatpush1.bf16.msra.mxu0 %v3810
        %5133 = vmatprep.subr.bf16.mxu0 0
        %5134 = vmatpush1.bf16.msra.mxu0 %v3811
        %5135 = vmatprep.subr.bf16.mxu0 0
        %5136 = vmatpush1.bf16.msra.mxu0 %v3812
        %5137 = vmatprep.subr.bf16.mxu0 0
        %5138 = vmatpush1.bf16.msra.mxu0 %v3813
        %5139 = vmatprep.subr.bf16.mxu0 0
        %5140 = vmatpush1.bf16.msra.mxu0 %v3814
        %5141 = vmatprep.subr.bf16.mxu0 0
        %5142 = vmatpush1.bf16.msra.mxu0 %v3815
        %5143 = vmatprep.subr.bf16.mxu0 0
        %5144 = vmatpush1.bf16.msra.mxu0 %v3816
        %5145 = vmatprep.mubr.bf16.mxu0 %v1458
        %5146 = vmatmul.mubr.bf16.gmra.mrb[0].mxu0 %v1457
        %v5147 = vpop.f32.mrb[0].mxu0
        %v5148 = vadd.f32 %v5108, %v5147
        %v5149 = vpop.f32.mrb[0].mxu0
        %v5150 = vpop.f32.mrb[0].mxu0
        %v5151 = vpop.f32.mrb[0].mxu0
        %5152 = vdwg.mxu0
        %5153 = vmatprep.subr.bf16.mxu0 0
        %5154 = vmatpush1.bf16.msra.mxu0 %v3817
        %5155 = vmatprep.subr.bf16.mxu0 0
        %5156 = vmatpush1.bf16.msra.mxu0 %v3818
        %5157 = vmatprep.subr.bf16.mxu0 0
        %5158 = vmatpush1.bf16.msra.mxu0 %v3819
        %5159 = vmatprep.subr.bf16.mxu0 0
        %5160 = vmatpush1.bf16.msra.mxu0 %v3820
        %5161 = vmatprep.subr.bf16.mxu0 0
        %5162 = vmatpush1.bf16.msra.mxu0 %v3821
        %5163 = vmatprep.subr.bf16.mxu0 0
        %5164 = vmatpush1.bf16.msra.mxu0 %v3822
        %5165 = vmatprep.subr.bf16.mxu0 0
        %5166 = vmatpush1.bf16.msra.mxu0 %v3823
        %5167 = vmatprep.subr.bf16.mxu0 0
        %5168 = vmatpush1.bf16.msra.mxu0 %v3824
        %5169 = vmatprep.subr.bf16.mxu0 0
        %5170 = vmatpush1.bf16.msra.mxu0 %v3825
        %5171 = vmatprep.subr.bf16.mxu0 0
        %5172 = vmatpush1.bf16.msra.mxu0 %v3826
        %5173 = vmatprep.subr.bf16.mxu0 0
        %5174 = vmatpush1.bf16.msra.mxu0 %v3827
        %5175 = vmatprep.subr.bf16.mxu0 0
        %5176 = vmatpush1.bf16.msra.mxu0 %v3828
        %5177 = vmatprep.subr.bf16.mxu0 0
        %5178 = vmatpush1.bf16.msra.mxu0 %v3829
        %5179 = vmatprep.subr.bf16.mxu0 0
        %5180 = vmatpush1.bf16.msra.mxu0 %v3830
        %5181 = vmatprep.subr.bf16.mxu0 0
        %5182 = vmatpush1.bf16.msra.mxu0 %v3831
        %5183 = vmatprep.subr.bf16.mxu0 0
        %5184 = vmatpush1.bf16.msra.mxu0 %v3832
        %5185 = vmatprep.mubr.bf16.mxu0 %v1460
        %5186 = vmatmul.mubr.bf16.gmra.mrb[0].mxu0 %v1459
        %v5187 = vpop.f32.mrb[0].mxu0
        %v5188 = vadd.f32 %v5148, %v5187
        %v5189 = vpop.f32.mrb[0].mxu0
        %v5190 = vpop.f32.mrb[0].mxu0
        %v5191 = vpop.f32.mrb[0].mxu0
        %5192 = vdwg.mxu0
        %5193 = vmatprep.subr.bf16.mxu0 0
        %5194 = vmatpush1.bf16.msra.mxu0 %v3833
        %5195 = vmatprep.subr.bf16.mxu0 0
        %5196 = vmatpush1.bf16.msra.mxu0 %v3834
        %5197 = vmatprep.subr.bf16.mxu0 0
        %5198 = vmatpush1.bf16.msra.mxu0 %v3835
        %5199 = vmatprep.subr.bf16.mxu0 0
        %5200 = vmatpush1.bf16.msra.mxu0 %v3836
        %5201 = vmatprep.subr.bf16.mxu0 0
        %5202 = vmatpush1.bf16.msra.mxu0 %v3837
        %5203 = vmatprep.subr.bf16.mxu0 0
        %5204 = vmatpush1.bf16.msra.mxu0 %v3838
        %5205 = vmatprep.subr.bf16.mxu0 0
        %5206 = vmatpush1.bf16.msra.mxu0 %v3839
        %5207 = vmatprep.subr.bf16.mxu0 0
        %5208 = vmatpush1.bf16.msra.mxu0 %v3840
        %5209 = vmatprep.subr.bf16.mxu0 0
        %5210 = vmatpush1.bf16.msra.mxu0 %v3841
        %5211 = vmatprep.subr.bf16.mxu0 0
        %5212 = vmatpush1.bf16.msra.mxu0 %v3842
        %5213 = vmatprep.subr.bf16.mxu0 0
        %5214 = vmatpush1.bf16.msra.mxu0 %v3843
        %5215 = vmatprep.subr.bf16.mxu0 0
        %5216 = vmatpush1.bf16.msra.mxu0 %v3844
        %5217 = vmatprep.subr.bf16.mxu0 0
        %5218 = vmatpush1.bf16.msra.mxu0 %v3845
        %5219 = vmatprep.subr.bf16.mxu0 0
        %5220 = vmatpush1.bf16.msra.mxu0 %v3846
        %5221 = vmatprep.subr.bf16.mxu0 0
        %5222 = vmatpush1.bf16.msra.mxu0 %v3847
        %5223 = vmatprep.subr.bf16.mxu0 0
        %5224 = vmatpush1.bf16.msra.mxu0 %v3848
        %5225 = vmatprep.mubr.bf16.mxu0 %v1462
        %5226 = vmatmul.mubr.bf16.gmra.mrb[0].mxu0 %v1461
        %v5227 = vpop.f32.mrb[0].mxu0
        %v5228 = vadd.f32 %v5188, %v5227
        %v5229 = vpop.f32.mrb[0].mxu0
        %v5230 = vpop.f32.mrb[0].mxu0
        %v5231 = vpop.f32.mrb[0].mxu0
        %5232 = vdwg.mxu0
        %5233 = vmatprep.subr.bf16.mxu0 0
        %5234 = vmatpush1.bf16.msra.mxu0 %v3849
        %5235 = vmatprep.subr.bf16.mxu0 0
        %5236 = vmatpush1.bf16.msra.mxu0 %v3850
        %5237 = vmatprep.subr.bf16.mxu0 0
        %5238 = vmatpush1.bf16.msra.mxu0 %v3851
        %5239 = vmatprep.subr.bf16.mxu0 0
        %5240 = vmatpush1.bf16.msra.mxu0 %v3852
        %5241 = vmatprep.subr.bf16.mxu0 0
        %5242 = vmatpush1.bf16.msra.mxu0 %v3853
        %5243 = vmatprep.subr.bf16.mxu0 0
        %5244 = vmatpush1.bf16.msra.mxu0 %v3854
        %5245 = vmatprep.subr.bf16.mxu0 0
        %5246 = vmatpush1.bf16.msra.mxu0 %v3855
        %5247 = vmatprep.subr.bf16.mxu0 0
        %5248 = vmatpush1.bf16.msra.mxu0 %v3856
        %5249 = vmatprep.subr.bf16.mxu0 0
        %5250 = vmatpush1.bf16.msra.mxu0 %v3857
        %5251 = vmatprep.subr.bf16.mxu0 0
        %5252 = vmatpush1.bf16.msra.mxu0 %v3858
        %5253 = vmatprep.subr.bf16.mxu0 0
        %5254 = vmatpush1.bf16.msra.mxu0 %v3859
        %5255 = vmatprep.subr.bf16.mxu0 0
        %5256 = vmatpush1.bf16.msra.mxu0 %v3860
        %5257 = vmatprep.subr.bf16.mxu0 0
        %5258 = vmatpush1.bf16.msra.mxu0 %v3861
        %5259 = vmatprep.subr.bf16.mxu0 0
        %5260 = vmatpush1.bf16.msra.mxu0 %v3862
        %5261 = vmatprep.subr.bf16.mxu0 0
        %5262 = vmatpush1.bf16.msra.mxu0 %v3863
        %5263 = vmatprep.subr.bf16.mxu0 0
        %5264 = vmatpush1.bf16.msra.mxu0 %v3864
        %5265 = vmatprep.mubr.bf16.mxu0 %v1464
        %5266 = vmatmul.mubr.bf16.gmra.mrb[0].mxu0 %v1463
        %v5267 = vpop.f32.mrb[0].mxu0
        %v5268 = vadd.f32 %v5228, %v5267
        %v5269 = vpop.f32.mrb[0].mxu0
        %v5270 = vpop.f32.mrb[0].mxu0
        %v5271 = vpop.f32.mrb[0].mxu0
        %5272 = vdwg.mxu0
        %5273 = vmatprep.subr.bf16.mxu0 0
        %5274 = vmatpush1.bf16.msra.mxu0 %v3865
        %5275 = vmatprep.subr.bf16.mxu0 0
        %5276 = vmatpush1.bf16.msra.mxu0 %v3866
        %5277 = vmatprep.subr.bf16.mxu0 0
        %5278 = vmatpush1.bf16.msra.mxu0 %v3867
        %5279 = vmatprep.subr.bf16.mxu0 0
        %5280 = vmatpush1.bf16.msra.mxu0 %v3868
        %5281 = vmatprep.subr.bf16.mxu0 0
        %5282 = vmatpush1.bf16.msra.mxu0 %v3869
        %5283 = vmatprep.subr.bf16.mxu0 0
        %5284 = vmatpush1.bf16.msra.mxu0 %v3870
        %5285 = vmatprep.subr.bf16.mxu0 0
        %5286 = vmatpush1.bf16.msra.mxu0 %v3871
        %5287 = vmatprep.subr.bf16.mxu0 0
        %5288 = vmatpush1.bf16.msra.mxu0 %v3872
        %5289 = vmatprep.subr.bf16.mxu0 0
        %5290 = vmatpush1.bf16.msra.mxu0 %v3873
        %5291 = vmatprep.subr.bf16.mxu0 0
        %5292 = vmatpush1.bf16.msra.mxu0 %v3874
        %5293 = vmatprep.subr.bf16.mxu0 0
        %5294 = vmatpush1.bf16.msra.mxu0 %v3875
        %5295 = vmatprep.subr.bf16.mxu0 0
        %5296 = vmatpush1.bf16.msra.mxu0 %v3876
        %5297 = vmatprep.subr.bf16.mxu0 0
        %5298 = vmatpush1.bf16.msra.mxu0 %v3877
        %5299 = vmatprep.subr.bf16.mxu0 0
        %5300 = vmatpush1.bf16.msra.mxu0 %v3878
        %5301 = vmatprep.subr.bf16.mxu0 0
        %5302 = vmatpush1.bf16.msra.mxu0 %v3879
        %5303 = vmatprep.subr.bf16.mxu0 0
        %5304 = vmatpush1.bf16.msra.mxu0 %v3880
        %5305 = vmatprep.mubr.bf16.mxu0 %v1466
        %5306 = vmatmul.mubr.bf16.gmra.mrb[0].mxu0 %v1465
        %v5307 = vpop.f32.mrb[0].mxu0
        %v5308 = vadd.f32 %v5268, %v5307
        %v5309 = vpop.f32.mrb[0].mxu0
        %v5310 = vpop.f32.mrb[0].mxu0
        %v5311 = vpop.f32.mrb[0].mxu0
        %5312 = vdwg.mxu0
        %5313 = vmatprep.subr.bf16.mxu0 0
        %5314 = vmatpush1.bf16.msra.mxu0 %v3881
        %5315 = vmatprep.subr.bf16.mxu0 0
        %5316 = vmatpush1.bf16.msra.mxu0 %v3882
        %5317 = vmatprep.subr.bf16.mxu0 0
        %5318 = vmatpush1.bf16.msra.mxu0 %v3883
        %5319 = vmatprep.subr.bf16.mxu0 0
        %5320 = vmatpush1.bf16.msra.mxu0 %v3884
        %5321 = vmatprep.subr.bf16.mxu0 0
        %5322 = vmatpush1.bf16.msra.mxu0 %v3885
        %5323 = vmatprep.subr.bf16.mxu0 0
        %5324 = vmatpush1.bf16.msra.mxu0 %v3886
        %5325 = vmatprep.subr.bf16.mxu0 0
        %5326 = vmatpush1.bf16.msra.mxu0 %v3887
        %5327 = vmatprep.subr.bf16.mxu0 0
        %5328 = vmatpush1.bf16.msra.mxu0 %v3888
        %5329 = vmatprep.subr.bf16.mxu0 0
        %5330 = vmatpush1.bf16.msra.mxu0 %v3889
        %5331 = vmatprep.subr.bf16.mxu0 0
        %5332 = vmatpush1.bf16.msra.mxu0 %v3890
        %5333 = vmatprep.subr.bf16.mxu0 0
        %5334 = vmatpush1.bf16.msra.mxu0 %v3891
        %5335 = vmatprep.subr.bf16.mxu0 0
        %5336 = vmatpush1.bf16.msra.mxu0 %v3892
        %5337 = vmatprep.subr.bf16.mxu0 0
        %5338 = vmatpush1.bf16.msra.mxu0 %v3893
        %5339 = vmatprep.subr.bf16.mxu0 0
        %5340 = vmatpush1.bf16.msra.mxu0 %v3894
        %5341 = vmatprep.subr.bf16.mxu0 0
        %5342 = vmatpush1.bf16.msra.mxu0 %v3895
        %5343 = vmatprep.subr.bf16.mxu0 0
        %5344 = vmatpush1.bf16.msra.mxu0 %v3896
        %5345 = vmatprep.mubr.bf16.mxu0 %v1468
        %5346 = vmatmul.mubr.bf16.gmra.mrb[0].mxu0 %v1467
        %v5347 = vpop.f32.mrb[0].mxu0
        %v5348 = vadd.f32 %v5308, %v5347
        %v5349 = vpop.f32.mrb[0].mxu0
        %v5350 = vpop.f32.mrb[0].mxu0
        %v5351 = vpop.f32.mrb[0].mxu0
        %5352 = vdwg.mxu0
        %5353 = vmatprep.subr.bf16.mxu0 0
        %5354 = vmatpush1.bf16.msra.mxu0 %v3897
        %5355 = vmatprep.subr.bf16.mxu0 0
        %5356 = vmatpush1.bf16.msra.mxu0 %v3898
        %5357 = vmatprep.subr.bf16.mxu0 0
        %5358 = vmatpush1.bf16.msra.mxu0 %v3899
        %5359 = vmatprep.subr.bf16.mxu0 0
        %5360 = vmatpush1.bf16.msra.mxu0 %v3900
        %5361 = vmatprep.subr.bf16.mxu0 0
        %5362 = vmatpush1.bf16.msra.mxu0 %v3901
        %5363 = vmatprep.subr.bf16.mxu0 0
        %5364 = vmatpush1.bf16.msra.mxu0 %v3902
        %5365 = vmatprep.subr.bf16.mxu0 0
        %5366 = vmatpush1.bf16.msra.mxu0 %v3903
        %5367 = vmatprep.subr.bf16.mxu0 0
        %5368 = vmatpush1.bf16.msra.mxu0 %v3904
        %5369 = vmatprep.subr.bf16.mxu0 0
        %5370 = vmatpush1.bf16.msra.mxu0 %v3905
        %5371 = vmatprep.subr.bf16.mxu0 0
        %5372 = vmatpush1.bf16.msra.mxu0 %v3906
        %5373 = vmatprep.subr.bf16.mxu0 0
        %5374 = vmatpush1.bf16.msra.mxu0 %v3907
        %5375 = vmatprep.subr.bf16.mxu0 0
        %5376 = vmatpush1.bf16.msra.mxu0 %v3908
        %5377 = vmatprep.subr.bf16.mxu0 0
        %5378 = vmatpush1.bf16.msra.mxu0 %v3909
        %5379 = vmatprep.subr.bf16.mxu0 0
        %5380 = vmatpush1.bf16.msra.mxu0 %v3910
        %5381 = vmatprep.subr.bf16.mxu0 0
        %5382 = vmatpush1.bf16.msra.mxu0 %v3911
        %5383 = vmatprep.subr.bf16.mxu0 0
        %5384 = vmatpush1.bf16.msra.mxu0 %v3912
        %5385 = vmatprep.mubr.bf16.mxu0 %v1470
        %5386 = vmatmul.mubr.bf16.gmra.mrb[0].mxu0 %v1469
        %v5387 = vpop.f32.mrb[0].mxu0
        %v5388 = vadd.f32 %v5348, %v5387
        %v5389 = vpop.f32.mrb[0].mxu0
        %v5390 = vpop.f32.mrb[0].mxu0
        %v5391 = vpop.f32.mrb[0].mxu0
        %5392 = vdwg.mxu0
        %5393 = vmatprep.subr.bf16.mxu0 0
        %5394 = vmatpush1.bf16.msra.mxu0 %v3913
        %5395 = vmatprep.subr.bf16.mxu0 0
        %5396 = vmatpush1.bf16.msra.mxu0 %v3914
        %5397 = vmatprep.subr.bf16.mxu0 0
        %5398 = vmatpush1.bf16.msra.mxu0 %v3915
        %5399 = vmatprep.subr.bf16.mxu0 0
        %5400 = vmatpush1.bf16.msra.mxu0 %v3916
        %5401 = vmatprep.subr.bf16.mxu0 0
        %5402 = vmatpush1.bf16.msra.mxu0 %v3917
        %5403 = vmatprep.subr.bf16.mxu0 0
        %5404 = vmatpush1.bf16.msra.mxu0 %v3918
        %5405 = vmatprep.subr.bf16.mxu0 0
        %5406 = vmatpush1.bf16.msra.mxu0 %v3919
        %5407 = vmatprep.subr.bf16.mxu0 0
        %5408 = vmatpush1.bf16.msra.mxu0 %v3920
        %5409 = vmatprep.subr.bf16.mxu0 0
        %5410 = vmatpush1.bf16.msra.mxu0 %v3921
        %5411 = vmatprep.subr.bf16.mxu0 0
        %5412 = vmatpush1.bf16.msra.mxu0 %v3922
        %5413 = vmatprep.subr.bf16.mxu0 0
        %5414 = vmatpush1.bf16.msra.mxu0 %v3923
        %5415 = vmatprep.subr.bf16.mxu0 0
        %5416 = vmatpush1.bf16.msra.mxu0 %v3924
        %5417 = vmatprep.subr.bf16.mxu0 0
        %5418 = vmatpush1.bf16.msra.mxu0 %v3925
        %5419 = vmatprep.subr.bf16.mxu0 0
        %5420 = vmatpush1.bf16.msra.mxu0 %v3926
        %5421 = vmatprep.subr.bf16.mxu0 0
        %5422 = vmatpush1.bf16.msra.mxu0 %v3927
        %5423 = vmatprep.subr.bf16.mxu0 0
        %5424 = vmatpush1.bf16.msra.mxu0 %v3928
        %5425 = vmatprep.mubr.bf16.mxu0 %v1472
        %5426 = vmatmul.mubr.bf16.gmra.mrb[0].mxu0 %v1471
        %v5427 = vpop.f32.mrb[0].mxu0
        %v5428 = vadd.f32 %v5388, %v5427
        %v5429 = vpop.f32.mrb[0].mxu0
        %v5430 = vpop.f32.mrb[0].mxu0
        %v5431 = vpop.f32.mrb[0].mxu0
        %5432 = vdwg.mxu0
        %5433 = vmatprep.subr.bf16.mxu0 0
        %5434 = vmatpush1.bf16.msra.mxu0 %v3929
        %5435 = vmatprep.subr.bf16.mxu0 0
        %5436 = vmatpush1.bf16.msra.mxu0 %v3930
        %5437 = vmatprep.subr.bf16.mxu0 0
        %5438 = vmatpush1.bf16.msra.mxu0 %v3931
        %5439 = vmatprep.subr.bf16.mxu0 0
        %5440 = vmatpush1.bf16.msra.mxu0 %v3932
        %5441 = vmatprep.subr.bf16.mxu0 0
        %5442 = vmatpush1.bf16.msra.mxu0 %v3933
        %5443 = vmatprep.subr.bf16.mxu0 0
        %5444 = vmatpush1.bf16.msra.mxu0 %v3934
        %5445 = vmatprep.subr.bf16.mxu0 0
        %5446 = vmatpush1.bf16.msra.mxu0 %v3935
        %5447 = vmatprep.subr.bf16.mxu0 0
        %5448 = vmatpush1.bf16.msra.mxu0 %v3936
        %5449 = vmatprep.subr.bf16.mxu0 0
        %5450 = vmatpush1.bf16.msra.mxu0 %v3937
        %5451 = vmatprep.subr.bf16.mxu0 0
        %5452 = vmatpush1.bf16.msra.mxu0 %v3938
        %5453 = vmatprep.subr.bf16.mxu0 0
        %5454 = vmatpush1.bf16.msra.mxu0 %v3939
        %5455 = vmatprep.subr.bf16.mxu0 0
        %5456 = vmatpush1.bf16.msra.mxu0 %v3940
        %5457 = vmatprep.subr.bf16.mxu0 0
        %5458 = vmatpush1.bf16.msra.mxu0 %v3941
        %5459 = vmatprep.subr.bf16.mxu0 0
        %5460 = vmatpush1.bf16.msra.mxu0 %v3942
        %5461 = vmatprep.subr.bf16.mxu0 0
        %5462 = vmatpush1.bf16.msra.mxu0 %v3943
        %5463 = vmatprep.subr.bf16.mxu0 0
        %5464 = vmatpush1.bf16.msra.mxu0 %v3944
        %5465 = vmatprep.mubr.bf16.mxu0 %v1474
        %5466 = vmatmul.mubr.bf16.gmra.mrb[0].mxu0 %v1473
        %v5467 = vpop.f32.mrb[0].mxu0
        %v5468 = vadd.f32 %v5428, %v5467
        %v5469 = vpop.f32.mrb[0].mxu0
        %v5470 = vpop.f32.mrb[0].mxu0
        %v5471 = vpop.f32.mrb[0].mxu0
        %5472 = vdwg.mxu0
        %5473 = vmatprep.subr.bf16.mxu0 0
        %5474 = vmatpush1.bf16.msra.mxu0 %v3945
        %5475 = vmatprep.subr.bf16.mxu0 0
        %5476 = vmatpush1.bf16.msra.mxu0 %v3946
        %5477 = vmatprep.subr.bf16.mxu0 0
        %5478 = vmatpush1.bf16.msra.mxu0 %v3947
        %5479 = vmatprep.subr.bf16.mxu0 0
        %5480 = vmatpush1.bf16.msra.mxu0 %v3948
        %5481 = vmatprep.subr.bf16.mxu0 0
        %5482 = vmatpush1.bf16.msra.mxu0 %v3949
        %5483 = vmatprep.subr.bf16.mxu0 0
        %5484 = vmatpush1.bf16.msra.mxu0 %v3950
        %5485 = vmatprep.subr.bf16.mxu0 0
        %5486 = vmatpush1.bf16.msra.mxu0 %v3951
        %5487 = vmatprep.subr.bf16.mxu0 0
        %5488 = vmatpush1.bf16.msra.mxu0 %v3952
        %5489 = vmatprep.subr.bf16.mxu0 0
        %5490 = vmatpush1.bf16.msra.mxu0 %v3953
        %5491 = vmatprep.subr.bf16.mxu0 0
        %5492 = vmatpush1.bf16.msra.mxu0 %v3954
        %5493 = vmatprep.subr.bf16.mxu0 0
        %5494 = vmatpush1.bf16.msra.mxu0 %v3955
        %5495 = vmatprep.subr.bf16.mxu0 0
        %5496 = vmatpush1.bf16.msra.mxu0 %v3956
        %5497 = vmatprep.subr.bf16.mxu0 0
        %5498 = vmatpush1.bf16.msra.mxu0 %v3957
        %5499 = vmatprep.subr.bf16.mxu0 0
        %5500 = vmatpush1.bf16.msra.mxu0 %v3958
        %5501 = vmatprep.subr.bf16.mxu0 0
        %5502 = vmatpush1.bf16.msra.mxu0 %v3959
        %5503 = vmatprep.subr.bf16.mxu0 0
        %5504 = vmatpush1.bf16.msra.mxu0 %v3960
        %5505 = vmatprep.mubr.bf16.mxu0 %v1476
        %5506 = vmatmul.mubr.bf16.gmra.mrb[0].mxu0 %v1475
        %v5507 = vpop.f32.mrb[0].mxu0
        %v5508 = vadd.f32 %v5468, %v5507
        %v5509 = vpop.f32.mrb[0].mxu0
        %v5510 = vpop.f32.mrb[0].mxu0
        %v5511 = vpop.f32.mrb[0].mxu0
        %5512 = vdwg.mxu0
        %5513 = vmatprep.subr.bf16.mxu0 0
        %5514 = vmatpush1.bf16.msra.mxu0 %v3961
        %5515 = vmatprep.subr.bf16.mxu0 0
        %5516 = vmatpush1.bf16.msra.mxu0 %v3962
        %5517 = vmatprep.subr.bf16.mxu0 0
        %5518 = vmatpush1.bf16.msra.mxu0 %v3963
        %5519 = vmatprep.subr.bf16.mxu0 0
        %5520 = vmatpush1.bf16.msra.mxu0 %v3964
        %5521 = vmatprep.subr.bf16.mxu0 0
        %5522 = vmatpush1.bf16.msra.mxu0 %v3965
        %5523 = vmatprep.subr.bf16.mxu0 0
        %5524 = vmatpush1.bf16.msra.mxu0 %v3966
        %5525 = vmatprep.subr.bf16.mxu0 0
        %5526 = vmatpush1.bf16.msra.mxu0 %v3967
        %5527 = vmatprep.subr.bf16.mxu0 0
        %5528 = vmatpush1.bf16.msra.mxu0 %v3968
        %5529 = vmatprep.subr.bf16.mxu0 0
        %5530 = vmatpush1.bf16.msra.mxu0 %v3969
        %5531 = vmatprep.subr.bf16.mxu0 0
        %5532 = vmatpush1.bf16.msra.mxu0 %v3970
        %5533 = vmatprep.subr.bf16.mxu0 0
        %5534 = vmatpush1.bf16.msra.mxu0 %v3971
        %5535 = vmatprep.subr.bf16.mxu0 0
        %5536 = vmatpush1.bf16.msra.mxu0 %v3972
        %5537 = vmatprep.subr.bf16.mxu0 0
        %5538 = vmatpush1.bf16.msra.mxu0 %v3973
        %5539 = vmatprep.subr.bf16.mxu0 0
        %5540 = vmatpush1.bf16.msra.mxu0 %v3974
        %5541 = vmatprep.subr.bf16.mxu0 0
        %5542 = vmatpush1.bf16.msra.mxu0 %v3975
        %5543 = vmatprep.subr.bf16.mxu0 0
        %5544 = vmatpush1.bf16.msra.mxu0 %v3976
        %5545 = vmatprep.mubr.bf16.mxu0 %v1478
        %5546 = vmatmul.mubr.bf16.gmra.mrb[0].mxu0 %v1477
        %v5547 = vpop.f32.mrb[0].mxu0
        %v5548 = vadd.f32 %v5508, %v5547
        %v5549 = vpop.f32.mrb[0].mxu0
        %v5550 = vpop.f32.mrb[0].mxu0
        %v5551 = vpop.f32.mrb[0].mxu0
        %5552 = vdwg.mxu0
        %5553 = vmatprep.subr.bf16.mxu0 0
        %5554 = vmatpush1.bf16.msra.mxu0 %v3977
        %5555 = vmatprep.subr.bf16.mxu0 0
        %5556 = vmatpush1.bf16.msra.mxu0 %v3978
        %5557 = vmatprep.subr.bf16.mxu0 0
        %5558 = vmatpush1.bf16.msra.mxu0 %v3979
        %5559 = vmatprep.subr.bf16.mxu0 0
        %5560 = vmatpush1.bf16.msra.mxu0 %v3980
        %5561 = vmatprep.subr.bf16.mxu0 0
        %5562 = vmatpush1.bf16.msra.mxu0 %v3981
        %5563 = vmatprep.subr.bf16.mxu0 0
        %5564 = vmatpush1.bf16.msra.mxu0 %v3982
        %5565 = vmatprep.subr.bf16.mxu0 0
        %5566 = vmatpush1.bf16.msra.mxu0 %v3983
        %5567 = vmatprep.subr.bf16.mxu0 0
        %5568 = vmatpush1.bf16.msra.mxu0 %v3984
        %5569 = vmatprep.subr.bf16.mxu0 0
        %5570 = vmatpush1.bf16.msra.mxu0 %v3985
        %5571 = vmatprep.subr.bf16.mxu0 0
        %5572 = vmatpush1.bf16.msra.mxu0 %v3986
        %5573 = vmatprep.subr.bf16.mxu0 0
        %5574 = vmatpush1.bf16.msra.mxu0 %v3987
        %5575 = vmatprep.subr.bf16.mxu0 0
        %5576 = vmatpush1.bf16.msra.mxu0 %v3988
        %5577 = vmatprep.subr.bf16.mxu0 0
        %5578 = vmatpush1.bf16.msra.mxu0 %v3989
        %5579 = vmatprep.subr.bf16.mxu0 0
        %5580 = vmatpush1.bf16.msra.mxu0 %v3990
        %5581 = vmatprep.subr.bf16.mxu0 0
        %5582 = vmatpush1.bf16.msra.mxu0 %v3991
        %5583 = vmatprep.subr.bf16.mxu0 0
        %5584 = vmatpush1.bf16.msra.mxu0 %v3992
        %5585 = vmatprep.mubr.bf16.mxu0 %v1480
        %5586 = vmatmul.mubr.bf16.gmra.mrb[0].mxu0 %v1479
        %v5587 = vpop.f32.mrb[0].mxu0
        %v5588 = vadd.f32 %v5548, %v5587
        %v5589 = vpop.f32.mrb[0].mxu0
        %v5590 = vpop.f32.mrb[0].mxu0
        %v5591 = vpop.f32.mrb[0].mxu0
        %5592 = vdwg.mxu0
        %5593 = vmatprep.subr.bf16.mxu0 0
        %5594 = vmatpush1.bf16.msra.mxu0 %v3993
        %5595 = vmatprep.subr.bf16.mxu0 0
        %5596 = vmatpush1.bf16.msra.mxu0 %v3994
        %5597 = vmatprep.subr.bf16.mxu0 0
        %5598 = vmatpush1.bf16.msra.mxu0 %v3995
        %5599 = vmatprep.subr.bf16.mxu0 0
        %5600 = vmatpush1.bf16.msra.mxu0 %v3996
        %5601 = vmatprep.subr.bf16.mxu0 0
        %5602 = vmatpush1.bf16.msra.mxu0 %v3997
        %5603 = vmatprep.subr.bf16.mxu0 0
        %5604 = vmatpush1.bf16.msra.mxu0 %v3998
        %5605 = vmatprep.subr.bf16.mxu0 0
        %5606 = vmatpush1.bf16.msra.mxu0 %v3999
        %5607 = vmatprep.subr.bf16.mxu0 0
        %5608 = vmatpush1.bf16.msra.mxu0 %v4000
        %5609 = vmatprep.subr.bf16.mxu0 0
        %5610 = vmatpush1.bf16.msra.mxu0 %v4001
        %5611 = vmatprep.subr.bf16.mxu0 0
        %5612 = vmatpush1.bf16.msra.mxu0 %v4002
        %5613 = vmatprep.subr.bf16.mxu0 0
        %5614 = vmatpush1.bf16.msra.mxu0 %v4003
        %5615 = vmatprep.subr.bf16.mxu0 0
        %5616 = vmatpush1.bf16.msra.mxu0 %v4004
        %5617 = vmatprep.subr.bf16.mxu0 0
        %5618 = vmatpush1.bf16.msra.mxu0 %v4005
        %5619 = vmatprep.subr.bf16.mxu0 0
        %5620 = vmatpush1.bf16.msra.mxu0 %v4006
        %5621 = vmatprep.subr.bf16.mxu0 0
        %5622 = vmatpush1.bf16.msra.mxu0 %v4007
        %5623 = vmatprep.subr.bf16.mxu0 0
        %5624 = vmatpush1.bf16.msra.mxu0 %v4008
        %5625 = vmatprep.mubr.bf16.mxu0 %v1482
        %5626 = vmatmul.mubr.bf16.gmra.mrb[0].mxu0 %v1481
        %v5627 = vpop.f32.mrb[0].mxu0
        %v5628 = vadd.f32 %v5588, %v5627
        %v5629 = vpop.f32.mrb[0].mxu0
        %v5630 = vpop.f32.mrb[0].mxu0
        %v5631 = vpop.f32.mrb[0].mxu0
        %5632 = vdwg.mxu0
        %5633 = vmatprep.subr.bf16.mxu0 0
        %5634 = vmatpush1.bf16.msra.mxu0 %v4009
        %5635 = vmatprep.subr.bf16.mxu0 0
        %5636 = vmatpush1.bf16.msra.mxu0 %v4010
        %5637 = vmatprep.subr.bf16.mxu0 0
        %5638 = vmatpush1.bf16.msra.mxu0 %v4011
        %5639 = vmatprep.subr.bf16.mxu0 0
        %5640 = vmatpush1.bf16.msra.mxu0 %v4012
        %5641 = vmatprep.subr.bf16.mxu0 0
        %5642 = vmatpush1.bf16.msra.mxu0 %v4013
        %5643 = vmatprep.subr.bf16.mxu0 0
        %5644 = vmatpush1.bf16.msra.mxu0 %v4014
        %5645 = vmatprep.subr.bf16.mxu0 0
        %5646 = vmatpush1.bf16.msra.mxu0 %v4015
        %5647 = vmatprep.subr.bf16.mxu0 0
        %5648 = vmatpush1.bf16.msra.mxu0 %v4016
        %5649 = vmatprep.subr.bf16.mxu0 0
        %5650 = vmatpush1.bf16.msra.mxu0 %v4017
        %5651 = vmatprep.subr.bf16.mxu0 0
        %5652 = vmatpush1.bf16.msra.mxu0 %v4018
        %5653 = vmatprep.subr.bf16.mxu0 0
        %5654 = vmatpush1.bf16.msra.mxu0 %v4019
        %5655 = vmatprep.subr.bf16.mxu0 0
        %5656 = vmatpush1.bf16.msra.mxu0 %v4020
        %5657 = vmatprep.subr.bf16.mxu0 0
        %5658 = vmatpush1.bf16.msra.mxu0 %v4021
        %5659 = vmatprep.subr.bf16.mxu0 0
        %5660 = vmatpush1.bf16.msra.mxu0 %v4022
        %5661 = vmatprep.subr.bf16.mxu0 0
        %5662 = vmatpush1.bf16.msra.mxu0 %v4023
        %5663 = vmatprep.subr.bf16.mxu0 0
        %5664 = vmatpush1.bf16.msra.mxu0 %v4024
        %5665 = vmatprep.mubr.bf16.mxu0 %v1484
        %5666 = vmatmul.mubr.bf16.gmra.mrb[0].mxu0 %v1483
        %v5667 = vpop.f32.mrb[0].mxu0
        %v5668 = vadd.f32 %v5628, %v5667
        %v5669 = vpop.f32.mrb[0].mxu0
        %v5670 = vpop.f32.mrb[0].mxu0
        %v5671 = vpop.f32.mrb[0].mxu0
        %5672 = vdwg.mxu0
        %5673 = vmatprep.subr.bf16.mxu0 0
        %5674 = vmatpush1.bf16.msra.mxu0 %v4025
        %5675 = vmatprep.subr.bf16.mxu0 0
        %5676 = vmatpush1.bf16.msra.mxu0 %v4026
        %5677 = vmatprep.subr.bf16.mxu0 0
        %5678 = vmatpush1.bf16.msra.mxu0 %v4027
        %5679 = vmatprep.subr.bf16.mxu0 0
        %5680 = vmatpush1.bf16.msra.mxu0 %v4028
        %5681 = vmatprep.subr.bf16.mxu0 0
        %5682 = vmatpush1.bf16.msra.mxu0 %v4029
        %5683 = vmatprep.subr.bf16.mxu0 0
        %5684 = vmatpush1.bf16.msra.mxu0 %v4030
        %5685 = vmatprep.subr.bf16.mxu0 0
        %5686 = vmatpush1.bf16.msra.mxu0 %v4031
        %5687 = vmatprep.subr.bf16.mxu0 0
        %5688 = vmatpush1.bf16.msra.mxu0 %v4032
        %5689 = vmatprep.subr.bf16.mxu0 0
        %5690 = vmatpush1.bf16.msra.mxu0 %v4033
        %5691 = vmatprep.subr.bf16.mxu0 0
        %5692 = vmatpush1.bf16.msra.mxu0 %v4034
        %5693 = vmatprep.subr.bf16.mxu0 0
        %5694 = vmatpush1.bf16.msra.mxu0 %v4035
        %5695 = vmatprep.subr.bf16.mxu0 0
        %5696 = vmatpush1.bf16.msra.mxu0 %v4036
        %5697 = vmatprep.subr.bf16.mxu0 0
        %5698 = vmatpush1.bf16.msra.mxu0 %v4037
        %5699 = vmatprep.subr.bf16.mxu0 0
        %5700 = vmatpush1.bf16.msra.mxu0 %v4038
        %5701 = vmatprep.subr.bf16.mxu0 0
        %5702 = vmatpush1.bf16.msra.mxu0 %v4039
        %5703 = vmatprep.subr.bf16.mxu0 0
        %5704 = vmatpush1.bf16.msra.mxu0 %v4040
        %5705 = vmatprep.mubr.bf16.mxu0 %v1486
        %5706 = vmatmul.mubr.bf16.gmra.mrb[0].mxu0 %v1485
        %v5707 = vpop.f32.mrb[0].mxu0
        %v5708 = vadd.f32 %v5668, %v5707
        %v5709 = vpop.f32.mrb[0].mxu0
        %v5710 = vpop.f32.mrb[0].mxu0
        %v5711 = vpop.f32.mrb[0].mxu0
        %5712 = vdwg.mxu0
        %5713 = vmatprep.subr.bf16.mxu0 0
        %5714 = vmatpush1.bf16.msra.mxu0 %v4041
        %5715 = vmatprep.subr.bf16.mxu0 0
        %5716 = vmatpush1.bf16.msra.mxu0 %v4042
        %5717 = vmatprep.subr.bf16.mxu0 0
        %5718 = vmatpush1.bf16.msra.mxu0 %v4043
        %5719 = vmatprep.subr.bf16.mxu0 0
        %5720 = vmatpush1.bf16.msra.mxu0 %v4044
        %5721 = vmatprep.subr.bf16.mxu0 0
        %5722 = vmatpush1.bf16.msra.mxu0 %v4045
        %5723 = vmatprep.subr.bf16.mxu0 0
        %5724 = vmatpush1.bf16.msra.mxu0 %v4046
        %5725 = vmatprep.subr.bf16.mxu0 0
        %5726 = vmatpush1.bf16.msra.mxu0 %v4047
        %5727 = vmatprep.subr.bf16.mxu0 0
        %5728 = vmatpush1.bf16.msra.mxu0 %v4048
        %5729 = vmatprep.subr.bf16.mxu0 0
        %5730 = vmatpush1.bf16.msra.mxu0 %v4049
        %5731 = vmatprep.subr.bf16.mxu0 0
        %5732 = vmatpush1.bf16.msra.mxu0 %v4050
        %5733 = vmatprep.subr.bf16.mxu0 0
        %5734 = vmatpush1.bf16.msra.mxu0 %v4051
        %5735 = vmatprep.subr.bf16.mxu0 0
        %5736 = vmatpush1.bf16.msra.mxu0 %v4052
        %5737 = vmatprep.subr.bf16.mxu0 0
        %5738 = vmatpush1.bf16.msra.mxu0 %v4053
        %5739 = vmatprep.subr.bf16.mxu0 0
        %5740 = vmatpush1.bf16.msra.mxu0 %v4054
        %5741 = vmatprep.subr.bf16.mxu0 0
        %5742 = vmatpush1.bf16.msra.mxu0 %v4055
        %5743 = vmatprep.subr.bf16.mxu0 0
        %5744 = vmatpush1.bf16.msra.mxu0 %v4056
        %5745 = vmatprep.mubr.bf16.mxu0 %v1488
        %5746 = vmatmul.mubr.bf16.gmra.mrb[0].mxu0 %v1487
        %v5747 = vpop.f32.mrb[0].mxu0
        %v5748 = vadd.f32 %v5708, %v5747
        %v5749 = vpop.f32.mrb[0].mxu0
        %v5750 = vpop.f32.mrb[0].mxu0
        %v5751 = vpop.f32.mrb[0].mxu0
        %5752 = vdwg.mxu0
        %5753 = vmatprep.subr.bf16.mxu0 0
        %5754 = vmatpush1.bf16.msra.mxu0 %v4057
        %5755 = vmatprep.subr.bf16.mxu0 0
        %5756 = vmatpush1.bf16.msra.mxu0 %v4058
        %5757 = vmatprep.subr.bf16.mxu0 0
        %5758 = vmatpush1.bf16.msra.mxu0 %v4059
        %5759 = vmatprep.subr.bf16.mxu0 0
        %5760 = vmatpush1.bf16.msra.mxu0 %v4060
        %5761 = vmatprep.subr.bf16.mxu0 0
        %5762 = vmatpush1.bf16.msra.mxu0 %v4061
        %5763 = vmatprep.subr.bf16.mxu0 0
        %5764 = vmatpush1.bf16.msra.mxu0 %v4062
        %5765 = vmatprep.subr.bf16.mxu0 0
        %5766 = vmatpush1.bf16.msra.mxu0 %v4063
        %5767 = vmatprep.subr.bf16.mxu0 0
        %5768 = vmatpush1.bf16.msra.mxu0 %v4064
        %5769 = vmatprep.subr.bf16.mxu0 0
        %5770 = vmatpush1.bf16.msra.mxu0 %v4065
        %5771 = vmatprep.subr.bf16.mxu0 0
        %5772 = vmatpush1.bf16.msra.mxu0 %v4066
        %5773 = vmatprep.subr.bf16.mxu0 0
        %5774 = vmatpush1.bf16.msra.mxu0 %v4067
        %5775 = vmatprep.subr.bf16.mxu0 0
        %5776 = vmatpush1.bf16.msra.mxu0 %v4068
        %5777 = vmatprep.subr.bf16.mxu0 0
        %5778 = vmatpush1.bf16.msra.mxu0 %v4069
        %5779 = vmatprep.subr.bf16.mxu0 0
        %5780 = vmatpush1.bf16.msra.mxu0 %v4070
        %5781 = vmatprep.subr.bf16.mxu0 0
        %5782 = vmatpush1.bf16.msra.mxu0 %v4071
        %5783 = vmatprep.subr.bf16.mxu0 0
        %5784 = vmatpush1.bf16.msra.mxu0 %v4072
        %5785 = vmatprep.mubr.bf16.mxu0 %v1490
        %5786 = vmatmul.mubr.bf16.gmra.mrb[0].mxu0 %v1489
        %v5787 = vpop.f32.mrb[0].mxu0
        %v5788 = vadd.f32 %v5748, %v5787
        %v5789 = vpop.f32.mrb[0].mxu0
        %v5790 = vpop.f32.mrb[0].mxu0
        %v5791 = vpop.f32.mrb[0].mxu0
        %5792 = vdwg.mxu0
        %5793 = vmatprep.subr.bf16.mxu0 0
        %5794 = vmatpush1.bf16.msra.mxu0 %v4073
        %5795 = vmatprep.subr.bf16.mxu0 0
        %5796 = vmatpush1.bf16.msra.mxu0 %v4074
        %5797 = vmatprep.subr.bf16.mxu0 0
        %5798 = vmatpush1.bf16.msra.mxu0 %v4075
        %5799 = vmatprep.subr.bf16.mxu0 0
        %5800 = vmatpush1.bf16.msra.mxu0 %v4076
        %5801 = vmatprep.subr.bf16.mxu0 0
        %5802 = vmatpush1.bf16.msra.mxu0 %v4077
        %5803 = vmatprep.subr.bf16.mxu0 0
        %5804 = vmatpush1.bf16.msra.mxu0 %v4078
        %5805 = vmatprep.subr.bf16.mxu0 0
        %5806 = vmatpush1.bf16.msra.mxu0 %v4079
        %5807 = vmatprep.subr.bf16.mxu0 0
        %5808 = vmatpush1.bf16.msra.mxu0 %v4080
        %5809 = vmatprep.subr.bf16.mxu0 0
        %5810 = vmatpush1.bf16.msra.mxu0 %v4081
        %5811 = vmatprep.subr.bf16.mxu0 0
        %5812 = vmatpush1.bf16.msra.mxu0 %v4082
        %5813 = vmatprep.subr.bf16.mxu0 0
        %5814 = vmatpush1.bf16.msra.mxu0 %v4083
        %5815 = vmatprep.subr.bf16.mxu0 0
        %5816 = vmatpush1.bf16.msra.mxu0 %v4084
        %5817 = vmatprep.subr.bf16.mxu0 0
        %5818 = vmatpush1.bf16.msra.mxu0 %v4085
        %5819 = vmatprep.subr.bf16.mxu0 0
        %5820 = vmatpush1.bf16.msra.mxu0 %v4086
        %5821 = vmatprep.subr.bf16.mxu0 0
        %5822 = vmatpush1.bf16.msra.mxu0 %v4087
        %5823 = vmatprep.subr.bf16.mxu0 0
        %5824 = vmatpush1.bf16.msra.mxu0 %v4088
        %5825 = vmatprep.mubr.bf16.mxu0 %v1492
        %5826 = vmatmul.mubr.bf16.gmra.mrb[0].mxu0 %v1491
        %v5827 = vpop.f32.mrb[0].mxu0
        %v5828 = vadd.f32 %v5788, %v5827
        %v5829 = vpop.f32.mrb[0].mxu0
        %v5830 = vpop.f32.mrb[0].mxu0
        %v5831 = vpop.f32.mrb[0].mxu0
        %5832 = vdwg.mxu0
        %5833 = vmatprep.subr.bf16.mxu0 0
        %5834 = vmatpush1.bf16.msra.mxu0 %v4089
        %5835 = vmatprep.subr.bf16.mxu0 0
        %5836 = vmatpush1.bf16.msra.mxu0 %v4090
        %5837 = vmatprep.subr.bf16.mxu0 0
        %5838 = vmatpush1.bf16.msra.mxu0 %v4091
        %5839 = vmatprep.subr.bf16.mxu0 0
        %5840 = vmatpush1.bf16.msra.mxu0 %v4092
        %5841 = vmatprep.subr.bf16.mxu0 0
        %5842 = vmatpush1.bf16.msra.mxu0 %v4093
        %5843 = vmatprep.subr.bf16.mxu0 0
        %5844 = vmatpush1.bf16.msra.mxu0 %v4094
        %5845 = vmatprep.subr.bf16.mxu0 0
        %5846 = vmatpush1.bf16.msra.mxu0 %v4095
        %5847 = vmatprep.subr.bf16.mxu0 0
        %5848 = vmatpush1.bf16.msra.mxu0 %v4096
        %5849 = vmatprep.subr.bf16.mxu0 0
        %5850 = vmatpush1.bf16.msra.mxu0 %v4097
        %5851 = vmatprep.subr.bf16.mxu0 0
        %5852 = vmatpush1.bf16.msra.mxu0 %v4098
        %5853 = vmatprep.subr.bf16.mxu0 0
        %5854 = vmatpush1.bf16.msra.mxu0 %v4099
        %5855 = vmatprep.subr.bf16.mxu0 0
        %5856 = vmatpush1.bf16.msra.mxu0 %v4100
        %5857 = vmatprep.subr.bf16.mxu0 0
        %5858 = vmatpush1.bf16.msra.mxu0 %v4101
        %5859 = vmatprep.subr.bf16.mxu0 0
        %5860 = vmatpush1.bf16.msra.mxu0 %v4102
        %5861 = vmatprep.subr.bf16.mxu0 0
        %5862 = vmatpush1.bf16.msra.mxu0 %v4103
        %5863 = vmatprep.subr.bf16.mxu0 0
        %5864 = vmatpush1.bf16.msra.mxu0 %v4104
        %5865 = vmatprep.mubr.bf16.mxu0 %v1494
        %5866 = vmatmul.mubr.bf16.gmra.mrb[0].mxu0 %v1493
        %v5867 = vpop.f32.mrb[0].mxu0
        %v5868 = vadd.f32 %v5828, %v5867
        %v5869 = vpop.f32.mrb[0].mxu0
        %v5870 = vpop.f32.mrb[0].mxu0
        %v5871 = vpop.f32.mrb[0].mxu0
        %5872 = vdwg.mxu0
        %5873 = vmatprep.subr.bf16.mxu0 0
        %5874 = vmatpush1.bf16.msra.mxu0 %v4105
        %5875 = vmatprep.subr.bf16.mxu0 0
        %5876 = vmatpush1.bf16.msra.mxu0 %v4106
        %5877 = vmatprep.subr.bf16.mxu0 0
        %5878 = vmatpush1.bf16.msra.mxu0 %v4107
        %5879 = vmatprep.subr.bf16.mxu0 0
        %5880 = vmatpush1.bf16.msra.mxu0 %v4108
        %5881 = vmatprep.subr.bf16.mxu0 0
        %5882 = vmatpush1.bf16.msra.mxu0 %v4109
        %5883 = vmatprep.subr.bf16.mxu0 0
        %5884 = vmatpush1.bf16.msra.mxu0 %v4110
        %5885 = vmatprep.subr.bf16.mxu0 0
        %5886 = vmatpush1.bf16.msra.mxu0 %v4111
        %5887 = vmatprep.subr.bf16.mxu0 0
        %5888 = vmatpush1.bf16.msra.mxu0 %v4112
        %5889 = vmatprep.subr.bf16.mxu0 0
        %5890 = vmatpush1.bf16.msra.mxu0 %v4113
        %5891 = vmatprep.subr.bf16.mxu0 0
        %5892 = vmatpush1.bf16.msra.mxu0 %v4114
        %5893 = vmatprep.subr.bf16.mxu0 0
        %5894 = vmatpush1.bf16.msra.mxu0 %v4115
        %5895 = vmatprep.subr.bf16.mxu0 0
        %5896 = vmatpush1.bf16.msra.mxu0 %v4116
        %5897 = vmatprep.subr.bf16.mxu0 0
        %5898 = vmatpush1.bf16.msra.mxu0 %v4117
        %5899 = vmatprep.subr.bf16.mxu0 0
        %5900 = vmatpush1.bf16.msra.mxu0 %v4118
        %5901 = vmatprep.subr.bf16.mxu0 0
        %5902 = vmatpush1.bf16.msra.mxu0 %v4119
        %5903 = vmatprep.subr.bf16.mxu0 0
        %5904 = vmatpush1.bf16.msra.mxu0 %v4120
        %5905 = vmatprep.mubr.bf16.mxu0 %v1496
        %5906 = vmatmul.mubr.bf16.gmra.mrb[0].mxu0 %v1495
        %v5907 = vpop.f32.mrb[0].mxu0
        %v5908 = vadd.f32 %v5868, %v5907
        %v5909 = vpop.f32.mrb[0].mxu0
        %v5910 = vpop.f32.mrb[0].mxu0
        %v5911 = vpop.f32.mrb[0].mxu0
        %5912 = vdwg.mxu0
        %v5913 = vadd.f32 %v312, %v5908
        %5914 = vst [vmem:[#allocation2] sm:$0xff] %v5913
        %p5915 = scmp.eq.s32.totalorder %s22, 2
        // Predicated region
        $region41: #{lang_ensemble_forward.3} parent=31 // pred_check
          %p5916 = pneg %p5915
        $region42: #{lang_ensemble_forward.3} parent=31 // pred_check_branch
          %5918 = sbr.rel (%p5916) target = $region44
        $region43: #{lang_ensemble_forward.3} parent=31 // pred_region
          %v5919 = vld [vmem:[#allocation2] sm:$0xff]
          %v5920 = vld [vmem:[%s237] sm:$0x1]
          %v5922 = vlaneseq
          %v5923 = vshrl.u32 %v5922, 7
          %v5924 = vsub.s32 0, %v5923
          %v5925 = vrot.slane %v5920, %v5924
          %v5927 = vadd.f32 %v5919, %v5925
          %v5928 = vmax.f32 %v5927, 0.0
          %5929 = vst [vmem:[%s241] sm:$0xff] %v5928
        $region44: #{lang_ensemble_forward.3} parent=31 // pred_fallthru
          _
        %p5930 = scmp.lt.s32.totalorder %s21, 2
        %s5931 = scalar_select %p5930, %s21, 2
        %s5932 = smul.addr %s5931, 8
        %s5933 = scalar_lea.vmem %s3, %s5932
        // Predicated region
        $region45: #{lang_ensemble_forward.3} parent=31 // pred_check
          %p5934 = pneg %p127
        $region46: #{lang_ensemble_forward.3} parent=31 // pred_check_branch
          %5936 = sbr.rel (%p5934) target = $region48
        $region47: #{lang_ensemble_forward.3} parent=31 // pred_region
          _
        $region48: #{lang_ensemble_forward.3} parent=31 // pred_fallthru
          _
      $region32: #{lang_ensemble_forward.3} parent=5 // pred_fallthru
        _
      %p5937 = scmp.le.s32.totalorder 2, %s12
      // Predicated region
      $region49: #{lang_ensemble_forward.3} parent=5 // pred_check
        %p5938 = pneg %p5937
      $region50: #{lang_ensemble_forward.3} parent=5 // pred_check_branch
        %5940 = sbr.rel (%p5938) target = $region52
      $region51: #{lang_ensemble_forward.3} parent=5 // pred_region
        %s5941 = ssub.s32 %s12, 2
        // Predicated region
        $region53: #{lang_ensemble_forward.3} parent=51 // pred_check
          %p5942 = pneg %p133
        $region54: #{lang_ensemble_forward.3} parent=51 // pred_check_branch
          %5944 = sbr.rel (%p5942) target = $region56
        $region55: #{lang_ensemble_forward.3} parent=51 // pred_region
          %p5945 = scmp.lt.s32.totalorder %s23, 2
          %s5946 = scalar_select %p5945, %s23, 2
          %s5947 = smul.addr %s5946, 8
          %s5948 = scalar_lea.vmem %s3, %s5947
        $region56: #{lang_ensemble_forward.3} parent=51 // pred_fallthru
          _
      $region52: #{lang_ensemble_forward.3} parent=5 // pred_fallthru
        _
    $region6: #{lang_ensemble_forward.3} parent=1 // loop_footer
      %s16 = sadd.s32 1, %s12
    $region7: #{lang_ensemble_forward.3} parent=1 // loop_footer_branch
      %11 = sbr.rel target = $region3
    $region8: #{lang_ensemble_forward.3} parent=1 // loop_exit
      _
    %5949 = vsyncpa [#allocation4], 1
    %s5950 = scalar_lea.sflag [#allocation4], 1
    %5951 = vsyncpa %s5950, 1

</llo_original>
